<compile_context>
chip_gen: v7x
topology: tpu7x:2x2x1
jax: 0.10.0
libtpu: 0.0.40
codegen_flags: <defaults>
</compile_context>

<pallas_src>
import functools

import jax
import jax.numpy as jnp
from jax.experimental import pallas as pl
from jax.experimental.pallas import tpu as pltpu


def _round_up(x, m):
    return ((x + m - 1) // m) * m


def _vmem_limit_bytes():
    """Per-generation scoped-VMEM limit, with headroom for Mosaic scratch."""
    cap = 64 * 1024 * 1024
    try:
        info = pltpu.get_tpu_info()
        cap = int(getattr(info, "vmem_capacity_bytes", cap))
    except Exception:                      # fall back to safest (v7x) budget
        cap = 64 * 1024 * 1024
    return max(32 * 1024 * 1024, min(cap - 16 * 1024 * 1024, 112 * 1024 * 1024))


def _pick_row_tile(H, W, c2, vmem_budget):
    """Largest row tile whose in-kernel temporaries comfortably fit VMEM,
    keeping >=2 row tiles (pipelining / megacore balance) when H allows."""
    Wp = _round_up(W + 2, 8)
    best = 8
    for t in (8, 16, 32, 64, 128, 256):
        if t > max(H, 8):
            break
        if H >= 16 and t > max(H // 2, 8):
            break
        # y slab + 3 shifted slabs + conv acc + gate temporaries, all f32-ish.
        temps = (t + 2) * Wp * c2 * 4 * 6
        if temps <= vmem_budget // 2:
            best = t
    return best


# ----------------------------- fused GDFN kernel -----------------------------

def _gdfn_kernel(*refs, use_bias, H, W, th):
    if use_bias:
        (x_ref, wpi_ref, wdw_ref, wpo_ref,
         bpi_ref, bdw_ref, bpo_ref, o_ref) = refs
    else:
        x_ref, wpi_ref, wdw_ref, wpo_ref, o_ref = refs
        bpi_ref = bdw_ref = bpo_ref = None

    Wp = x_ref.shape[1]
    dim = x_ref.shape[2]
    c2 = wpi_ref.shape[1]
    hidden = c2 // 2
    hs = th + 2                                   # row slab incl. 1-row halo

    i = pl.program_id(1)
    row0 = pl.multiple_of(i * th, 8)              # slab start in padded coords

    # ---- project_in: one merged (dim -> 2*hidden) MXU matmul over the slab ----
    xs = x_ref[pl.ds(row0, hs), :, :]             # (hs, Wp, dim), bf16
    y = jnp.dot(xs.reshape(hs * Wp, dim), wpi_ref[...],
                preferred_element_type=jnp.float32)          # (hs*Wp, c2) f32
    if use_bias:
        y = y + bpi_ref[...]
    y = y.reshape(hs, Wp, c2)

    # The dwconv halo must be exactly zero (PyTorch zero-pads project_in's
    # OUTPUT); the padded x rows/cols would otherwise contribute the project_in
    # bias.  Zero everything outside the real image.
    rows = jax.lax.broadcasted_iota(jnp.int32, (hs, Wp, c2), 0) + row0
    cols = jax.lax.broadcasted_iota(jnp.int32, (hs, Wp, c2), 1)
    inside = (rows >= 1) & (rows <= H) & (cols >= 1) & (cols <= W)
    y = jnp.where(inside, y, 0.0)

    # ---- depthwise 3x3 conv on all 2*hidden channels at once ----
    wdw = wdw_ref[...]                            # (3, 3, c2) f32
    y_kw = [y[:, kw:kw + W, :] for kw in range(3)]   # 3 sublane-shifted slabs
    a = jnp.zeros((th, W, c2), jnp.float32)
    for kh in range(3):
        for kw in range(3):
            a = a + y_kw[kw][kh:kh + th] * wdw[kh, kw]   # kh slice is leading-axis (free)
    if use_bias:
        a = a + bdw_ref[...]

    # ---- gate: silu(x1) * x2  (EUP exp + EUP approx reciprocal) ----
    a1 = a[:, :, :hidden]
    a2 = a[:, :, hidden:]
    sig = pl.reciprocal(1.0 + jnp.exp(-a1), approx=True)
    g = a1 * sig * a2                              # (th, W, hidden) f32

    # ---- project_out: (hidden -> dim) MXU matmul ----
    out = jnp.dot(g.reshape(th * W, hidden).astype(wpo_ref.dtype), wpo_ref[...],
                  preferred_element_type=jnp.float32)        # (th*W, dim) f32
    if use_bias:
        out = out + bpo_ref[...]
    o_ref[...] = out.reshape(th, W, dim).astype(o_ref.dtype)


# --------------------------------- wrapper -----------------------------------

def gdfn_forward(x_nchw, params, *, use_bias=True):
    B, dim, H, W = x_nchw.shape
    wpi = params["W_pi"]
    c2 = wpi.shape[1]
    hidden = c2 // 2
    cdt = jnp.bfloat16                      # MXU operand dtype (f32 accumulate)

    vmem_limit = _vmem_limit_bytes()
    th = _pick_row_tile(H, W, c2, vmem_limit)
    n_h = pl.cdiv(H, th)
    Hpad = n_h * th
    Wp = _round_up(W + 2, 8)

    # NHWC; 1-px spatial halo + sublane-aligned W + H rounded up to the row
    # tile.  This is the only wrapper-side pad and touches only the small
    # dim-channel input — the 2*hidden-channel activations never leave VMEM.
    x = jnp.transpose(x_nchw, (0, 2, 3, 1))
    xp = jnp.pad(x, ((0, 0), (1, Hpad - H + 1), (1, Wp - W - 1), (0, 0)))
    xp = xp.astype(cdt)

    inputs = [xp,
              wpi.astype(cdt),
              params["w_dw"].astype(jnp.float32),
              params["W_po"].astype(cdt)]
    in_specs = [
        pl.BlockSpec((None, Hpad + 2, Wp, dim), lambda b, i: (b, 0, 0, 0)),
        pl.BlockSpec((dim, c2), lambda b, i: (0, 0)),
        pl.BlockSpec((3, 3, c2), lambda b, i: (0, 0, 0)),
        pl.BlockSpec((hidden, dim), lambda b, i: (0, 0)),
    ]
    if use_bias:
        inputs += [params["b_pi"].reshape(1, c2).astype(jnp.float32),
                   params["b_dw"].reshape(1, 1, c2).astype(jnp.float32),
                   params["b_po"].reshape(1, dim).astype(jnp.float32)]
        in_specs += [pl.BlockSpec((1, c2), lambda b, i: (0, 0)),
                     pl.BlockSpec((1, 1, c2), lambda b, i: (0, 0, 0)),
                     pl.BlockSpec((1, dim), lambda b, i: (0, 0))]

    out = pl.pallas_call(
        functools.partial(_gdfn_kernel, use_bias=use_bias, H=H, W=W, th=th),
        out_shape=jax.ShapeDtypeStruct((B, Hpad, W, dim), jnp.float32),
        grid=(B, n_h),
        in_specs=in_specs,
        out_specs=pl.BlockSpec((None, th, W, dim), lambda b, i: (b, i, 0, 0)),
        compiler_params=pltpu.CompilerParams(
            dimension_semantics=("parallel", "parallel"),
            vmem_limit_bytes=vmem_limit),
    )(*inputs)

    out = out[:, :H]                                    # drop Hpad padding rows
    return jnp.transpose(out, (0, 3, 1, 2))             # back to NCHW


# ------------------------- deterministic parameter init -------------------------

def init_params(key, dim, ffn_expansion_factor):
    hidden = int(dim * ffn_expansion_factor)
    c2 = 2 * hidden
    ks = jax.random.split(key, 6)

    def w(k, shape, scale):
        return jax.random.normal(k, shape, jnp.float32) * scale

    return {
        # project_in, merged into a single (dim, 2*hidden) weight:
        # columns [0, hidden) -> x1, [hidden, 2*hidden) -> x2 (chunk order).
        "W_pi": w(ks[0], (dim, c2), 0.1),
        "b_pi": w(ks[1], (c2,), 0.02),
        # depthwise 3x3 (per-channel) on all 2*hidden channels
        "w_dw": w(ks[2], (3, 3, c2), 0.2),
        "b_dw": w(ks[3], (c2,), 0.02),
        # project_out
        "W_po": w(ks[4], (hidden, dim), 0.1),
        "b_po": w(ks[5], (dim,), 0.02),
    }


# ------------------------------ pure-JAX reference ------------------------------

def gdfn_reference(x_nchw, p, use_bias):
    hi = jax.lax.Precision.HIGHEST
    x = jnp.transpose(x_nchw, (0, 2, 3, 1)).astype(jnp.float32)
    y = jnp.einsum("bhwc,cd->bhwd", x, p["W_pi"], precision=hi)
    if use_bias:
        y = y + p["b_pi"]

    B, H, W, c2 = y.shape
    hidden = c2 // 2
    yp = jnp.pad(y, ((0, 0), (1, 1), (1, 1), (0, 0)))
    a = jnp.zeros_like(y)
    for kh in range(3):
        for kw in range(3):
            a = a + yp[:, kh:kh + H, kw:kw + W, :] * p["w_dw"][kh, kw]
    if use_bias:
        a = a + p["b_dw"]

    a1, a2 = a[..., :hidden], a[..., hidden:]
    g = a1 * jax.nn.sigmoid(a1) * a2
    out = jnp.einsum("bhwc,cd->bhwd", g, p["W_po"], precision=hi)
    if use_bias:
        out = out + p["b_po"]
    return jnp.transpose(out, (0, 3, 1, 2))


if __name__ == "__main__":
    key = jax.random.PRNGKey(0)
    k_in, k_par = jax.random.split(key)

    dim, ffn_expansion_factor, use_bias = 16, 2.0, True   # hidden = 32
    B, H, W = 2, 32, 32
    x = jax.random.normal(k_in, (B, dim, H, W), jnp.float32)
    params = init_params(k_par, dim, ffn_expansion_factor)

    fwd = jax.jit(gdfn_forward, static_argnames=("use_bias",))
    out = jax.block_until_ready(fwd(x, params, use_bias=use_bias))

    assert out.shape == (B, dim, H, W)
    assert bool(jnp.all(jnp.isfinite(out)))

    # f32 HIGHEST reference; kernel uses bf16 MXU operands + approx reciprocal,
    # so compare relative to the output scale.
    ref = gdfn_reference(x, params, use_bias)
    scale = float(jnp.max(jnp.abs(ref)))
    err = float(jnp.max(jnp.abs(out - ref)))
    assert err <= 0.05 * scale + 1e-4, f"mismatch: max abs err {err}, scale {scale}"

    print("KERNEL_OK")
</pallas_src>

<mosaic_0001>
module attributes {stable_mosaic.version = 11 : i64} {
  func.func @_gdfn_kernel(%arg0: i32, %arg1: i32, %arg2: memref<1x34x40x16xbf16, #tpu.memory_space<vmem>>, %arg3: memref<16x64xbf16, #tpu.memory_space<vmem>>, %arg4: memref<3x3x64xf32, #tpu.memory_space<vmem>>, %arg5: memref<32x16xbf16, #tpu.memory_space<vmem>>, %arg6: memref<1x64xf32, #tpu.memory_space<vmem>>, %arg7: memref<1x1x64xf32, #tpu.memory_space<vmem>>, %arg8: memref<1x16xf32, #tpu.memory_space<vmem>>, %arg9: memref<1x16x32x16xf32, #tpu.memory_space<vmem>>) attributes {dimension_semantics = [#tpu.dimension_semantics<parallel>, #tpu.dimension_semantics<parallel>], iteration_bounds = array<i64: 2, 2>, scalar_prefetch = 0 : i64, scratch_operands = 0 : i64, tpu.core_type = #tpu.core_type<tc>, window_params = [{transform_indices = @transform_0, window_bounds = array<i64: 1, 34, 40, 16>}, {pipeline_mode = #tpu.pipeline_mode<synchronous>, transform_indices = @transform_1, window_bounds = array<i64: 16, 64>}, {pipeline_mode = #tpu.pipeline_mode<synchronous>, transform_indices = @transform_2, window_bounds = array<i64: 3, 3, 64>}, {pipeline_mode = #tpu.pipeline_mode<synchronous>, transform_indices = @transform_3, window_bounds = array<i64: 32, 16>}, {pipeline_mode = #tpu.pipeline_mode<synchronous>, transform_indices = @transform_4, window_bounds = array<i64: 1, 64>}, {pipeline_mode = #tpu.pipeline_mode<synchronous>, transform_indices = @transform_5, window_bounds = array<i64: 1, 1, 64>}, {pipeline_mode = #tpu.pipeline_mode<synchronous>, transform_indices = @transform_6, window_bounds = array<i64: 1, 16>}, {transform_indices = @transform_7, window_bounds = array<i64: 1, 16, 32, 16>}]} {
    %c16_i32 = arith.constant 16 : i32
    %0 = arith.muli %arg1, %c16_i32 : i32
    %1 = tpu.assume_multiple %0, 8 : i32
    %c0 = arith.constant 0 : index
    %2 = arith.index_cast %1 : i32 to index
    %c0_0 = arith.constant 0 : index
    %c0_1 = arith.constant 0 : index
    %3 = vector.load %arg2[%c0, %2, %c0_0, %c0_1] : memref<1x34x40x16xbf16, #tpu.memory_space<vmem>>, vector<1x18x40x16xbf16>
    %4 = vector.shape_cast %3 : vector<1x18x40x16xbf16> to vector<18x40x16xbf16>
    %5 = vector.shape_cast %4 : vector<18x40x16xbf16> to vector<720x16xbf16>
    %c0_2 = arith.constant 0 : index
    %c0_3 = arith.constant 0 : index
    %6 = vector.load %arg3[%c0_2, %c0_3] : memref<16x64xbf16, #tpu.memory_space<vmem>>, vector<16x64xbf16>
    %cst = arith.constant dense<0.000000e+00> : vector<720x64xf32>
    %7 = tpu.matmul %5, %6, %cst {dimension_numbers = #tpu.dot_dimension_numbers<[1], [0], [0], [1], [0, 0, 1, 1], [], []>} : vector<720x16xbf16>, vector<16x64xbf16>, vector<720x64xf32> -> vector<720x64xf32>
    %c0_4 = arith.constant 0 : index
    %c0_5 = arith.constant 0 : index
    %8 = vector.load %arg6[%c0_4, %c0_5] : memref<1x64xf32, #tpu.memory_space<vmem>>, vector<1x64xf32>
    %9 = vector.broadcast %8 : vector<1x64xf32> to vector<720x64xf32>
    %10 = arith.addf %7, %9 : vector<720x64xf32>
    %11 = vector.shape_cast %10 : vector<720x64xf32> to vector<18x40x64xf32>
    %12 = tpu.iota {dimensions = array<i32: 0>} : vector<18x40x64xi32>
    %13 = vector.broadcast %1 : i32 to vector<18x40x64xi32>
    %14 = arith.addi %12, %13 : vector<18x40x64xi32>
    %15 = tpu.iota {dimensions = array<i32: 1>} : vector<18x40x64xi32>
    %c1_i32 = arith.constant 1 : i32
    %16 = vector.broadcast %c1_i32 : i32 to vector<18x40x64xi32>
    %17 = arith.cmpi sge, %14, %16 : vector<18x40x64xi32>
    %c32_i32 = arith.constant 32 : i32
    %18 = vector.broadcast %c32_i32 : i32 to vector<18x40x64xi32>
    %19 = arith.cmpi sle, %14, %18 : vector<18x40x64xi32>
    %20 = arith.andi %17, %19 : vector<18x40x64xi1>
    %c1_i32_6 = arith.constant 1 : i32
    %21 = vector.broadcast %c1_i32_6 : i32 to vector<18x40x64xi32>
    %22 = arith.cmpi sge, %15, %21 : vector<18x40x64xi32>
    %23 = arith.andi %20, %22 : vector<18x40x64xi1>
    %c32_i32_7 = arith.constant 32 : i32
    %24 = vector.broadcast %c32_i32_7 : i32 to vector<18x40x64xi32>
    %25 = arith.cmpi sle, %15, %24 : vector<18x40x64xi32>
    %26 = arith.andi %23, %25 : vector<18x40x64xi1>
    %cst_8 = arith.constant 0.000000e+00 : f32
    %27 = vector.broadcast %cst_8 : f32 to vector<18x40x64xf32>
    %28 = arith.select %26, %11, %27 : vector<18x40x64xi1>, vector<18x40x64xf32>
    %c0_9 = arith.constant 0 : index
    %c0_10 = arith.constant 0 : index
    %c0_11 = arith.constant 0 : index
    %29 = vector.load %arg4[%c0_9, %c0_10, %c0_11] : memref<3x3x64xf32, #tpu.memory_space<vmem>>, vector<3x3x64xf32>
    %30 = vector.extract_strided_slice %28 {offsets = [0, 0, 0], sizes = [18, 32, 64], strides = [1, 1, 1]} : vector<18x40x64xf32> to vector<18x32x64xf32>
    %31 = vector.extract_strided_slice %28 {offsets = [0, 1, 0], sizes = [18, 32, 64], strides = [1, 1, 1]} : vector<18x40x64xf32> to vector<18x32x64xf32>
    %32 = vector.extract_strided_slice %28 {offsets = [0, 2, 0], sizes = [18, 32, 64], strides = [1, 1, 1]} : vector<18x40x64xf32> to vector<18x32x64xf32>
    %cst_12 = arith.constant 0.000000e+00 : f32
    %33 = vector.broadcast %cst_12 : f32 to vector<16x32x64xf32>
    %34 = vector.extract_strided_slice %30 {offsets = [0, 0, 0], sizes = [16, 32, 64], strides = [1, 1, 1]} : vector<18x32x64xf32> to vector<16x32x64xf32>
    %35 = vector.extract_strided_slice %29 {offsets = [0, 0, 0], sizes = [1, 1, 64], strides = [1, 1, 1]} : vector<3x3x64xf32> to vector<1x1x64xf32>
    %36 = vector.shape_cast %35 : vector<1x1x64xf32> to vector<64xf32>
    %37 = vector.shape_cast %36 : vector<64xf32> to vector<1x1x64xf32>
    %38 = vector.broadcast %37 : vector<1x1x64xf32> to vector<16x32x64xf32>
    %39 = arith.mulf %34, %38 : vector<16x32x64xf32>
    %40 = arith.addf %33, %39 : vector<16x32x64xf32>
    %41 = vector.extract_strided_slice %31 {offsets = [0, 0, 0], sizes = [16, 32, 64], strides = [1, 1, 1]} : vector<18x32x64xf32> to vector<16x32x64xf32>
    %42 = vector.extract_strided_slice %29 {offsets = [0, 1, 0], sizes = [1, 1, 64], strides = [1, 1, 1]} : vector<3x3x64xf32> to vector<1x1x64xf32>
    %43 = vector.shape_cast %42 : vector<1x1x64xf32> to vector<64xf32>
    %44 = vector.shape_cast %43 : vector<64xf32> to vector<1x1x64xf32>
    %45 = vector.broadcast %44 : vector<1x1x64xf32> to vector<16x32x64xf32>
    %46 = arith.mulf %41, %45 : vector<16x32x64xf32>
    %47 = arith.addf %40, %46 : vector<16x32x64xf32>
    %48 = vector.extract_strided_slice %32 {offsets = [0, 0, 0], sizes = [16, 32, 64], strides = [1, 1, 1]} : vector<18x32x64xf32> to vector<16x32x64xf32>
    %49 = vector.extract_strided_slice %29 {offsets = [0, 2, 0], sizes = [1, 1, 64], strides = [1, 1, 1]} : vector<3x3x64xf32> to vector<1x1x64xf32>
    %50 = vector.shape_cast %49 : vector<1x1x64xf32> to vector<64xf32>
    %51 = vector.shape_cast %50 : vector<64xf32> to vector<1x1x64xf32>
    %52 = vector.broadcast %51 : vector<1x1x64xf32> to vector<16x32x64xf32>
    %53 = arith.mulf %48, %52 : vector<16x32x64xf32>
    %54 = arith.addf %47, %53 : vector<16x32x64xf32>
    %55 = vector.extract_strided_slice %30 {offsets = [1, 0, 0], sizes = [16, 32, 64], strides = [1, 1, 1]} : vector<18x32x64xf32> to vector<16x32x64xf32>
    %56 = vector.extract_strided_slice %29 {offsets = [1, 0, 0], sizes = [1, 1, 64], strides = [1, 1, 1]} : vector<3x3x64xf32> to vector<1x1x64xf32>
    %57 = vector.shape_cast %56 : vector<1x1x64xf32> to vector<64xf32>
    %58 = vector.shape_cast %57 : vector<64xf32> to vector<1x1x64xf32>
    %59 = vector.broadcast %58 : vector<1x1x64xf32> to vector<16x32x64xf32>
    %60 = arith.mulf %55, %59 : vector<16x32x64xf32>
    %61 = arith.addf %54, %60 : vector<16x32x64xf32>
    %62 = vector.extract_strided_slice %31 {offsets = [1, 0, 0], sizes = [16, 32, 64], strides = [1, 1, 1]} : vector<18x32x64xf32> to vector<16x32x64xf32>
    %63 = vector.extract_strided_slice %29 {offsets = [1, 1, 0], sizes = [1, 1, 64], strides = [1, 1, 1]} : vector<3x3x64xf32> to vector<1x1x64xf32>
    %64 = vector.shape_cast %63 : vector<1x1x64xf32> to vector<64xf32>
    %65 = vector.shape_cast %64 : vector<64xf32> to vector<1x1x64xf32>
    %66 = vector.broadcast %65 : vector<1x1x64xf32> to vector<16x32x64xf32>
    %67 = arith.mulf %62, %66 : vector<16x32x64xf32>
    %68 = arith.addf %61, %67 : vector<16x32x64xf32>
    %69 = vector.extract_strided_slice %32 {offsets = [1, 0, 0], sizes = [16, 32, 64], strides = [1, 1, 1]} : vector<18x32x64xf32> to vector<16x32x64xf32>
    %70 = vector.extract_strided_slice %29 {offsets = [1, 2, 0], sizes = [1, 1, 64], strides = [1, 1, 1]} : vector<3x3x64xf32> to vector<1x1x64xf32>
    %71 = vector.shape_cast %70 : vector<1x1x64xf32> to vector<64xf32>
    %72 = vector.shape_cast %71 : vector<64xf32> to vector<1x1x64xf32>
    %73 = vector.broadcast %72 : vector<1x1x64xf32> to vector<16x32x64xf32>
    %74 = arith.mulf %69, %73 : vector<16x32x64xf32>
    %75 = arith.addf %68, %74 : vector<16x32x64xf32>
    %76 = vector.extract_strided_slice %30 {offsets = [2, 0, 0], sizes = [16, 32, 64], strides = [1, 1, 1]} : vector<18x32x64xf32> to vector<16x32x64xf32>
    %77 = vector.extract_strided_slice %29 {offsets = [2, 0, 0], sizes = [1, 1, 64], strides = [1, 1, 1]} : vector<3x3x64xf32> to vector<1x1x64xf32>
    %78 = vector.shape_cast %77 : vector<1x1x64xf32> to vector<64xf32>
    %79 = vector.shape_cast %78 : vector<64xf32> to vector<1x1x64xf32>
    %80 = vector.broadcast %79 : vector<1x1x64xf32> to vector<16x32x64xf32>
    %81 = arith.mulf %76, %80 : vector<16x32x64xf32>
    %82 = arith.addf %75, %81 : vector<16x32x64xf32>
    %83 = vector.extract_strided_slice %31 {offsets = [2, 0, 0], sizes = [16, 32, 64], strides = [1, 1, 1]} : vector<18x32x64xf32> to vector<16x32x64xf32>
    %84 = vector.extract_strided_slice %29 {offsets = [2, 1, 0], sizes = [1, 1, 64], strides = [1, 1, 1]} : vector<3x3x64xf32> to vector<1x1x64xf32>
    %85 = vector.shape_cast %84 : vector<1x1x64xf32> to vector<64xf32>
    %86 = vector.shape_cast %85 : vector<64xf32> to vector<1x1x64xf32>
    %87 = vector.broadcast %86 : vector<1x1x64xf32> to vector<16x32x64xf32>
    %88 = arith.mulf %83, %87 : vector<16x32x64xf32>
    %89 = arith.addf %82, %88 : vector<16x32x64xf32>
    %90 = vector.extract_strided_slice %32 {offsets = [2, 0, 0], sizes = [16, 32, 64], strides = [1, 1, 1]} : vector<18x32x64xf32> to vector<16x32x64xf32>
    %91 = vector.extract_strided_slice %29 {offsets = [2, 2, 0], sizes = [1, 1, 64], strides = [1, 1, 1]} : vector<3x3x64xf32> to vector<1x1x64xf32>
    %92 = vector.shape_cast %91 : vector<1x1x64xf32> to vector<64xf32>
    %93 = vector.shape_cast %92 : vector<64xf32> to vector<1x1x64xf32>
    %94 = vector.broadcast %93 : vector<1x1x64xf32> to vector<16x32x64xf32>
    %95 = arith.mulf %90, %94 : vector<16x32x64xf32>
    %96 = arith.addf %89, %95 : vector<16x32x64xf32>
    %c0_13 = arith.constant 0 : index
    %c0_14 = arith.constant 0 : index
    %c0_15 = arith.constant 0 : index
    %97 = vector.load %arg7[%c0_13, %c0_14, %c0_15] : memref<1x1x64xf32, #tpu.memory_space<vmem>>, vector<1x1x64xf32>
    %98 = vector.broadcast %97 : vector<1x1x64xf32> to vector<16x32x64xf32>
    %99 = arith.addf %96, %98 : vector<16x32x64xf32>
    %100 = vector.extract_strided_slice %99 {offsets = [0, 0, 0], sizes = [16, 32, 32], strides = [1, 1, 1]} : vector<16x32x64xf32> to vector<16x32x32xf32>
    %101 = vector.extract_strided_slice %99 {offsets = [0, 0, 32], sizes = [16, 32, 32], strides = [1, 1, 1]} : vector<16x32x64xf32> to vector<16x32x32xf32>
    %cst_16 = arith.constant 0.000000e+00 : f32
    %102 = vector.broadcast %cst_16 : f32 to vector<16x32x32xf32>
    %103 = arith.subf %102, %100 : vector<16x32x32xf32>
    %104 = math.exp %103 : vector<16x32x32xf32>
    %cst_17 = arith.constant 1.000000e+00 : f32
    %105 = vector.broadcast %cst_17 : f32 to vector<16x32x32xf32>
    %106 = arith.addf %105, %104 : vector<16x32x32xf32>
    %107 = tpu.reciprocal %106 {approx = true} : vector<16x32x32xf32> -> vector<16x32x32xf32>
    %108 = arith.mulf %100, %107 : vector<16x32x32xf32>
    %109 = arith.mulf %108, %101 : vector<16x32x32xf32>
    %110 = vector.shape_cast %109 : vector<16x32x32xf32> to vector<512x32xf32>
    %111 = arith.truncf %110 : vector<512x32xf32> to vector<512x32xbf16>
    %c0_18 = arith.constant 0 : index
    %c0_19 = arith.constant 0 : index
    %112 = vector.load %arg5[%c0_18, %c0_19] : memref<32x16xbf16, #tpu.memory_space<vmem>>, vector<32x16xbf16>
    %cst_20 = arith.constant dense<0.000000e+00> : vector<512x16xf32>
    %113 = tpu.matmul %111, %112, %cst_20 {dimension_numbers = #tpu.dot_dimension_numbers<[1], [0], [0], [1], [0, 0, 1, 1], [], []>} : vector<512x32xbf16>, vector<32x16xbf16>, vector<512x16xf32> -> vector<512x16xf32>
    %c0_21 = arith.constant 0 : index
    %c0_22 = arith.constant 0 : index
    %114 = vector.load %arg8[%c0_21, %c0_22] : memref<1x16xf32, #tpu.memory_space<vmem>>, vector<1x16xf32>
    %115 = vector.broadcast %114 : vector<1x16xf32> to vector<512x16xf32>
    %116 = arith.addf %113, %115 : vector<512x16xf32>
    %117 = vector.shape_cast %116 : vector<512x16xf32> to vector<16x32x16xf32>
    %c0_23 = arith.constant 0 : index
    %c0_24 = arith.constant 0 : index
    %c0_25 = arith.constant 0 : index
    %c0_26 = arith.constant 0 : index
    %118 = vector.load %arg9[%c0_23, %c0_24, %c0_25, %c0_26] : memref<1x16x32x16xf32, #tpu.memory_space<vmem>>, vector<1x16x32x16xf32>
    %119 = vector.shape_cast %118 : vector<1x16x32x16xf32> to vector<16x32x16xf32>
    %120 = vector.shape_cast %117 : vector<16x32x16xf32> to vector<1x16x32x16xf32>
    tpu.vector_store %arg9[%c0_23, %c0_24, %c0_25, %c0_26], %120 {strides = array<i32>} : memref<1x16x32x16xf32, #tpu.memory_space<vmem>>, vector<1x16x32x16xf32>,
    return
  }
  func.func @transform_0(%arg0: i32, %arg1: i32) -> (i32, i32, i32, i32) {
    %c0_i32 = arith.constant 0 : i32
    %c0_i32_0 = arith.constant 0 : i32
    %c0_i32_1 = arith.constant 0 : i32
    %c0_i32_2 = arith.constant 0 : i32
    return %arg0, %c0_i32, %c0_i32_0, %c0_i32_1 : i32, i32, i32, i32
  }
  func.func @transform_1(%arg0: i32, %arg1: i32) -> (i32, i32) {
    %c0_i32 = arith.constant 0 : i32
    %c0_i32_0 = arith.constant 0 : i32
    %c0_i32_1 = arith.constant 0 : i32
    return %c0_i32, %c0_i32_0 : i32, i32
  }
  func.func @transform_2(%arg0: i32, %arg1: i32) -> (i32, i32, i32) {
    %c0_i32 = arith.constant 0 : i32
    %c0_i32_0 = arith.constant 0 : i32
    %c0_i32_1 = arith.constant 0 : i32
    %c0_i32_2 = arith.constant 0 : i32
    return %c0_i32, %c0_i32_0, %c0_i32_1 : i32, i32, i32
  }
  func.func @transform_3(%arg0: i32, %arg1: i32) -> (i32, i32) {
    %c0_i32 = arith.constant 0 : i32
    %c0_i32_0 = arith.constant 0 : i32
    %c0_i32_1 = arith.constant 0 : i32
    return %c0_i32, %c0_i32_0 : i32, i32
  }
  func.func @transform_4(%arg0: i32, %arg1: i32) -> (i32, i32) {
    %c0_i32 = arith.constant 0 : i32
    %c0_i32_0 = arith.constant 0 : i32
    %c0_i32_1 = arith.constant 0 : i32
    return %c0_i32, %c0_i32_0 : i32, i32
  }
  func.func @transform_5(%arg0: i32, %arg1: i32) -> (i32, i32, i32) {
    %c0_i32 = arith.constant 0 : i32
    %c0_i32_0 = arith.constant 0 : i32
    %c0_i32_1 = arith.constant 0 : i32
    %c0_i32_2 = arith.constant 0 : i32
    return %c0_i32, %c0_i32_0, %c0_i32_1 : i32, i32, i32
  }
  func.func @transform_6(%arg0: i32, %arg1: i32) -> (i32, i32) {
    %c0_i32 = arith.constant 0 : i32
    %c0_i32_0 = arith.constant 0 : i32
    %c0_i32_1 = arith.constant 0 : i32
    return %c0_i32, %c0_i32_0 : i32, i32
  }
  func.func @transform_7(%arg0: i32, %arg1: i32) -> (i32, i32, i32, i32) {
    %c0_i32 = arith.constant 0 : i32
    %c0_i32_0 = arith.constant 0 : i32
    %c0_i32_1 = arith.constant 0 : i32
    return %arg0, %arg1, %c0_i32, %c0_i32_0 : i32, i32, i32, i32
  }
}

</mosaic_0001>

<llo_original>
// kernel: gdfn_forward.1
$region0: #{gdfn_forward.1}
  #allocation0 [shape = 'u32[]', space=smem, size = 0x4, offset = 0x4, fixed_abs, tag = 'smem constant byte address 0x4 - core index']
  #allocation1 [shape = 'u32[144,128]{1,0:T(1,128)}', space=vmem, size = 0x12000, scoped, tag = 'internal scratch']
  %s0 = inlined_call_operand.vmem [shape: bf16[2,34,40,16], index: 0, kind: input, shape index: {}]
  %s1 = inlined_call_operand.vmem [shape: bf16[16,64], index: 1, kind: input, shape index: {}]
  %s2 = inlined_call_operand.vmem [shape: f32[3,3,64], index: 2, kind: input, shape index: {}]
  %s3 = inlined_call_operand.vmem [shape: bf16[32,16], index: 3, kind: input, shape index: {}]
  %s4 = inlined_call_operand.vmem [shape: f32[1,64], index: 4, kind: input, shape index: {}]
  %s5 = inlined_call_operand.vmem [shape: f32[1,1,64], index: 5, kind: input, shape index: {}]
  %s6 = inlined_call_operand.vmem [shape: f32[1,16], index: 6, kind: input, shape index: {}]
  %s7 = inlined_call_operand.vmem [shape: f32[2,32,32,16], index: 7, kind: output, shape index: {}]
  %s8 = sld [smem:[#allocation0]]
  $region61: #{gdfn_forward.1} parent=0
    _
  %s10 = ssub.s32 1, %s8
  %s11 = scalar_select 0, %s10, %s8
  loop: start=0, step=1, limit=6
  $region2: #{gdfn_forward.1} parent=0 // loop_pre_header
    _
  $region3: #{gdfn_forward.1} parent=0 // loop_header
    %s13 = sphi 0, %s17
    %p14 = scmp.ge.s32.totalorder %s13, 6
    %s20 = sphi 0, %s32
    %s21 = sphi 0, %s28
    %s22 = sphi 0, %s20
    %s23 = sphi 0, %s21
    %s24 = sphi 0, %s22
    %s25 = sphi 0, %s23
    %s35 = sphi 0, %s37
    %s38 = sphi 0, %s35
    %s39 = sphi 0, %s38
    %s55 = sphi 0, %s39
    %s59 = sphi 0, %s59
    %s61 = sphi 0, %s59
    %s62 = sphi 0, %s61
    %s76 = sphi 0, %s62
    %s80 = sphi 0, %s80
    %s82 = sphi 0, %s80
    %s83 = sphi 0, %s82
    %s97 = sphi 0, %s83
    %s101 = sphi 0, %s101
    %s103 = sphi 0, %s101
    %s104 = sphi 0, %s103
    %s118 = sphi 0, %s104
    %s122 = sphi 0, %s122
    %s124 = sphi 0, %s122
    %s125 = sphi 0, %s124
    %s139 = sphi 0, %s125
    %s143 = sphi 0, %s143
    %s145 = sphi 0, %s143
    %s146 = sphi 0, %s145
    %s160 = sphi 0, %s146
    %s164 = sphi 0, %s164
    %s166 = sphi 0, %s164
    %s167 = sphi 0, %s166
    %s181 = sphi 0, %s167
    %s189 = sphi 0, %s191
    %s192 = sphi 0, %s189
    %s193 = sphi 0, %s192
    %s209 = sphi 0, %s193
  $region4: #{gdfn_forward.1} parent=0 // loop_header_branch
    %16 = sbr.rel (%p14) target = $region8
  $region5: #{gdfn_forward.1} parent=0 // loop_body
    %s18 = ssub.s32 %s13, 1
    %s19 = ssub.s32 %s13, 2
    %s26 = sadd.s32 1, %s21
    %p27 = scmp.ge.s32.totalorder %s26, 2
    %s28 = scalar_select %p27, 0, %s26
    %s29 = sadd.s32 1, %s20
    %s30 = scalar_select %p27, %s29, %s20
    %p31 = scmp.ge.s32.totalorder %s30, 2
    %s32 = scalar_select %p31, 0, %s30
    %s33 = ssub.s32 %s20, %s32
    %p34 = scmp.eq.s32.totalorder %s33, 0
    %s36 = sadd.s32 %s35, 1
    %s37 = scalar_select %p34, %s35, %s36
    %p40 = pneg %p34
    %p41 = scmp.eq.s32.totalorder %s13, 3
    %p42 = por %p40, %p41
    %p43 = scmp.ne.s32.totalorder %s35, %s38
    %p44 = scmp.eq.s32.totalorder %s13, 0
    %p45 = por %p43, %p44
    %p46 = scmp.ne.s32.totalorder %s35, %s38
    %p47 = scmp.eq.s32.totalorder %s18, 3
    %p48 = por %p46, %p47
    %p49 = scmp.ne.s32.totalorder %s38, %s39
    %p50 = scmp.eq.s32.totalorder %s18, 0
    %p51 = por %p49, %p50
    %p52 = scmp.ne.s32.totalorder %s38, %s39
    %p53 = scmp.eq.s32.totalorder %s19, 3
    %p54 = por %p52, %p53
    %p56 = scmp.ne.s32.totalorder %s39, %s55
    %p57 = scmp.eq.s32.totalorder %s19, 0
    %p58 = por %p56, %p57
    %s60 = sadd.s32 %s59, 1
    %p63 = scmp.eq.s32.totalorder %s13, 3
    %p64 = scmp.ne.s32.totalorder %s59, %s61
    %p65 = scmp.eq.s32.totalorder %s13, 0
    %p66 = por %p64, %p65
    %p67 = scmp.ne.s32.totalorder %s59, %s61
    %p68 = scmp.eq.s32.totalorder %s18, 3
    %p69 = por %p67, %p68
    %p70 = scmp.ne.s32.totalorder %s61, %s62
    %p71 = scmp.eq.s32.totalorder %s18, 0
    %p72 = por %p70, %p71
    %p73 = scmp.ne.s32.totalorder %s61, %s62
    %p74 = scmp.eq.s32.totalorder %s19, 3
    %p75 = por %p73, %p74
    %p77 = scmp.ne.s32.totalorder %s62, %s76
    %p78 = scmp.eq.s32.totalorder %s19, 0
    %p79 = por %p77, %p78
    %s81 = sadd.s32 %s80, 1
    %p84 = scmp.eq.s32.totalorder %s13, 3
    %p85 = scmp.ne.s32.totalorder %s80, %s82
    %p86 = scmp.eq.s32.totalorder %s13, 0
    %p87 = por %p85, %p86
    %p88 = scmp.ne.s32.totalorder %s80, %s82
    %p89 = scmp.eq.s32.totalorder %s18, 3
    %p90 = por %p88, %p89
    %p91 = scmp.ne.s32.totalorder %s82, %s83
    %p92 = scmp.eq.s32.totalorder %s18, 0
    %p93 = por %p91, %p92
    %p94 = scmp.ne.s32.totalorder %s82, %s83
    %p95 = scmp.eq.s32.totalorder %s19, 3
    %p96 = por %p94, %p95
    %p98 = scmp.ne.s32.totalorder %s83, %s97
    %p99 = scmp.eq.s32.totalorder %s19, 0
    %p100 = por %p98, %p99
    %s102 = sadd.s32 %s101, 1
    %p105 = scmp.eq.s32.totalorder %s13, 3
    %p106 = scmp.ne.s32.totalorder %s101, %s103
    %p107 = scmp.eq.s32.totalorder %s13, 0
    %p108 = por %p106, %p107
    %p109 = scmp.ne.s32.totalorder %s101, %s103
    %p110 = scmp.eq.s32.totalorder %s18, 3
    %p111 = por %p109, %p110
    %p112 = scmp.ne.s32.totalorder %s103, %s104
    %p113 = scmp.eq.s32.totalorder %s18, 0
    %p114 = por %p112, %p113
    %p115 = scmp.ne.s32.totalorder %s103, %s104
    %p116 = scmp.eq.s32.totalorder %s19, 3
    %p117 = por %p115, %p116
    %p119 = scmp.ne.s32.totalorder %s104, %s118
    %p120 = scmp.eq.s32.totalorder %s19, 0
    %p121 = por %p119, %p120
    %s123 = sadd.s32 %s122, 1
    %p126 = scmp.eq.s32.totalorder %s13, 3
    %p127 = scmp.ne.s32.totalorder %s122, %s124
    %p128 = scmp.eq.s32.totalorder %s13, 0
    %p129 = por %p127, %p128
    %p130 = scmp.ne.s32.totalorder %s122, %s124
    %p131 = scmp.eq.s32.totalorder %s18, 3
    %p132 = por %p130, %p131
    %p133 = scmp.ne.s32.totalorder %s124, %s125
    %p134 = scmp.eq.s32.totalorder %s18, 0
    %p135 = por %p133, %p134
    %p136 = scmp.ne.s32.totalorder %s124, %s125
    %p137 = scmp.eq.s32.totalorder %s19, 3
    %p138 = por %p136, %p137
    %p140 = scmp.ne.s32.totalorder %s125, %s139
    %p141 = scmp.eq.s32.totalorder %s19, 0
    %p142 = por %p140, %p141
    %s144 = sadd.s32 %s143, 1
    %p147 = scmp.eq.s32.totalorder %s13, 3
    %p148 = scmp.ne.s32.totalorder %s143, %s145
    %p149 = scmp.eq.s32.totalorder %s13, 0
    %p150 = por %p148, %p149
    %p151 = scmp.ne.s32.totalorder %s143, %s145
    %p152 = scmp.eq.s32.totalorder %s18, 3
    %p153 = por %p151, %p152
    %p154 = scmp.ne.s32.totalorder %s145, %s146
    %p155 = scmp.eq.s32.totalorder %s18, 0
    %p156 = por %p154, %p155
    %p157 = scmp.ne.s32.totalorder %s145, %s146
    %p158 = scmp.eq.s32.totalorder %s19, 3
    %p159 = por %p157, %p158
    %p161 = scmp.ne.s32.totalorder %s146, %s160
    %p162 = scmp.eq.s32.totalorder %s19, 0
    %p163 = por %p161, %p162
    %s165 = sadd.s32 %s164, 1
    %p168 = scmp.eq.s32.totalorder %s13, 3
    %p169 = scmp.ne.s32.totalorder %s164, %s166
    %p170 = scmp.eq.s32.totalorder %s13, 0
    %p171 = por %p169, %p170
    %p172 = scmp.ne.s32.totalorder %s164, %s166
    %p173 = scmp.eq.s32.totalorder %s18, 3
    %p174 = por %p172, %p173
    %p175 = scmp.ne.s32.totalorder %s166, %s167
    %p176 = scmp.eq.s32.totalorder %s18, 0
    %p177 = por %p175, %p176
    %p178 = scmp.ne.s32.totalorder %s166, %s167
    %p179 = scmp.eq.s32.totalorder %s19, 3
    %p180 = por %p178, %p179
    %p182 = scmp.ne.s32.totalorder %s167, %s181
    %p183 = scmp.eq.s32.totalorder %s19, 0
    %p184 = por %p182, %p183
    %s185 = ssub.s32 %s20, %s32
    %s186 = ssub.s32 %s21, %s28
    %s187 = sor.u32 %s185, %s186
    %p188 = scmp.eq.s32.totalorder %s187, 0
    %s190 = sadd.s32 %s189, 1
    %s191 = scalar_select %p188, %s189, %s190
    %p194 = pneg %p188
    %p195 = scmp.eq.s32.totalorder %s13, 3
    %p196 = por %p194, %p195
    %p197 = scmp.ne.s32.totalorder %s189, %s192
    %p198 = scmp.eq.s32.totalorder %s13, 0
    %p199 = por %p197, %p198
    %p200 = scmp.ne.s32.totalorder %s189, %s192
    %p201 = scmp.eq.s32.totalorder %s18, 3
    %p202 = por %p200, %p201
    %p203 = scmp.ne.s32.totalorder %s192, %s193
    %p204 = scmp.eq.s32.totalorder %s18, 0
    %p205 = por %p203, %p204
    %p206 = scmp.ne.s32.totalorder %s192, %s193
    %p207 = scmp.eq.s32.totalorder %s19, 3
    %p208 = por %p206, %p207
    %p210 = scmp.ne.s32.totalorder %s193, %s209
    %p211 = scmp.eq.s32.totalorder %s19, 0
    %p212 = por %p210, %p211
    %p213 = scmp.le.s32.totalorder 1, %s13
    %p214 = scmp.lt.s32.totalorder %s13, 5
    %p215 = pnand %p213, %p214
    %p216 = pneg %p215
    // Predicated region
    $region9: #{gdfn_forward.1} parent=5 // pred_check
      _
    $region10: #{gdfn_forward.1} parent=5 // pred_check_branch
      %218 = sbr.rel (%p215) target = $region12
    $region11: #{gdfn_forward.1} parent=5 // pred_region
      %s219 = ssub.s32 %s13, 1
      // Predicated region
      $region13: #{gdfn_forward.1} parent=11 // pred_check
        %p220 = pneg %p72
      $region14: #{gdfn_forward.1} parent=11 // pred_check_branch
        %222 = sbr.rel (%p220) target = $region16
      $region15: #{gdfn_forward.1} parent=11 // pred_region
        _
      $region16: #{gdfn_forward.1} parent=11 // pred_fallthru
        _
      // Predicated region
      $region17: #{gdfn_forward.1} parent=11 // pred_check
        %p223 = pneg %p93
      $region18: #{gdfn_forward.1} parent=11 // pred_check_branch
        %225 = sbr.rel (%p223) target = $region20
      $region19: #{gdfn_forward.1} parent=11 // pred_region
        _
      $region20: #{gdfn_forward.1} parent=11 // pred_fallthru
        _
      // Predicated region
      $region21: #{gdfn_forward.1} parent=11 // pred_check
        %p226 = pneg %p114
      $region22: #{gdfn_forward.1} parent=11 // pred_check_branch
        %228 = sbr.rel (%p226) target = $region24
      $region23: #{gdfn_forward.1} parent=11 // pred_region
        _
      $region24: #{gdfn_forward.1} parent=11 // pred_fallthru
        _
      // Predicated region
      $region25: #{gdfn_forward.1} parent=11 // pred_check
        %p229 = pneg %p135
      $region26: #{gdfn_forward.1} parent=11 // pred_check_branch
        %231 = sbr.rel (%p229) target = $region28
      $region27: #{gdfn_forward.1} parent=11 // pred_region
        _
      $region28: #{gdfn_forward.1} parent=11 // pred_fallthru
        _
      // Predicated region
      $region29: #{gdfn_forward.1} parent=11 // pred_check
        %p232 = pneg %p156
      $region30: #{gdfn_forward.1} parent=11 // pred_check_branch
        %234 = sbr.rel (%p232) target = $region32
      $region31: #{gdfn_forward.1} parent=11 // pred_region
        _
      $region32: #{gdfn_forward.1} parent=11 // pred_fallthru
        _
      // Predicated region
      $region33: #{gdfn_forward.1} parent=11 // pred_check
        %p235 = pneg %p177
      $region34: #{gdfn_forward.1} parent=11 // pred_check_branch
        %237 = sbr.rel (%p235) target = $region36
      $region35: #{gdfn_forward.1} parent=11 // pred_region
        _
      $region36: #{gdfn_forward.1} parent=11 // pred_fallthru
        _
    $region12: #{gdfn_forward.1} parent=5 // pred_fallthru
      _
    %p238 = scmp.lt.s32.totalorder %s13, 4
    // Predicated region
    $region37: #{gdfn_forward.1} parent=5 // pred_check
      %p239 = pneg %p238
    $region38: #{gdfn_forward.1} parent=5 // pred_check_branch
      %241 = sbr.rel (%p239) target = $region40
    $region39: #{gdfn_forward.1} parent=5 // pred_region
      // Predicated region
      $region41: #{gdfn_forward.1} parent=39 // pred_check
        %p242 = pneg %p45
      $region42: #{gdfn_forward.1} parent=39 // pred_check_branch
        %244 = sbr.rel (%p242) target = $region44
      $region43: #{gdfn_forward.1} parent=39 // pred_region
        %p245 = scmp.lt.s32.totalorder %s20, 1
        %s246 = scalar_select %p245, %s20, 1
        %s247 = smul.addr %s246, 170
        %s248 = smul.addr %s247, 4
        %s249 = scalar_lea.vmem %s0, %s248
      $region44: #{gdfn_forward.1} parent=39 // pred_fallthru
        _
    $region40: #{gdfn_forward.1} parent=5 // pred_fallthru
      _
    %p250 = scmp.le.s32.totalorder 1, %s13
    %p251 = scmp.lt.s32.totalorder %s13, 5
    %p252 = pnand %p250, %p251
    %p253 = pneg %p252
    // Predicated region
    $region45: #{gdfn_forward.1} parent=5 // pred_check
      _
    $region46: #{gdfn_forward.1} parent=5 // pred_check_branch
      %255 = sbr.rel (%p252) target = $region48
    $region47: #{gdfn_forward.1} parent=5 // pred_region
      %s256 = ssub.s32 %s13, 1
      %p257 = scmp.lt.s32.totalorder %s22, 1
      %s258 = scalar_select %p257, %s22, 1
      %s259 = smul.addr %s258, 170
      %s260 = smul.addr %s259, 4
      %s261 = scalar_lea.vmem %s0, %s260
      %p262 = pneg %p51
      %p263 = pneg %p48
      %p264 = pneg %p72
      %p265 = pneg %p69
      %p266 = pneg %p93
      %p267 = pneg %p90
      %p268 = pneg %p114
      %p269 = pneg %p111
      %p270 = pneg %p135
      %p271 = pneg %p132
      %p272 = pneg %p156
      %p273 = pneg %p153
      %p274 = pneg %p177
      %p275 = pneg %p174
      %p276 = pneg %p205
      %p277 = pneg %p202
      %s278 = smul.u32 16, %s23
      %p279 = scmp.lt.s32.totalorder %s22, 1
      %s280 = scalar_select %p279, %s22, 1
      %p281 = scmp.lt.s32.totalorder %s278, 31
      %s282 = scalar_select %p281, %s278, 31
      %s283 = smul.addr %s282, 4
      %s284 = smul.addr %s280, 128
      %s285 = sadd.s32 %s283, %s284
      %s286 = smul.addr %s285, 8
      %s287 = scalar_lea.vmem %s7, %s286
      %p288 = scmp.lt.s32.totalorder %s22, 1
      %s289 = scalar_select %p288, %s22, 1
      %s290 = smul.addr %s289, 170
      %s291 = smul.addr %s290, 4
      %s292 = scalar_lea.vmem %s0, %s291
      %s293 = smul.u32 16, %s23
      %p294 = scmp.lt.s32.totalorder %s22, 1
      %s295 = scalar_select %p294, %s22, 1
      %p296 = scmp.lt.s32.totalorder %s293, 31
      %s297 = scalar_select %p296, %s293, 31
      %s298 = smul.addr %s297, 4
      %s299 = smul.addr %s295, 128
      %s300 = sadd.s32 %s298, %s299
      %s301 = smul.addr %s300, 8
      %s302 = scalar_lea.vmem %s7, %s301
      %s303 = smul.u32 16, %s23
      %s305 = smul.u32 %s23, 16
      %s306 = smul.u32 %s305, 5
      %s307 = smul.addr %s306, 4
      %s308 = scalar_lea.vmem %s292, %s307
      %v309 = vld [vmem:[%s308] sm:$0xf]
      %v310 = vld [vmem:[%s308 + $0x4] sm:$0xf]
      %v311 = vld [vmem:[%s308 + $0x8] sm:$0xf]
      %v312 = vld [vmem:[%s308 + $0xc] sm:$0xf]
      %v313 = vld [vmem:[%s308 + $0x10] sm:$0xf]
      %v314 = vld [vmem:[%s308 + $0x14] sm:$0xf]
      %v315 = vld [vmem:[%s308 + $0x18] sm:$0xf]
      %v316 = vld [vmem:[%s308 + $0x1c] sm:$0xf]
      %v317 = vld [vmem:[%s308 + $0x20] sm:$0xf]
      %v318 = vld [vmem:[%s308 + $0x24] sm:$0xf]
      %v319 = vld [vmem:[%s308 + $0x28] sm:$0xf]
      %v320 = vld [vmem:[%s308 + $0x2c] sm:$0xf]
      %v321 = vld [vmem:[%s308 + $0x30] sm:$0xf]
      %v322 = vld [vmem:[%s308 + $0x34] sm:$0xf]
      %v323 = vld [vmem:[%s308 + $0x38] sm:$0xf]
      %v324 = vld [vmem:[%s308 + $0x3c] sm:$0xf]
      %v325 = vld [vmem:[%s308 + $0x40] sm:$0xf]
      %v326 = vld [vmem:[%s308 + $0x44] sm:$0xf]
      %v327 = vld [vmem:[%s308 + $0x48] sm:$0xf]
      %v328 = vld [vmem:[%s308 + $0x4c] sm:$0xf]
      %v329 = vld [vmem:[%s308 + $0x50] sm:$0xf]
      %v330 = vld [vmem:[%s308 + $0x54] sm:$0xf]
      %v331 = vld [vmem:[%s308 + $0x58] sm:$0xf]
      %v332 = vld [vmem:[%s308 + $0x5c] sm:$0xf]
      %v333 = vld [vmem:[%s308 + $0x60] sm:$0xf]
      %v334 = vld [vmem:[%s308 + $0x64] sm:$0xf]
      %v335 = vld [vmem:[%s308 + $0x68] sm:$0xf]
      %v336 = vld [vmem:[%s308 + $0x6c] sm:$0xf]
      %v337 = vld [vmem:[%s308 + $0x70] sm:$0xf]
      %v338 = vld [vmem:[%s308 + $0x74] sm:$0xf]
      %v339 = vld [vmem:[%s308 + $0x78] sm:$0xf]
      %v340 = vld [vmem:[%s308 + $0x7c] sm:$0xf]
      %v341 = vld [vmem:[%s308 + $0x80] sm:$0xf]
      %v342 = vld [vmem:[%s308 + $0x84] sm:$0xf]
      %v343 = vld [vmem:[%s308 + $0x88] sm:$0xf]
      %v344 = vld [vmem:[%s308 + $0x8c] sm:$0xf]
      %v345 = vld [vmem:[%s308 + $0x90] sm:$0xf]
      %v346 = vld [vmem:[%s308 + $0x94] sm:$0xf]
      %v347 = vld [vmem:[%s308 + $0x98] sm:$0xf]
      %v348 = vld [vmem:[%s308 + $0x9c] sm:$0xf]
      %v349 = vld [vmem:[%s308 + $0xa0] sm:$0xf]
      %v350 = vld [vmem:[%s308 + $0xa4] sm:$0xf]
      %v351 = vld [vmem:[%s308 + $0xa8] sm:$0xf]
      %v352 = vld [vmem:[%s308 + $0xac] sm:$0xf]
      %v353 = vld [vmem:[%s308 + $0xb0] sm:$0xf]
      %v354 = vld [vmem:[%s308 + $0xb4] sm:$0xf]
      %v355 = vld [vmem:[%s308 + $0xb8] sm:$0xf]
      %v356 = vld [vmem:[%s308 + $0xbc] sm:$0xf]
      %v357 = vld [vmem:[%s308 + $0xc0] sm:$0xf]
      %v358 = vld [vmem:[%s308 + $0xc4] sm:$0xf]
      %v359 = vld [vmem:[%s308 + $0xc8] sm:$0xf]
      %v360 = vld [vmem:[%s308 + $0xcc] sm:$0xf]
      %v361 = vld [vmem:[%s308 + $0xd0] sm:$0xf]
      %v362 = vld [vmem:[%s308 + $0xd4] sm:$0xf]
      %v363 = vld [vmem:[%s308 + $0xd8] sm:$0xf]
      %v364 = vld [vmem:[%s308 + $0xdc] sm:$0xf]
      %v365 = vld [vmem:[%s308 + $0xe0] sm:$0xf]
      %v366 = vld [vmem:[%s308 + $0xe4] sm:$0xf]
      %v367 = vld [vmem:[%s308 + $0xe8] sm:$0xf]
      %v368 = vld [vmem:[%s308 + $0xec] sm:$0xf]
      %v369 = vld [vmem:[%s308 + $0xf0] sm:$0xf]
      %v370 = vld [vmem:[%s308 + $0xf4] sm:$0xf]
      %v371 = vld [vmem:[%s308 + $0xf8] sm:$0xf]
      %v372 = vld [vmem:[%s308 + $0xfc] sm:$0xf]
      %v373 = vld [vmem:[%s308 + $0x100] sm:$0xf]
      %v374 = vld [vmem:[%s308 + $0x104] sm:$0xf]
      %v375 = vld [vmem:[%s308 + $0x108] sm:$0xf]
      %v376 = vld [vmem:[%s308 + $0x10c] sm:$0xf]
      %v377 = vld [vmem:[%s308 + $0x110] sm:$0xf]
      %v378 = vld [vmem:[%s308 + $0x114] sm:$0xf]
      %v379 = vld [vmem:[%s308 + $0x118] sm:$0xf]
      %v380 = vld [vmem:[%s308 + $0x11c] sm:$0xf]
      %v381 = vld [vmem:[%s308 + $0x120] sm:$0xf]
      %v382 = vld [vmem:[%s308 + $0x124] sm:$0xf]
      %v383 = vld [vmem:[%s308 + $0x128] sm:$0xf]
      %v384 = vld [vmem:[%s308 + $0x12c] sm:$0xf]
      %v385 = vld [vmem:[%s308 + $0x130] sm:$0xf]
      %v386 = vld [vmem:[%s308 + $0x134] sm:$0xf]
      %v387 = vld [vmem:[%s308 + $0x138] sm:$0xf]
      %v388 = vld [vmem:[%s308 + $0x13c] sm:$0xf]
      %v389 = vld [vmem:[%s308 + $0x140] sm:$0xf]
      %v390 = vld [vmem:[%s308 + $0x144] sm:$0xf]
      %v391 = vld [vmem:[%s308 + $0x148] sm:$0xf]
      %v392 = vld [vmem:[%s308 + $0x14c] sm:$0xf]
      %v393 = vld [vmem:[%s308 + $0x150] sm:$0xf]
      %v394 = vld [vmem:[%s308 + $0x154] sm:$0xf]
      %v395 = vld [vmem:[%s308 + $0x158] sm:$0xf]
      %v396 = vld [vmem:[%s308 + $0x15c] sm:$0xf]
      %v397 = vld [vmem:[%s308 + $0x160] sm:$0xf]
      %v398 = vld [vmem:[%s308 + $0x164] sm:$0xf]
      %v399 = vld [vmem:[%s1] sm:$0xf]
      %v400 = vld [vmem:[%s1 + $0x4] sm:$0xf]
      %v401 = vld [vmem:[%s4] sm:$0x1]
      %v403 = vlaneseq
      %v404 = vshrl.u32 %v403, 7
      %v405 = vsub.s32 0, %v404
      %v406 = vrot.slane %v401, %v405
      %v498 = vunpack.c.l.b16 %v309
      %v499 = vunpack.c.l.b16 %v310
      %v500 = vunpack.c.l.b16 %v311
      %v501 = vunpack.c.l.b16 %v312
      %v502 = vunpack.c.l.b16 %v313
      %v503 = vunpack.c.l.b16 %v314
      %v504 = vunpack.c.l.b16 %v315
      %v505 = vunpack.c.l.b16 %v316
      %v506 = vunpack.c.l.b16 %v317
      %v507 = vunpack.c.l.b16 %v318
      %v508 = vunpack.c.l.b16 %v319
      %v509 = vunpack.c.l.b16 %v320
      %v510 = vunpack.c.l.b16 %v321
      %v511 = vunpack.c.l.b16 %v322
      %v512 = vunpack.c.l.b16 %v323
      %v513 = vunpack.c.l.b16 %v324
      %v514 = vunpack.c.l.b16 %v325
      %v515 = vunpack.c.l.b16 %v326
      %v516 = vunpack.c.l.b16 %v327
      %v517 = vunpack.c.l.b16 %v328
      %v518 = vunpack.c.l.b16 %v329
      %v519 = vunpack.c.l.b16 %v330
      %v520 = vunpack.c.l.b16 %v331
      %v521 = vunpack.c.l.b16 %v332
      %v522 = vunpack.c.l.b16 %v333
      %v523 = vunpack.c.l.b16 %v334
      %v524 = vunpack.c.l.b16 %v335
      %v525 = vunpack.c.l.b16 %v336
      %v526 = vunpack.c.l.b16 %v337
      %v527 = vunpack.c.l.b16 %v338
      %v528 = vunpack.c.l.b16 %v339
      %v529 = vunpack.c.l.b16 %v340
      %v530 = vunpack.c.l.b16 %v341
      %v531 = vunpack.c.l.b16 %v342
      %v532 = vunpack.c.l.b16 %v343
      %v533 = vunpack.c.l.b16 %v344
      %v534 = vunpack.c.l.b16 %v345
      %v535 = vunpack.c.l.b16 %v346
      %v536 = vunpack.c.l.b16 %v347
      %v537 = vunpack.c.l.b16 %v348
      %v538 = vunpack.c.l.b16 %v349
      %v539 = vunpack.c.l.b16 %v350
      %v540 = vunpack.c.l.b16 %v351
      %v541 = vunpack.c.l.b16 %v352
      %v542 = vunpack.c.l.b16 %v353
      %v543 = vunpack.c.l.b16 %v354
      %v544 = vunpack.c.l.b16 %v355
      %v545 = vunpack.c.l.b16 %v356
      %v546 = vunpack.c.l.b16 %v357
      %v547 = vunpack.c.l.b16 %v358
      %v548 = vunpack.c.l.b16 %v359
      %v549 = vunpack.c.l.b16 %v360
      %v550 = vunpack.c.l.b16 %v361
      %v551 = vunpack.c.l.b16 %v362
      %v552 = vunpack.c.l.b16 %v363
      %v553 = vunpack.c.l.b16 %v364
      %v554 = vunpack.c.l.b16 %v365
      %v555 = vunpack.c.l.b16 %v366
      %v556 = vunpack.c.l.b16 %v367
      %v557 = vunpack.c.l.b16 %v368
      %v558 = vunpack.c.l.b16 %v369
      %v559 = vunpack.c.l.b16 %v370
      %v560 = vunpack.c.l.b16 %v371
      %v561 = vunpack.c.l.b16 %v372
      %v562 = vunpack.c.l.b16 %v373
      %v563 = vunpack.c.l.b16 %v374
      %v564 = vunpack.c.l.b16 %v375
      %v565 = vunpack.c.l.b16 %v376
      %v566 = vunpack.c.l.b16 %v377
      %v567 = vunpack.c.l.b16 %v378
      %v568 = vunpack.c.l.b16 %v379
      %v569 = vunpack.c.l.b16 %v380
      %v570 = vunpack.c.l.b16 %v381
      %v571 = vunpack.c.l.b16 %v382
      %v572 = vunpack.c.l.b16 %v383
      %v573 = vunpack.c.l.b16 %v384
      %v574 = vunpack.c.l.b16 %v385
      %v575 = vunpack.c.l.b16 %v386
      %v576 = vunpack.c.l.b16 %v387
      %v577 = vunpack.c.l.b16 %v388
      %v578 = vunpack.c.l.b16 %v389
      %v579 = vunpack.c.l.b16 %v390
      %v580 = vunpack.c.l.b16 %v391
      %v581 = vunpack.c.l.b16 %v392
      %v582 = vunpack.c.l.b16 %v393
      %v583 = vunpack.c.l.b16 %v394
      %v584 = vunpack.c.l.b16 %v395
      %v585 = vunpack.c.l.b16 %v396
      %v586 = vunpack.c.l.b16 %v397
      %v587 = vunpack.c.l.b16 %v398
      %v588 = vpack.c.b16 %v499, %v498
      %v589 = vpack.c.b16 %v501, %v500
      %v590 = vpack.c.b16 %v503, %v502
      %v591 = vpack.c.b16 %v505, %v504
      %v592 = vpack.c.b16 %v507, %v506
      %v593 = vpack.c.b16 %v509, %v508
      %v594 = vpack.c.b16 %v511, %v510
      %v595 = vpack.c.b16 %v513, %v512
      %v596 = vpack.c.b16 %v515, %v514
      %v597 = vpack.c.b16 %v517, %v516
      %v598 = vpack.c.b16 %v519, %v518
      %v599 = vpack.c.b16 %v521, %v520
      %v600 = vpack.c.b16 %v523, %v522
      %v601 = vpack.c.b16 %v525, %v524
      %v602 = vpack.c.b16 %v527, %v526
      %v603 = vpack.c.b16 %v529, %v528
      %v604 = vpack.c.b16 %v531, %v530
      %v605 = vpack.c.b16 %v533, %v532
      %v606 = vpack.c.b16 %v535, %v534
      %v607 = vpack.c.b16 %v537, %v536
      %v608 = vpack.c.b16 %v539, %v538
      %v609 = vpack.c.b16 %v541, %v540
      %v610 = vpack.c.b16 %v543, %v542
      %v611 = vpack.c.b16 %v545, %v544
      %v612 = vpack.c.b16 %v547, %v546
      %v613 = vpack.c.b16 %v549, %v548
      %v614 = vpack.c.b16 %v551, %v550
      %v615 = vpack.c.b16 %v553, %v552
      %v616 = vpack.c.b16 %v555, %v554
      %v617 = vpack.c.b16 %v557, %v556
      %v618 = vpack.c.b16 %v559, %v558
      %v619 = vpack.c.b16 %v561, %v560
      %v620 = vpack.c.b16 %v563, %v562
      %v621 = vpack.c.b16 %v565, %v564
      %v622 = vpack.c.b16 %v567, %v566
      %v623 = vpack.c.b16 %v569, %v568
      %v624 = vpack.c.b16 %v571, %v570
      %v625 = vpack.c.b16 %v573, %v572
      %v626 = vpack.c.b16 %v575, %v574
      %v627 = vpack.c.b16 %v577, %v576
      %v628 = vpack.c.b16 %v579, %v578
      %v629 = vpack.c.b16 %v581, %v580
      %v630 = vpack.c.b16 %v583, %v582
      %v631 = vpack.c.b16 %v585, %v584
      %v632 = vpack.c.b16 %v587, %v586
      %v635 = vunpack.c.l.b16 %v399
      %v636 = vunpack.c.l.b16 %v400
      %v637 = vpack.c.b16 %v636, %v635
      %vm639 = vcmask 130048
      %v641 = vsel %vm639, %v588, 0
      %v644 = vsel %vm639, %v589, 0
      %v647 = vsel %vm639, %v590, 0
      %v650 = vsel %vm639, %v591, 0
      %v653 = vsel %vm639, %v592, 0
      %v656 = vsel %vm639, %v593, 0
      %v659 = vsel %vm639, %v594, 0
      %v662 = vsel %vm639, %v595, 0
      %v665 = vsel %vm639, %v596, 0
      %v668 = vsel %vm639, %v597, 0
      %v671 = vsel %vm639, %v598, 0
      %v674 = vsel %vm639, %v599, 0
      %v677 = vsel %vm639, %v600, 0
      %v680 = vsel %vm639, %v601, 0
      %v683 = vsel %vm639, %v602, 0
      %v686 = vsel %vm639, %v603, 0
      %v689 = vsel %vm639, %v604, 0
      %v692 = vsel %vm639, %v605, 0
      %v695 = vsel %vm639, %v606, 0
      %v698 = vsel %vm639, %v607, 0
      %v701 = vsel %vm639, %v608, 0
      %v704 = vsel %vm639, %v609, 0
      %v707 = vsel %vm639, %v610, 0
      %v710 = vsel %vm639, %v611, 0
      %v713 = vsel %vm639, %v612, 0
      %v716 = vsel %vm639, %v613, 0
      %v719 = vsel %vm639, %v614, 0
      %v722 = vsel %vm639, %v615, 0
      %v725 = vsel %vm639, %v616, 0
      %v728 = vsel %vm639, %v617, 0
      %v731 = vsel %vm639, %v618, 0
      %v734 = vsel %vm639, %v619, 0
      %v737 = vsel %vm639, %v620, 0
      %v740 = vsel %vm639, %v621, 0
      %v743 = vsel %vm639, %v622, 0
      %v746 = vsel %vm639, %v623, 0
      %v749 = vsel %vm639, %v624, 0
      %v752 = vsel %vm639, %v625, 0
      %v755 = vsel %vm639, %v626, 0
      %v758 = vsel %vm639, %v627, 0
      %v761 = vsel %vm639, %v628, 0
      %v764 = vsel %vm639, %v629, 0
      %v767 = vsel %vm639, %v630, 0
      %v770 = vsel %vm639, %v631, 0
      %v773 = vsel %vm639, %v632, 0
      %775 = vmatprep.subr.bf16.mxu0 0
      %776 = vmatpush1.bf16.msra.mxu0 %v637
      %777 = vmatprep.subr.bf16.mxu0 0
      %778 = vmatpush1.bf16.msra.mxu0 0
      %779 = vmatprep.subr.bf16.mxu0 0
      %780 = vmatpush1.bf16.msra.mxu0 0
      %781 = vmatprep.subr.bf16.mxu0 0
      %782 = vmatpush1.bf16.msra.mxu0 0
      %783 = vmatprep.subr.bf16.mxu0 0
      %784 = vmatpush1.bf16.msra.mxu0 0
      %785 = vmatprep.subr.bf16.mxu0 0
      %786 = vmatpush1.bf16.msra.mxu0 0
      %787 = vmatprep.subr.bf16.mxu0 0
      %788 = vmatpush1.bf16.msra.mxu0 0
      %789 = vmatprep.subr.bf16.mxu0 0
      %790 = vmatpush1.bf16.msra.mxu0 0
      %791 = vmatprep.subr.bf16.mxu0 0
      %792 = vmatpush1.bf16.msra.mxu0 0
      %793 = vmatprep.subr.bf16.mxu0 0
      %794 = vmatpush1.bf16.msra.mxu0 0
      %795 = vmatprep.subr.bf16.mxu0 0
      %796 = vmatpush1.bf16.msra.mxu0 0
      %797 = vmatprep.subr.bf16.mxu0 0
      %798 = vmatpush1.bf16.msra.mxu0 0
      %799 = vmatprep.subr.bf16.mxu0 0
      %800 = vmatpush1.bf16.msra.mxu0 0
      %801 = vmatprep.subr.bf16.mxu0 0
      %802 = vmatpush1.bf16.msra.mxu0 0
      %803 = vmatprep.subr.bf16.mxu0 0
      %804 = vmatpush1.bf16.msra.mxu0 0
      %805 = vmatprep.subr.bf16.mxu0 0
      %806 = vmatpush1.bf16.msra.mxu0 0
      %807 = vmatprep.mubr.bf16.mxu0 0
      %808 = vmatmul.mubr.bf16.gmra.mrb[0].mxu0 %v641
      %v809 = vpop.f32.mrb[0].mxu0
      %v810 = vadd.f32 %v406, %v809
      %v811 = vpop.f32.mrb[0].mxu0
      %v812 = vpop.f32.mrb[0].mxu0
      %v813 = vadd.f32 %v406, %v812
      %v814 = vpop.f32.mrb[0].mxu0
      %815 = vmatprep.mubr.bf16.mxu0 0
      %816 = vmatmul.mubr.bf16.gmra.mrb[0].mxu0 %v644
      %v817 = vpop.f32.mrb[0].mxu0
      %v818 = vadd.f32 %v406, %v817
      %v819 = vpop.f32.mrb[0].mxu0
      %v820 = vpop.f32.mrb[0].mxu0
      %v821 = vadd.f32 %v406, %v820
      %v822 = vpop.f32.mrb[0].mxu0
      %823 = vmatprep.mubr.bf16.mxu0 0
      %824 = vmatmul.mubr.bf16.gmra.mrb[0].mxu0 %v647
      %v825 = vpop.f32.mrb[0].mxu0
      %v826 = vadd.f32 %v406, %v825
      %v827 = vpop.f32.mrb[0].mxu0
      %v828 = vpop.f32.mrb[0].mxu0
      %v829 = vadd.f32 %v406, %v828
      %v830 = vpop.f32.mrb[0].mxu0
      %831 = vmatprep.mubr.bf16.mxu0 0
      %832 = vmatmul.mubr.bf16.gmra.mrb[0].mxu0 %v650
      %v833 = vpop.f32.mrb[0].mxu0
      %v834 = vadd.f32 %v406, %v833
      %v835 = vpop.f32.mrb[0].mxu0
      %v836 = vpop.f32.mrb[0].mxu0
      %v837 = vadd.f32 %v406, %v836
      %v838 = vpop.f32.mrb[0].mxu0
      %839 = vmatprep.mubr.bf16.mxu0 0
      %840 = vmatmul.mubr.bf16.gmra.mrb[0].mxu0 %v653
      %v841 = vpop.f32.mrb[0].mxu0
      %v842 = vadd.f32 %v406, %v841
      %v843 = vpop.f32.mrb[0].mxu0
      %v844 = vpop.f32.mrb[0].mxu0
      %v845 = vadd.f32 %v406, %v844
      %v846 = vpop.f32.mrb[0].mxu0
      %847 = vmatprep.mubr.bf16.mxu0 0
      %848 = vmatmul.mubr.bf16.gmra.mrb[0].mxu0 %v656
      %v849 = vpop.f32.mrb[0].mxu0
      %v850 = vadd.f32 %v406, %v849
      %v851 = vpop.f32.mrb[0].mxu0
      %v852 = vpop.f32.mrb[0].mxu0
      %v853 = vadd.f32 %v406, %v852
      %v854 = vpop.f32.mrb[0].mxu0
      %855 = vmatprep.mubr.bf16.mxu0 0
      %856 = vmatmul.mubr.bf16.gmra.mrb[0].mxu0 %v659
      %v857 = vpop.f32.mrb[0].mxu0
      %v858 = vadd.f32 %v406, %v857
      %v859 = vpop.f32.mrb[0].mxu0
      %v860 = vpop.f32.mrb[0].mxu0
      %v861 = vadd.f32 %v406, %v860
      %v862 = vpop.f32.mrb[0].mxu0
      %863 = vmatprep.mubr.bf16.mxu0 0
      %864 = vmatmul.mubr.bf16.gmra.mrb[0].mxu0 %v662
      %v865 = vpop.f32.mrb[0].mxu0
      %v866 = vadd.f32 %v406, %v865
      %v867 = vpop.f32.mrb[0].mxu0
      %v868 = vpop.f32.mrb[0].mxu0
      %v869 = vadd.f32 %v406, %v868
      %v870 = vpop.f32.mrb[0].mxu0
      %871 = vmatprep.mubr.bf16.mxu0 0
      %872 = vmatmul.mubr.bf16.gmra.mrb[0].mxu0 %v665
      %v873 = vpop.f32.mrb[0].mxu0
      %v874 = vadd.f32 %v406, %v873
      %v875 = vpop.f32.mrb[0].mxu0
      %v876 = vpop.f32.mrb[0].mxu0
      %v877 = vadd.f32 %v406, %v876
      %v878 = vpop.f32.mrb[0].mxu0
      %879 = vmatprep.mubr.bf16.mxu0 0
      %880 = vmatmul.mubr.bf16.gmra.mrb[0].mxu0 %v668
      %v881 = vpop.f32.mrb[0].mxu0
      %v882 = vadd.f32 %v406, %v881
      %v883 = vpop.f32.mrb[0].mxu0
      %v884 = vpop.f32.mrb[0].mxu0
      %v885 = vadd.f32 %v406, %v884
      %v886 = vpop.f32.mrb[0].mxu0
      %887 = vmatprep.mubr.bf16.mxu0 0
      %888 = vmatmul.mubr.bf16.gmra.mrb[0].mxu0 %v671
      %v889 = vpop.f32.mrb[0].mxu0
      %v890 = vadd.f32 %v406, %v889
      %v891 = vpop.f32.mrb[0].mxu0
      %v892 = vpop.f32.mrb[0].mxu0
      %v893 = vadd.f32 %v406, %v892
      %v894 = vpop.f32.mrb[0].mxu0
      %895 = vmatprep.mubr.bf16.mxu0 0
      %896 = vmatmul.mubr.bf16.gmra.mrb[0].mxu0 %v674
      %v897 = vpop.f32.mrb[0].mxu0
      %v898 = vadd.f32 %v406, %v897
      %v899 = vpop.f32.mrb[0].mxu0
      %v900 = vpop.f32.mrb[0].mxu0
      %v901 = vadd.f32 %v406, %v900
      %v902 = vpop.f32.mrb[0].mxu0
      %903 = vmatprep.mubr.bf16.mxu0 0
      %904 = vmatmul.mubr.bf16.gmra.mrb[0].mxu0 %v677
      %v905 = vpop.f32.mrb[0].mxu0
      %v906 = vadd.f32 %v406, %v905
      %v907 = vpop.f32.mrb[0].mxu0
      %v908 = vpop.f32.mrb[0].mxu0
      %v909 = vadd.f32 %v406, %v908
      %v910 = vpop.f32.mrb[0].mxu0
      %911 = vmatprep.mubr.bf16.mxu0 0
      %912 = vmatmul.mubr.bf16.gmra.mrb[0].mxu0 %v680
      %v913 = vpop.f32.mrb[0].mxu0
      %v914 = vadd.f32 %v406, %v913
      %v915 = vpop.f32.mrb[0].mxu0
      %v916 = vpop.f32.mrb[0].mxu0
      %v917 = vadd.f32 %v406, %v916
      %v918 = vpop.f32.mrb[0].mxu0
      %919 = vmatprep.mubr.bf16.mxu0 0
      %920 = vmatmul.mubr.bf16.gmra.mrb[0].mxu0 %v683
      %v921 = vpop.f32.mrb[0].mxu0
      %v922 = vadd.f32 %v406, %v921
      %v923 = vpop.f32.mrb[0].mxu0
      %v924 = vpop.f32.mrb[0].mxu0
      %v925 = vadd.f32 %v406, %v924
      %v926 = vpop.f32.mrb[0].mxu0
      %927 = vmatprep.mubr.bf16.mxu0 0
      %928 = vmatmul.mubr.bf16.gmra.mrb[0].mxu0 %v686
      %v929 = vpop.f32.mrb[0].mxu0
      %v930 = vadd.f32 %v406, %v929
      %v931 = vpop.f32.mrb[0].mxu0
      %v932 = vpop.f32.mrb[0].mxu0
      %v933 = vadd.f32 %v406, %v932
      %v934 = vpop.f32.mrb[0].mxu0
      %935 = vmatprep.mubr.bf16.mxu0 0
      %936 = vmatmul.mubr.bf16.gmra.mrb[0].mxu0 %v689
      %v937 = vpop.f32.mrb[0].mxu0
      %v938 = vadd.f32 %v406, %v937
      %v939 = vpop.f32.mrb[0].mxu0
      %v940 = vpop.f32.mrb[0].mxu0
      %v941 = vadd.f32 %v406, %v940
      %v942 = vpop.f32.mrb[0].mxu0
      %943 = vmatprep.mubr.bf16.mxu0 0
      %944 = vmatmul.mubr.bf16.gmra.mrb[0].mxu0 %v692
      %v945 = vpop.f32.mrb[0].mxu0
      %v946 = vadd.f32 %v406, %v945
      %v947 = vpop.f32.mrb[0].mxu0
      %v948 = vpop.f32.mrb[0].mxu0
      %v949 = vadd.f32 %v406, %v948
      %v950 = vpop.f32.mrb[0].mxu0
      %951 = vmatprep.mubr.bf16.mxu0 0
      %952 = vmatmul.mubr.bf16.gmra.mrb[0].mxu0 %v695
      %v953 = vpop.f32.mrb[0].mxu0
      %v954 = vadd.f32 %v406, %v953
      %v955 = vpop.f32.mrb[0].mxu0
      %v956 = vpop.f32.mrb[0].mxu0
      %v957 = vadd.f32 %v406, %v956
      %v958 = vpop.f32.mrb[0].mxu0
      %959 = vmatprep.mubr.bf16.mxu0 0
      %960 = vmatmul.mubr.bf16.gmra.mrb[0].mxu0 %v698
      %v961 = vpop.f32.mrb[0].mxu0
      %v962 = vadd.f32 %v406, %v961
      %v963 = vpop.f32.mrb[0].mxu0
      %v964 = vpop.f32.mrb[0].mxu0
      %v965 = vadd.f32 %v406, %v964
      %v966 = vpop.f32.mrb[0].mxu0
      %967 = vmatprep.mubr.bf16.mxu0 0
      %968 = vmatmul.mubr.bf16.gmra.mrb[0].mxu0 %v701
      %v969 = vpop.f32.mrb[0].mxu0
      %v970 = vadd.f32 %v406, %v969
      %v971 = vpop.f32.mrb[0].mxu0
      %v972 = vpop.f32.mrb[0].mxu0
      %v973 = vadd.f32 %v406, %v972
      %v974 = vpop.f32.mrb[0].mxu0
      %975 = vmatprep.mubr.bf16.mxu0 0
      %976 = vmatmul.mubr.bf16.gmra.mrb[0].mxu0 %v704
      %v977 = vpop.f32.mrb[0].mxu0
      %v978 = vadd.f32 %v406, %v977
      %v979 = vpop.f32.mrb[0].mxu0
      %v980 = vpop.f32.mrb[0].mxu0
      %v981 = vadd.f32 %v406, %v980
      %v982 = vpop.f32.mrb[0].mxu0
      %983 = vmatprep.mubr.bf16.mxu0 0
      %984 = vmatmul.mubr.bf16.gmra.mrb[0].mxu0 %v707
      %v985 = vpop.f32.mrb[0].mxu0
      %v986 = vadd.f32 %v406, %v985
      %v987 = vpop.f32.mrb[0].mxu0
      %v988 = vpop.f32.mrb[0].mxu0
      %v989 = vadd.f32 %v406, %v988
      %v990 = vpop.f32.mrb[0].mxu0
      %991 = vmatprep.mubr.bf16.mxu0 0
      %992 = vmatmul.mubr.bf16.gmra.mrb[0].mxu0 %v710
      %v993 = vpop.f32.mrb[0].mxu0
      %v994 = vadd.f32 %v406, %v993
      %v995 = vpop.f32.mrb[0].mxu0
      %v996 = vpop.f32.mrb[0].mxu0
      %v997 = vadd.f32 %v406, %v996
      %v998 = vpop.f32.mrb[0].mxu0
      %999 = vmatprep.mubr.bf16.mxu0 0
      %1000 = vmatmul.mubr.bf16.gmra.mrb[0].mxu0 %v713
      %v1001 = vpop.f32.mrb[0].mxu0
      %v1002 = vadd.f32 %v406, %v1001
      %v1003 = vpop.f32.mrb[0].mxu0
      %v1004 = vpop.f32.mrb[0].mxu0
      %v1005 = vadd.f32 %v406, %v1004
      %v1006 = vpop.f32.mrb[0].mxu0
      %1007 = vmatprep.mubr.bf16.mxu0 0
      %1008 = vmatmul.mubr.bf16.gmra.mrb[0].mxu0 %v716
      %v1009 = vpop.f32.mrb[0].mxu0
      %v1010 = vadd.f32 %v406, %v1009
      %v1011 = vpop.f32.mrb[0].mxu0
      %v1012 = vpop.f32.mrb[0].mxu0
      %v1013 = vadd.f32 %v406, %v1012
      %v1014 = vpop.f32.mrb[0].mxu0
      %1015 = vmatprep.mubr.bf16.mxu0 0
      %1016 = vmatmul.mubr.bf16.gmra.mrb[0].mxu0 %v719
      %v1017 = vpop.f32.mrb[0].mxu0
      %v1018 = vadd.f32 %v406, %v1017
      %v1019 = vpop.f32.mrb[0].mxu0
      %v1020 = vpop.f32.mrb[0].mxu0
      %v1021 = vadd.f32 %v406, %v1020
      %v1022 = vpop.f32.mrb[0].mxu0
      %1023 = vmatprep.mubr.bf16.mxu0 0
      %1024 = vmatmul.mubr.bf16.gmra.mrb[0].mxu0 %v722
      %v1025 = vpop.f32.mrb[0].mxu0
      %v1026 = vadd.f32 %v406, %v1025
      %v1027 = vpop.f32.mrb[0].mxu0
      %v1028 = vpop.f32.mrb[0].mxu0
      %v1029 = vadd.f32 %v406, %v1028
      %v1030 = vpop.f32.mrb[0].mxu0
      %1031 = vmatprep.mubr.bf16.mxu0 0
      %1032 = vmatmul.mubr.bf16.gmra.mrb[0].mxu0 %v725
      %v1033 = vpop.f32.mrb[0].mxu0
      %v1034 = vadd.f32 %v406, %v1033
      %v1035 = vpop.f32.mrb[0].mxu0
      %v1036 = vpop.f32.mrb[0].mxu0
      %v1037 = vadd.f32 %v406, %v1036
      %v1038 = vpop.f32.mrb[0].mxu0
      %1039 = vmatprep.mubr.bf16.mxu0 0
      %1040 = vmatmul.mubr.bf16.gmra.mrb[0].mxu0 %v728
      %v1041 = vpop.f32.mrb[0].mxu0
      %v1042 = vadd.f32 %v406, %v1041
      %v1043 = vpop.f32.mrb[0].mxu0
      %v1044 = vpop.f32.mrb[0].mxu0
      %v1045 = vadd.f32 %v406, %v1044
      %v1046 = vpop.f32.mrb[0].mxu0
      %1047 = vmatprep.mubr.bf16.mxu0 0
      %1048 = vmatmul.mubr.bf16.gmra.mrb[0].mxu0 %v731
      %v1049 = vpop.f32.mrb[0].mxu0
      %v1050 = vadd.f32 %v406, %v1049
      %v1051 = vpop.f32.mrb[0].mxu0
      %v1052 = vpop.f32.mrb[0].mxu0
      %v1053 = vadd.f32 %v406, %v1052
      %v1054 = vpop.f32.mrb[0].mxu0
      %1055 = vmatprep.mubr.bf16.mxu0 0
      %1056 = vmatmul.mubr.bf16.gmra.mrb[0].mxu0 %v734
      %v1057 = vpop.f32.mrb[0].mxu0
      %v1058 = vadd.f32 %v406, %v1057
      %v1059 = vpop.f32.mrb[0].mxu0
      %v1060 = vpop.f32.mrb[0].mxu0
      %v1061 = vadd.f32 %v406, %v1060
      %v1062 = vpop.f32.mrb[0].mxu0
      %1063 = vmatprep.mubr.bf16.mxu0 0
      %1064 = vmatmul.mubr.bf16.gmra.mrb[0].mxu0 %v737
      %v1065 = vpop.f32.mrb[0].mxu0
      %v1066 = vadd.f32 %v406, %v1065
      %v1067 = vpop.f32.mrb[0].mxu0
      %v1068 = vpop.f32.mrb[0].mxu0
      %v1069 = vadd.f32 %v406, %v1068
      %v1070 = vpop.f32.mrb[0].mxu0
      %1071 = vmatprep.mubr.bf16.mxu0 0
      %1072 = vmatmul.mubr.bf16.gmra.mrb[0].mxu0 %v740
      %v1073 = vpop.f32.mrb[0].mxu0
      %v1074 = vadd.f32 %v406, %v1073
      %v1075 = vpop.f32.mrb[0].mxu0
      %v1076 = vpop.f32.mrb[0].mxu0
      %v1077 = vadd.f32 %v406, %v1076
      %v1078 = vpop.f32.mrb[0].mxu0
      %1079 = vmatprep.mubr.bf16.mxu0 0
      %1080 = vmatmul.mubr.bf16.gmra.mrb[0].mxu0 %v743
      %v1081 = vpop.f32.mrb[0].mxu0
      %v1082 = vadd.f32 %v406, %v1081
      %v1083 = vpop.f32.mrb[0].mxu0
      %v1084 = vpop.f32.mrb[0].mxu0
      %v1085 = vadd.f32 %v406, %v1084
      %v1086 = vpop.f32.mrb[0].mxu0
      %1087 = vmatprep.mubr.bf16.mxu0 0
      %1088 = vmatmul.mubr.bf16.gmra.mrb[0].mxu0 %v746
      %v1089 = vpop.f32.mrb[0].mxu0
      %v1090 = vadd.f32 %v406, %v1089
      %v1091 = vpop.f32.mrb[0].mxu0
      %v1092 = vpop.f32.mrb[0].mxu0
      %v1093 = vadd.f32 %v406, %v1092
      %v1094 = vpop.f32.mrb[0].mxu0
      %1095 = vmatprep.mubr.bf16.mxu0 0
      %1096 = vmatmul.mubr.bf16.gmra.mrb[0].mxu0 %v749
      %v1097 = vpop.f32.mrb[0].mxu0
      %v1098 = vadd.f32 %v406, %v1097
      %v1099 = vpop.f32.mrb[0].mxu0
      %v1100 = vpop.f32.mrb[0].mxu0
      %v1101 = vadd.f32 %v406, %v1100
      %v1102 = vpop.f32.mrb[0].mxu0
      %1103 = vmatprep.mubr.bf16.mxu0 0
      %1104 = vmatmul.mubr.bf16.gmra.mrb[0].mxu0 %v752
      %v1105 = vpop.f32.mrb[0].mxu0
      %v1106 = vadd.f32 %v406, %v1105
      %v1107 = vpop.f32.mrb[0].mxu0
      %v1108 = vpop.f32.mrb[0].mxu0
      %v1109 = vadd.f32 %v406, %v1108
      %v1110 = vpop.f32.mrb[0].mxu0
      %1111 = vmatprep.mubr.bf16.mxu0 0
      %1112 = vmatmul.mubr.bf16.gmra.mrb[0].mxu0 %v755
      %v1113 = vpop.f32.mrb[0].mxu0
      %v1114 = vadd.f32 %v406, %v1113
      %v1115 = vpop.f32.mrb[0].mxu0
      %v1116 = vpop.f32.mrb[0].mxu0
      %v1117 = vadd.f32 %v406, %v1116
      %v1118 = vpop.f32.mrb[0].mxu0
      %1119 = vmatprep.mubr.bf16.mxu0 0
      %1120 = vmatmul.mubr.bf16.gmra.mrb[0].mxu0 %v758
      %v1121 = vpop.f32.mrb[0].mxu0
      %v1122 = vadd.f32 %v406, %v1121
      %v1123 = vpop.f32.mrb[0].mxu0
      %v1124 = vpop.f32.mrb[0].mxu0
      %v1125 = vadd.f32 %v406, %v1124
      %v1126 = vpop.f32.mrb[0].mxu0
      %1127 = vmatprep.mubr.bf16.mxu0 0
      %1128 = vmatmul.mubr.bf16.gmra.mrb[0].mxu0 %v761
      %v1129 = vpop.f32.mrb[0].mxu0
      %v1130 = vadd.f32 %v406, %v1129
      %v1131 = vpop.f32.mrb[0].mxu0
      %v1132 = vpop.f32.mrb[0].mxu0
      %v1133 = vadd.f32 %v406, %v1132
      %v1134 = vpop.f32.mrb[0].mxu0
      %1135 = vmatprep.mubr.bf16.mxu0 0
      %1136 = vmatmul.mubr.bf16.gmra.mrb[0].mxu0 %v764
      %v1137 = vpop.f32.mrb[0].mxu0
      %v1138 = vadd.f32 %v406, %v1137
      %v1139 = vpop.f32.mrb[0].mxu0
      %v1140 = vpop.f32.mrb[0].mxu0
      %v1141 = vadd.f32 %v406, %v1140
      %v1142 = vpop.f32.mrb[0].mxu0
      %1143 = vmatprep.mubr.bf16.mxu0 0
      %1144 = vmatmul.mubr.bf16.gmra.mrb[0].mxu0 %v767
      %v1145 = vpop.f32.mrb[0].mxu0
      %v1146 = vadd.f32 %v406, %v1145
      %v1147 = vpop.f32.mrb[0].mxu0
      %v1148 = vpop.f32.mrb[0].mxu0
      %v1149 = vadd.f32 %v406, %v1148
      %v1150 = vpop.f32.mrb[0].mxu0
      %1151 = vmatprep.mubr.bf16.mxu0 0
      %1152 = vmatmul.mubr.bf16.gmra.mrb[0].mxu0 %v770
      %v1153 = vpop.f32.mrb[0].mxu0
      %v1154 = vadd.f32 %v406, %v1153
      %v1155 = vpop.f32.mrb[0].mxu0
      %v1156 = vpop.f32.mrb[0].mxu0
      %v1157 = vadd.f32 %v406, %v1156
      %v1158 = vpop.f32.mrb[0].mxu0
      %1159 = vmatprep.mubr.bf16.mxu0 0
      %1160 = vmatmul.mubr.bf16.gmra.mrb[0].mxu0 %v773
      %v1161 = vpop.f32.mrb[0].mxu0
      %v1162 = vadd.f32 %v406, %v1161
      %v1163 = vpop.f32.mrb[0].mxu0
      %v1164 = vpop.f32.mrb[0].mxu0
      %v1165 = vadd.f32 %v406, %v1164
      %v1166 = vpop.f32.mrb[0].mxu0
      %1167 = vdwg.mxu0
      %v1168 = vstv %s305
      %v1169 = vadd.s32 %v1168, 1
      %v1170 = vadd.s32 %v1168, 2
      %v1171 = vadd.s32 %v1168, 3
      %v1172 = vadd.s32 %v1168, 4
      %v1173 = vadd.s32 %v1168, 5
      %v1174 = vadd.s32 %v1168, 6
      %v1175 = vadd.s32 %v1168, 7
      %v1176 = vadd.s32 %v1168, 8
      %v1177 = vadd.s32 %v1168, 9
      %v1178 = vadd.s32 %v1168, 10
      %v1179 = vadd.s32 %v1168, 11
      %v1180 = vadd.s32 %v1168, 12
      %v1181 = vadd.s32 %v1168, 13
      %v1182 = vadd.s32 %v1168, 14
      %v1183 = vadd.s32 %v1168, 15
      %v1184 = vadd.s32 %v1168, 16
      %v1185 = vadd.s32 %v1168, 17
      %v1186 = vlaneseq
      %v1187 = vshrl.u32 %v1186, 7
      %v1188 = vadd.s32 %v1187, 8
      %v1189 = vadd.s32 %v1187, 16
      %v1190 = vadd.s32 %v1187, 24
      %v1191 = vadd.s32 %v1187, 32
      %vm1192 = vcmp.ge.s32.totalorder %v1168, 1
      %vm1193 = vcmp.ge.s32.totalorder %v1169, 1
      %vm1194 = vcmp.ge.s32.totalorder %v1170, 1
      %vm1195 = vcmp.ge.s32.totalorder %v1171, 1
      %vm1196 = vcmp.ge.s32.totalorder %v1172, 1
      %vm1197 = vcmp.ge.s32.totalorder %v1173, 1
      %vm1198 = vcmp.ge.s32.totalorder %v1174, 1
      %vm1199 = vcmp.ge.s32.totalorder %v1175, 1
      %vm1200 = vcmp.ge.s32.totalorder %v1176, 1
      %vm1201 = vcmp.ge.s32.totalorder %v1177, 1
      %vm1202 = vcmp.ge.s32.totalorder %v1178, 1
      %vm1203 = vcmp.ge.s32.totalorder %v1179, 1
      %vm1204 = vcmp.ge.s32.totalorder %v1180, 1
      %vm1205 = vcmp.ge.s32.totalorder %v1181, 1
      %vm1206 = vcmp.ge.s32.totalorder %v1182, 1
      %vm1207 = vcmp.ge.s32.totalorder %v1183, 1
      %vm1208 = vcmp.ge.s32.totalorder %v1184, 1
      %vm1209 = vcmp.ge.s32.totalorder %v1185, 1
      %vm1210 = vcmp.le.s32.totalorder %v1168, 32
      %vm1211 = vcmp.le.s32.totalorder %v1169, 32
      %vm1212 = vcmp.le.s32.totalorder %v1170, 32
      %vm1213 = vcmp.le.s32.totalorder %v1171, 32
      %vm1214 = vcmp.le.s32.totalorder %v1172, 32
      %vm1215 = vcmp.le.s32.totalorder %v1173, 32
      %vm1216 = vcmp.le.s32.totalorder %v1174, 32
      %vm1217 = vcmp.le.s32.totalorder %v1175, 32
      %vm1218 = vcmp.le.s32.totalorder %v1176, 32
      %vm1219 = vcmp.le.s32.totalorder %v1177, 32
      %vm1220 = vcmp.le.s32.totalorder %v1178, 32
      %vm1221 = vcmp.le.s32.totalorder %v1179, 32
      %vm1222 = vcmp.le.s32.totalorder %v1180, 32
      %vm1223 = vcmp.le.s32.totalorder %v1181, 32
      %vm1224 = vcmp.le.s32.totalorder %v1182, 32
      %vm1225 = vcmp.le.s32.totalorder %v1183, 32
      %vm1226 = vcmp.le.s32.totalorder %v1184, 32
      %vm1227 = vcmp.le.s32.totalorder %v1185, 32
      %vm1228 = vmand %vm1192, %vm1210
      %vm1229 = vmand %vm1193, %vm1211
      %vm1230 = vmand %vm1194, %vm1212
      %vm1231 = vmand %vm1195, %vm1213
      %vm1232 = vmand %vm1196, %vm1214
      %vm1233 = vmand %vm1197, %vm1215
      %vm1234 = vmand %vm1198, %vm1216
      %vm1235 = vmand %vm1199, %vm1217
      %vm1236 = vmand %vm1200, %vm1218
      %vm1237 = vmand %vm1201, %vm1219
      %vm1238 = vmand %vm1202, %vm1220
      %vm1239 = vmand %vm1203, %vm1221
      %vm1240 = vmand %vm1204, %vm1222
      %vm1241 = vmand %vm1205, %vm1223
      %vm1242 = vmand %vm1206, %vm1224
      %vm1243 = vmand %vm1207, %vm1225
      %vm1244 = vmand %vm1208, %vm1226
      %vm1245 = vmand %vm1209, %vm1227
      %vm1246 = vcmp.ge.s32.totalorder %v1187, 1
      %vm1247 = vcmp.ge.s32.totalorder %v1188, 1
      %vm1248 = vcmp.ge.s32.totalorder %v1189, 1
      %vm1249 = vcmp.ge.s32.totalorder %v1190, 1
      %vm1250 = vcmp.ge.s32.totalorder %v1191, 1
      %vm1251 = vmand %vm1228, %vm1246
      %vm1252 = vmand %vm1228, %vm1247
      %vm1253 = vmand %vm1228, %vm1248
      %vm1254 = vmand %vm1228, %vm1249
      %vm1255 = vmand %vm1228, %vm1250
      %vm1256 = vmand %vm1229, %vm1246
      %vm1257 = vmand %vm1229, %vm1247
      %vm1258 = vmand %vm1229, %vm1248
      %vm1259 = vmand %vm1229, %vm1249
      %vm1260 = vmand %vm1229, %vm1250
      %vm1261 = vmand %vm1230, %vm1246
      %vm1262 = vmand %vm1230, %vm1247
      %vm1263 = vmand %vm1230, %vm1248
      %vm1264 = vmand %vm1230, %vm1249
      %vm1265 = vmand %vm1230, %vm1250
      %vm1266 = vmand %vm1231, %vm1246
      %vm1267 = vmand %vm1231, %vm1247
      %vm1268 = vmand %vm1231, %vm1248
      %vm1269 = vmand %vm1231, %vm1249
      %vm1270 = vmand %vm1231, %vm1250
      %vm1271 = vmand %vm1232, %vm1246
      %vm1272 = vmand %vm1232, %vm1247
      %vm1273 = vmand %vm1232, %vm1248
      %vm1274 = vmand %vm1232, %vm1249
      %vm1275 = vmand %vm1232, %vm1250
      %vm1276 = vmand %vm1233, %vm1246
      %vm1277 = vmand %vm1233, %vm1247
      %vm1278 = vmand %vm1233, %vm1248
      %vm1279 = vmand %vm1233, %vm1249
      %vm1280 = vmand %vm1233, %vm1250
      %vm1281 = vmand %vm1234, %vm1246
      %vm1282 = vmand %vm1234, %vm1247
      %vm1283 = vmand %vm1234, %vm1248
      %vm1284 = vmand %vm1234, %vm1249
      %vm1285 = vmand %vm1234, %vm1250
      %vm1286 = vmand %vm1235, %vm1246
      %vm1287 = vmand %vm1235, %vm1247
      %vm1288 = vmand %vm1235, %vm1248
      %vm1289 = vmand %vm1235, %vm1249
      %vm1290 = vmand %vm1235, %vm1250
      %vm1291 = vmand %vm1236, %vm1246
      %vm1292 = vmand %vm1236, %vm1247
      %vm1293 = vmand %vm1236, %vm1248
      %vm1294 = vmand %vm1236, %vm1249
      %vm1295 = vmand %vm1236, %vm1250
      %vm1296 = vmand %vm1237, %vm1246
      %vm1297 = vmand %vm1237, %vm1247
      %vm1298 = vmand %vm1237, %vm1248
      %vm1299 = vmand %vm1237, %vm1249
      %vm1300 = vmand %vm1237, %vm1250
      %vm1301 = vmand %vm1238, %vm1246
      %vm1302 = vmand %vm1238, %vm1247
      %vm1303 = vmand %vm1238, %vm1248
      %vm1304 = vmand %vm1238, %vm1249
      %vm1305 = vmand %vm1238, %vm1250
      %vm1306 = vmand %vm1239, %vm1246
      %vm1307 = vmand %vm1239, %vm1247
      %vm1308 = vmand %vm1239, %vm1248
      %vm1309 = vmand %vm1239, %vm1249
      %vm1310 = vmand %vm1239, %vm1250
      %vm1311 = vmand %vm1240, %vm1246
      %vm1312 = vmand %vm1240, %vm1247
      %vm1313 = vmand %vm1240, %vm1248
      %vm1314 = vmand %vm1240, %vm1249
      %vm1315 = vmand %vm1240, %vm1250
      %vm1316 = vmand %vm1241, %vm1246
      %vm1317 = vmand %vm1241, %vm1247
      %vm1318 = vmand %vm1241, %vm1248
      %vm1319 = vmand %vm1241, %vm1249
      %vm1320 = vmand %vm1241, %vm1250
      %vm1321 = vmand %vm1242, %vm1246
      %vm1322 = vmand %vm1242, %vm1247
      %vm1323 = vmand %vm1242, %vm1248
      %vm1324 = vmand %vm1242, %vm1249
      %vm1325 = vmand %vm1242, %vm1250
      %vm1326 = vmand %vm1243, %vm1246
      %vm1327 = vmand %vm1243, %vm1247
      %vm1328 = vmand %vm1243, %vm1248
      %vm1329 = vmand %vm1243, %vm1249
      %vm1330 = vmand %vm1243, %vm1250
      %vm1331 = vmand %vm1244, %vm1246
      %vm1332 = vmand %vm1244, %vm1247
      %vm1333 = vmand %vm1244, %vm1248
      %vm1334 = vmand %vm1244, %vm1249
      %vm1335 = vmand %vm1244, %vm1250
      %vm1336 = vmand %vm1245, %vm1246
      %vm1337 = vmand %vm1245, %vm1247
      %vm1338 = vmand %vm1245, %vm1248
      %vm1339 = vmand %vm1245, %vm1249
      %vm1340 = vmand %vm1245, %vm1250
      %vm1341 = vcmp.le.s32.totalorder %v1187, 32
      %vm1342 = vcmp.le.s32.totalorder %v1188, 32
      %vm1343 = vcmp.le.s32.totalorder %v1189, 32
      %vm1344 = vcmp.le.s32.totalorder %v1190, 32
      %vm1345 = vcmp.le.s32.totalorder %v1191, 32
      %vm1346 = vmand %vm1251, %vm1341
      %vm1347 = vmand %vm1252, %vm1342
      %vm1348 = vmand %vm1253, %vm1343
      %vm1349 = vmand %vm1254, %vm1344
      %vm1350 = vmand %vm1255, %vm1345
      %vm1351 = vmand %vm1256, %vm1341
      %vm1352 = vmand %vm1257, %vm1342
      %vm1353 = vmand %vm1258, %vm1343
      %vm1354 = vmand %vm1259, %vm1344
      %vm1355 = vmand %vm1260, %vm1345
      %vm1356 = vmand %vm1261, %vm1341
      %vm1357 = vmand %vm1262, %vm1342
      %vm1358 = vmand %vm1263, %vm1343
      %vm1359 = vmand %vm1264, %vm1344
      %vm1360 = vmand %vm1265, %vm1345
      %vm1361 = vmand %vm1266, %vm1341
      %vm1362 = vmand %vm1267, %vm1342
      %vm1363 = vmand %vm1268, %vm1343
      %vm1364 = vmand %vm1269, %vm1344
      %vm1365 = vmand %vm1270, %vm1345
      %vm1366 = vmand %vm1271, %vm1341
      %vm1367 = vmand %vm1272, %vm1342
      %vm1368 = vmand %vm1273, %vm1343
      %vm1369 = vmand %vm1274, %vm1344
      %vm1370 = vmand %vm1275, %vm1345
      %vm1371 = vmand %vm1276, %vm1341
      %vm1372 = vmand %vm1277, %vm1342
      %vm1373 = vmand %vm1278, %vm1343
      %vm1374 = vmand %vm1279, %vm1344
      %vm1375 = vmand %vm1280, %vm1345
      %vm1376 = vmand %vm1281, %vm1341
      %vm1377 = vmand %vm1282, %vm1342
      %vm1378 = vmand %vm1283, %vm1343
      %vm1379 = vmand %vm1284, %vm1344
      %vm1380 = vmand %vm1285, %vm1345
      %vm1381 = vmand %vm1286, %vm1341
      %vm1382 = vmand %vm1287, %vm1342
      %vm1383 = vmand %vm1288, %vm1343
      %vm1384 = vmand %vm1289, %vm1344
      %vm1385 = vmand %vm1290, %vm1345
      %vm1386 = vmand %vm1291, %vm1341
      %vm1387 = vmand %vm1292, %vm1342
      %vm1388 = vmand %vm1293, %vm1343
      %vm1389 = vmand %vm1294, %vm1344
      %vm1390 = vmand %vm1295, %vm1345
      %vm1391 = vmand %vm1296, %vm1341
      %vm1392 = vmand %vm1297, %vm1342
      %vm1393 = vmand %vm1298, %vm1343
      %vm1394 = vmand %vm1299, %vm1344
      %vm1395 = vmand %vm1300, %vm1345
      %vm1396 = vmand %vm1301, %vm1341
      %vm1397 = vmand %vm1302, %vm1342
      %vm1398 = vmand %vm1303, %vm1343
      %vm1399 = vmand %vm1304, %vm1344
      %vm1400 = vmand %vm1305, %vm1345
      %vm1401 = vmand %vm1306, %vm1341
      %vm1402 = vmand %vm1307, %vm1342
      %vm1403 = vmand %vm1308, %vm1343
      %vm1404 = vmand %vm1309, %vm1344
      %vm1405 = vmand %vm1310, %vm1345
      %vm1406 = vmand %vm1311, %vm1341
      %vm1407 = vmand %vm1312, %vm1342
      %vm1408 = vmand %vm1313, %vm1343
      %vm1409 = vmand %vm1314, %vm1344
      %vm1410 = vmand %vm1315, %vm1345
      %vm1411 = vmand %vm1316, %vm1341
      %vm1412 = vmand %vm1317, %vm1342
      %vm1413 = vmand %vm1318, %vm1343
      %vm1414 = vmand %vm1319, %vm1344
      %vm1415 = vmand %vm1320, %vm1345
      %vm1416 = vmand %vm1321, %vm1341
      %vm1417 = vmand %vm1322, %vm1342
      %vm1418 = vmand %vm1323, %vm1343
      %vm1419 = vmand %vm1324, %vm1344
      %vm1420 = vmand %vm1325, %vm1345
      %vm1421 = vmand %vm1326, %vm1341
      %vm1422 = vmand %vm1327, %vm1342
      %vm1423 = vmand %vm1328, %vm1343
      %vm1424 = vmand %vm1329, %vm1344
      %vm1425 = vmand %vm1330, %vm1345
      %vm1426 = vmand %vm1331, %vm1341
      %vm1427 = vmand %vm1332, %vm1342
      %vm1428 = vmand %vm1333, %vm1343
      %vm1429 = vmand %vm1334, %vm1344
      %vm1430 = vmand %vm1335, %vm1345
      %vm1431 = vmand %vm1336, %vm1341
      %vm1432 = vmand %vm1337, %vm1342
      %vm1433 = vmand %vm1338, %vm1343
      %vm1434 = vmand %vm1339, %vm1344
      %vm1435 = vmand %vm1340, %vm1345
      %v1436 = vsel %vm1346, %v810, 0.0
      %v1437 = vsel %vm1347, %v813, 0.0
      %v1438 = vsel %vm1348, %v818, 0.0
      %v1439 = vsel %vm1349, %v821, 0.0
      %v1440 = vsel %vm1350, %v826, 0.0
      %v1441 = vsel %vm1351, %v829, 0.0
      %v1442 = vsel %vm1352, %v834, 0.0
      %v1443 = vsel %vm1353, %v837, 0.0
      %v1444 = vsel %vm1354, %v842, 0.0
      %v1445 = vsel %vm1355, %v845, 0.0
      %v1446 = vsel %vm1356, %v850, 0.0
      %v1447 = vsel %vm1357, %v853, 0.0
      %v1448 = vsel %vm1358, %v858, 0.0
      %v1449 = vsel %vm1359, %v861, 0.0
      %v1450 = vsel %vm1360, %v866, 0.0
      %v1451 = vsel %vm1361, %v869, 0.0
      %v1452 = vsel %vm1362, %v874, 0.0
      %v1453 = vsel %vm1363, %v877, 0.0
      %v1454 = vsel %vm1364, %v882, 0.0
      %v1455 = vsel %vm1365, %v885, 0.0
      %v1456 = vsel %vm1366, %v890, 0.0
      %v1457 = vsel %vm1367, %v893, 0.0
      %v1458 = vsel %vm1368, %v898, 0.0
      %v1459 = vsel %vm1369, %v901, 0.0
      %v1460 = vsel %vm1370, %v906, 0.0
      %v1461 = vsel %vm1371, %v909, 0.0
      %v1462 = vsel %vm1372, %v914, 0.0
      %v1463 = vsel %vm1373, %v917, 0.0
      %v1464 = vsel %vm1374, %v922, 0.0
      %v1465 = vsel %vm1375, %v925, 0.0
      %v1466 = vsel %vm1376, %v930, 0.0
      %v1467 = vsel %vm1377, %v933, 0.0
      %v1468 = vsel %vm1378, %v938, 0.0
      %v1469 = vsel %vm1379, %v941, 0.0
      %v1470 = vsel %vm1380, %v946, 0.0
      %v1471 = vsel %vm1381, %v949, 0.0
      %v1472 = vsel %vm1382, %v954, 0.0
      %v1473 = vsel %vm1383, %v957, 0.0
      %v1474 = vsel %vm1384, %v962, 0.0
      %v1475 = vsel %vm1385, %v965, 0.0
      %v1476 = vsel %vm1386, %v970, 0.0
      %v1477 = vsel %vm1387, %v973, 0.0
      %v1478 = vsel %vm1388, %v978, 0.0
      %v1479 = vsel %vm1389, %v981, 0.0
      %v1480 = vsel %vm1390, %v986, 0.0
      %v1481 = vsel %vm1391, %v989, 0.0
      %v1482 = vsel %vm1392, %v994, 0.0
      %v1483 = vsel %vm1393, %v997, 0.0
      %v1484 = vsel %vm1394, %v1002, 0.0
      %v1485 = vsel %vm1395, %v1005, 0.0
      %v1486 = vsel %vm1396, %v1010, 0.0
      %v1487 = vsel %vm1397, %v1013, 0.0
      %v1488 = vsel %vm1398, %v1018, 0.0
      %v1489 = vsel %vm1399, %v1021, 0.0
      %v1490 = vsel %vm1400, %v1026, 0.0
      %v1491 = vsel %vm1401, %v1029, 0.0
      %v1492 = vsel %vm1402, %v1034, 0.0
      %v1493 = vsel %vm1403, %v1037, 0.0
      %v1494 = vsel %vm1404, %v1042, 0.0
      %v1495 = vsel %vm1405, %v1045, 0.0
      %v1496 = vsel %vm1406, %v1050, 0.0
      %v1497 = vsel %vm1407, %v1053, 0.0
      %v1498 = vsel %vm1408, %v1058, 0.0
      %v1499 = vsel %vm1409, %v1061, 0.0
      %v1500 = vsel %vm1410, %v1066, 0.0
      %v1501 = vsel %vm1411, %v1069, 0.0
      %v1502 = vsel %vm1412, %v1074, 0.0
      %v1503 = vsel %vm1413, %v1077, 0.0
      %v1504 = vsel %vm1414, %v1082, 0.0
      %v1505 = vsel %vm1415, %v1085, 0.0
      %v1506 = vsel %vm1416, %v1090, 0.0
      %v1507 = vsel %vm1417, %v1093, 0.0
      %v1508 = vsel %vm1418, %v1098, 0.0
      %v1509 = vsel %vm1419, %v1101, 0.0
      %v1510 = vsel %vm1420, %v1106, 0.0
      %v1511 = vsel %vm1421, %v1109, 0.0
      %v1512 = vsel %vm1422, %v1114, 0.0
      %v1513 = vsel %vm1423, %v1117, 0.0
      %v1514 = vsel %vm1424, %v1122, 0.0
      %v1515 = vsel %vm1425, %v1125, 0.0
      %v1516 = vsel %vm1426, %v1130, 0.0
      %v1517 = vsel %vm1427, %v1133, 0.0
      %v1518 = vsel %vm1428, %v1138, 0.0
      %v1519 = vsel %vm1429, %v1141, 0.0
      %v1520 = vsel %vm1430, %v1146, 0.0
      %v1521 = vsel %vm1431, %v1149, 0.0
      %v1522 = vsel %vm1432, %v1154, 0.0
      %v1523 = vsel %vm1433, %v1157, 0.0
      %v1524 = vsel %vm1434, %v1162, 0.0
      %v1525 = vsel %vm1435, %v1165, 0.0
      %v1526 = vld [vmem:[%s2] sm:$0x7]
      %v1527 = vld [vmem:[%s2 + $0x4] sm:$0x7]
      %v1528 = vld [vmem:[%s2 + $0x8] sm:$0x7]
      %v1529 = vlaneseq
      %v1530 = vshrl.u32 %v1529, 7
      %v1531 = vsub.s32 0, %v1530
      %v1532 = vrot.slane %v1526, %v1531
      %v1533 = vmul.f32 %v1436, %v1532
      %v1534 = vmul.f32 %v1437, %v1532
      %v1535 = vmul.f32 %v1438, %v1532
      %v1536 = vmul.f32 %v1439, %v1532
      %v1537 = vmul.f32 %v1441, %v1532
      %v1538 = vmul.f32 %v1442, %v1532
      %v1539 = vmul.f32 %v1443, %v1532
      %v1540 = vmul.f32 %v1444, %v1532
      %v1541 = vmul.f32 %v1446, %v1532
      %v1542 = vmul.f32 %v1447, %v1532
      %v1543 = vmul.f32 %v1448, %v1532
      %v1544 = vmul.f32 %v1449, %v1532
      %v1545 = vmul.f32 %v1451, %v1532
      %v1546 = vmul.f32 %v1452, %v1532
      %v1547 = vmul.f32 %v1453, %v1532
      %v1548 = vmul.f32 %v1454, %v1532
      %v1549 = vmul.f32 %v1456, %v1532
      %v1550 = vmul.f32 %v1457, %v1532
      %v1551 = vmul.f32 %v1458, %v1532
      %v1552 = vmul.f32 %v1459, %v1532
      %v1553 = vmul.f32 %v1461, %v1532
      %v1554 = vmul.f32 %v1462, %v1532
      %v1555 = vmul.f32 %v1463, %v1532
      %v1556 = vmul.f32 %v1464, %v1532
      %v1557 = vmul.f32 %v1466, %v1532
      %v1558 = vmul.f32 %v1467, %v1532
      %v1559 = vmul.f32 %v1468, %v1532
      %v1560 = vmul.f32 %v1469, %v1532
      %v1561 = vmul.f32 %v1471, %v1532
      %v1562 = vmul.f32 %v1472, %v1532
      %v1563 = vmul.f32 %v1473, %v1532
      %v1564 = vmul.f32 %v1474, %v1532
      %v1565 = vmul.f32 %v1476, %v1532
      %v1566 = vmul.f32 %v1477, %v1532
      %v1567 = vmul.f32 %v1478, %v1532
      %v1568 = vmul.f32 %v1479, %v1532
      %v1569 = vmul.f32 %v1481, %v1532
      %v1570 = vmul.f32 %v1482, %v1532
      %v1571 = vmul.f32 %v1483, %v1532
      %v1572 = vmul.f32 %v1484, %v1532
      %v1573 = vmul.f32 %v1486, %v1532
      %v1574 = vmul.f32 %v1487, %v1532
      %v1575 = vmul.f32 %v1488, %v1532
      %v1576 = vmul.f32 %v1489, %v1532
      %v1577 = vmul.f32 %v1491, %v1532
      %v1578 = vmul.f32 %v1492, %v1532
      %v1579 = vmul.f32 %v1493, %v1532
      %v1580 = vmul.f32 %v1494, %v1532
      %v1581 = vmul.f32 %v1496, %v1532
      %v1582 = vmul.f32 %v1497, %v1532
      %v1583 = vmul.f32 %v1498, %v1532
      %v1584 = vmul.f32 %v1499, %v1532
      %v1585 = vmul.f32 %v1501, %v1532
      %v1586 = vmul.f32 %v1502, %v1532
      %v1587 = vmul.f32 %v1503, %v1532
      %v1588 = vmul.f32 %v1504, %v1532
      %v1589 = vmul.f32 %v1506, %v1532
      %v1590 = vmul.f32 %v1507, %v1532
      %v1591 = vmul.f32 %v1508, %v1532
      %v1592 = vmul.f32 %v1509, %v1532
      %v1593 = vmul.f32 %v1511, %v1532
      %v1594 = vmul.f32 %v1512, %v1532
      %v1595 = vmul.f32 %v1513, %v1532
      %v1596 = vmul.f32 %v1514, %v1532
      %v1597 = vadd.f32 %v1533, 0.0
      %v1598 = vadd.f32 %v1534, 0.0
      %v1599 = vadd.f32 %v1535, 0.0
      %v1600 = vadd.f32 %v1536, 0.0
      %v1601 = vadd.f32 %v1537, 0.0
      %v1602 = vadd.f32 %v1538, 0.0
      %v1603 = vadd.f32 %v1539, 0.0
      %v1604 = vadd.f32 %v1540, 0.0
      %v1605 = vadd.f32 %v1541, 0.0
      %v1606 = vadd.f32 %v1542, 0.0
      %v1607 = vadd.f32 %v1543, 0.0
      %v1608 = vadd.f32 %v1544, 0.0
      %v1609 = vadd.f32 %v1545, 0.0
      %v1610 = vadd.f32 %v1546, 0.0
      %v1611 = vadd.f32 %v1547, 0.0
      %v1612 = vadd.f32 %v1548, 0.0
      %v1613 = vadd.f32 %v1549, 0.0
      %v1614 = vadd.f32 %v1550, 0.0
      %v1615 = vadd.f32 %v1551, 0.0
      %v1616 = vadd.f32 %v1552, 0.0
      %v1617 = vadd.f32 %v1553, 0.0
      %v1618 = vadd.f32 %v1554, 0.0
      %v1619 = vadd.f32 %v1555, 0.0
      %v1620 = vadd.f32 %v1556, 0.0
      %v1621 = vadd.f32 %v1557, 0.0
      %v1622 = vadd.f32 %v1558, 0.0
      %v1623 = vadd.f32 %v1559, 0.0
      %v1624 = vadd.f32 %v1560, 0.0
      %v1625 = vadd.f32 %v1561, 0.0
      %v1626 = vadd.f32 %v1562, 0.0
      %v1627 = vadd.f32 %v1563, 0.0
      %v1628 = vadd.f32 %v1564, 0.0
      %v1629 = vadd.f32 %v1565, 0.0
      %v1630 = vadd.f32 %v1566, 0.0
      %v1631 = vadd.f32 %v1567, 0.0
      %v1632 = vadd.f32 %v1568, 0.0
      %v1633 = vadd.f32 %v1569, 0.0
      %v1634 = vadd.f32 %v1570, 0.0
      %v1635 = vadd.f32 %v1571, 0.0
      %v1636 = vadd.f32 %v1572, 0.0
      %v1637 = vadd.f32 %v1573, 0.0
      %v1638 = vadd.f32 %v1574, 0.0
      %v1639 = vadd.f32 %v1575, 0.0
      %v1640 = vadd.f32 %v1576, 0.0
      %v1641 = vadd.f32 %v1577, 0.0
      %v1642 = vadd.f32 %v1578, 0.0
      %v1643 = vadd.f32 %v1579, 0.0
      %v1644 = vadd.f32 %v1580, 0.0
      %v1645 = vadd.f32 %v1581, 0.0
      %v1646 = vadd.f32 %v1582, 0.0
      %v1647 = vadd.f32 %v1583, 0.0
      %v1648 = vadd.f32 %v1584, 0.0
      %v1649 = vadd.f32 %v1585, 0.0
      %v1650 = vadd.f32 %v1586, 0.0
      %v1651 = vadd.f32 %v1587, 0.0
      %v1652 = vadd.f32 %v1588, 0.0
      %v1653 = vadd.f32 %v1589, 0.0
      %v1654 = vadd.f32 %v1590, 0.0
      %v1655 = vadd.f32 %v1591, 0.0
      %v1656 = vadd.f32 %v1592, 0.0
      %v1657 = vadd.f32 %v1593, 0.0
      %v1658 = vadd.f32 %v1594, 0.0
      %v1659 = vadd.f32 %v1595, 0.0
      %v1660 = vadd.f32 %v1596, 0.0
      %v1661 = vlaneseq
      %v1662 = vshrl.u32 %v1661, 7
      %v1663 = vsub.s32 1, %v1662
      %v1664 = vrot.slane %v1526, %v1663
      %v1665 = vmul.f32 %v1436, %v1664
      %v1666 = vmul.f32 %v1437, %v1664
      %v1667 = vmul.f32 %v1438, %v1664
      %v1668 = vmul.f32 %v1439, %v1664
      %v1669 = vmul.f32 %v1440, %v1664
      %v1670 = vmul.f32 %v1441, %v1664
      %v1671 = vmul.f32 %v1442, %v1664
      %v1672 = vmul.f32 %v1443, %v1664
      %v1673 = vmul.f32 %v1444, %v1664
      %v1674 = vmul.f32 %v1445, %v1664
      %v1675 = vmul.f32 %v1446, %v1664
      %v1676 = vmul.f32 %v1447, %v1664
      %v1677 = vmul.f32 %v1448, %v1664
      %v1678 = vmul.f32 %v1449, %v1664
      %v1679 = vmul.f32 %v1450, %v1664
      %v1680 = vmul.f32 %v1451, %v1664
      %v1681 = vmul.f32 %v1452, %v1664
      %v1682 = vmul.f32 %v1453, %v1664
      %v1683 = vmul.f32 %v1454, %v1664
      %v1684 = vmul.f32 %v1455, %v1664
      %v1685 = vmul.f32 %v1456, %v1664
      %v1686 = vmul.f32 %v1457, %v1664
      %v1687 = vmul.f32 %v1458, %v1664
      %v1688 = vmul.f32 %v1459, %v1664
      %v1689 = vmul.f32 %v1460, %v1664
      %v1690 = vmul.f32 %v1461, %v1664
      %v1691 = vmul.f32 %v1462, %v1664
      %v1692 = vmul.f32 %v1463, %v1664
      %v1693 = vmul.f32 %v1464, %v1664
      %v1694 = vmul.f32 %v1465, %v1664
      %v1695 = vmul.f32 %v1466, %v1664
      %v1696 = vmul.f32 %v1467, %v1664
      %v1697 = vmul.f32 %v1468, %v1664
      %v1698 = vmul.f32 %v1469, %v1664
      %v1699 = vmul.f32 %v1470, %v1664
      %v1700 = vmul.f32 %v1471, %v1664
      %v1701 = vmul.f32 %v1472, %v1664
      %v1702 = vmul.f32 %v1473, %v1664
      %v1703 = vmul.f32 %v1474, %v1664
      %v1704 = vmul.f32 %v1475, %v1664
      %v1705 = vmul.f32 %v1476, %v1664
      %v1706 = vmul.f32 %v1477, %v1664
      %v1707 = vmul.f32 %v1478, %v1664
      %v1708 = vmul.f32 %v1479, %v1664
      %v1709 = vmul.f32 %v1480, %v1664
      %v1710 = vmul.f32 %v1481, %v1664
      %v1711 = vmul.f32 %v1482, %v1664
      %v1712 = vmul.f32 %v1483, %v1664
      %v1713 = vmul.f32 %v1484, %v1664
      %v1714 = vmul.f32 %v1485, %v1664
      %v1715 = vmul.f32 %v1486, %v1664
      %v1716 = vmul.f32 %v1487, %v1664
      %v1717 = vmul.f32 %v1488, %v1664
      %v1718 = vmul.f32 %v1489, %v1664
      %v1719 = vmul.f32 %v1490, %v1664
      %v1720 = vmul.f32 %v1491, %v1664
      %v1721 = vmul.f32 %v1492, %v1664
      %v1722 = vmul.f32 %v1493, %v1664
      %v1723 = vmul.f32 %v1494, %v1664
      %v1724 = vmul.f32 %v1495, %v1664
      %v1725 = vmul.f32 %v1496, %v1664
      %v1726 = vmul.f32 %v1497, %v1664
      %v1727 = vmul.f32 %v1498, %v1664
      %v1728 = vmul.f32 %v1499, %v1664
      %v1729 = vmul.f32 %v1500, %v1664
      %v1730 = vmul.f32 %v1501, %v1664
      %v1731 = vmul.f32 %v1502, %v1664
      %v1732 = vmul.f32 %v1503, %v1664
      %v1733 = vmul.f32 %v1504, %v1664
      %v1734 = vmul.f32 %v1505, %v1664
      %v1735 = vmul.f32 %v1506, %v1664
      %v1736 = vmul.f32 %v1507, %v1664
      %v1737 = vmul.f32 %v1508, %v1664
      %v1738 = vmul.f32 %v1509, %v1664
      %v1739 = vmul.f32 %v1510, %v1664
      %v1740 = vmul.f32 %v1511, %v1664
      %v1741 = vmul.f32 %v1512, %v1664
      %v1742 = vmul.f32 %v1513, %v1664
      %v1743 = vmul.f32 %v1514, %v1664
      %v1744 = vmul.f32 %v1515, %v1664
      %vm1825 = vcmask 1046528
      %v1826 = vrot.slane %v1665, 1
      %v1827 = vrot.slane %v1666, 1
      %v1828 = vsel %vm1825, %v1826, %v1827
      %v1829 = vrot.slane %v1667, 1
      %v1830 = vsel %vm1825, %v1827, %v1829
      %v1831 = vrot.slane %v1668, 1
      %v1832 = vsel %vm1825, %v1829, %v1831
      %v1833 = vrot.slane %v1669, 1
      %v1834 = vsel %vm1825, %v1831, %v1833
      %v1835 = vrot.slane %v1670, 1
      %v1836 = vrot.slane %v1671, 1
      %v1837 = vsel %vm1825, %v1835, %v1836
      %v1838 = vrot.slane %v1672, 1
      %v1839 = vsel %vm1825, %v1836, %v1838
      %v1840 = vrot.slane %v1673, 1
      %v1841 = vsel %vm1825, %v1838, %v1840
      %v1842 = vrot.slane %v1674, 1
      %v1843 = vsel %vm1825, %v1840, %v1842
      %v1844 = vrot.slane %v1675, 1
      %v1845 = vrot.slane %v1676, 1
      %v1846 = vsel %vm1825, %v1844, %v1845
      %v1847 = vrot.slane %v1677, 1
      %v1848 = vsel %vm1825, %v1845, %v1847
      %v1849 = vrot.slane %v1678, 1
      %v1850 = vsel %vm1825, %v1847, %v1849
      %v1851 = vrot.slane %v1679, 1
      %v1852 = vsel %vm1825, %v1849, %v1851
      %v1853 = vrot.slane %v1680, 1
      %v1854 = vrot.slane %v1681, 1
      %v1855 = vsel %vm1825, %v1853, %v1854
      %v1856 = vrot.slane %v1682, 1
      %v1857 = vsel %vm1825, %v1854, %v1856
      %v1858 = vrot.slane %v1683, 1
      %v1859 = vsel %vm1825, %v1856, %v1858
      %v1860 = vrot.slane %v1684, 1
      %v1861 = vsel %vm1825, %v1858, %v1860
      %v1862 = vrot.slane %v1685, 1
      %v1863 = vrot.slane %v1686, 1
      %v1864 = vsel %vm1825, %v1862, %v1863
      %v1865 = vrot.slane %v1687, 1
      %v1866 = vsel %vm1825, %v1863, %v1865
      %v1867 = vrot.slane %v1688, 1
      %v1868 = vsel %vm1825, %v1865, %v1867
      %v1869 = vrot.slane %v1689, 1
      %v1870 = vsel %vm1825, %v1867, %v1869
      %v1871 = vrot.slane %v1690, 1
      %v1872 = vrot.slane %v1691, 1
      %v1873 = vsel %vm1825, %v1871, %v1872
      %v1874 = vrot.slane %v1692, 1
      %v1875 = vsel %vm1825, %v1872, %v1874
      %v1876 = vrot.slane %v1693, 1
      %v1877 = vsel %vm1825, %v1874, %v1876
      %v1878 = vrot.slane %v1694, 1
      %v1879 = vsel %vm1825, %v1876, %v1878
      %v1880 = vrot.slane %v1695, 1
      %v1881 = vrot.slane %v1696, 1
      %v1882 = vsel %vm1825, %v1880, %v1881
      %v1883 = vrot.slane %v1697, 1
      %v1884 = vsel %vm1825, %v1881, %v1883
      %v1885 = vrot.slane %v1698, 1
      %v1886 = vsel %vm1825, %v1883, %v1885
      %v1887 = vrot.slane %v1699, 1
      %v1888 = vsel %vm1825, %v1885, %v1887
      %v1889 = vrot.slane %v1700, 1
      %v1890 = vrot.slane %v1701, 1
      %v1891 = vsel %vm1825, %v1889, %v1890
      %v1892 = vrot.slane %v1702, 1
      %v1893 = vsel %vm1825, %v1890, %v1892
      %v1894 = vrot.slane %v1703, 1
      %v1895 = vsel %vm1825, %v1892, %v1894
      %v1896 = vrot.slane %v1704, 1
      %v1897 = vsel %vm1825, %v1894, %v1896
      %v1898 = vrot.slane %v1705, 1
      %v1899 = vrot.slane %v1706, 1
      %v1900 = vsel %vm1825, %v1898, %v1899
      %v1901 = vrot.slane %v1707, 1
      %v1902 = vsel %vm1825, %v1899, %v1901
      %v1903 = vrot.slane %v1708, 1
      %v1904 = vsel %vm1825, %v1901, %v1903
      %v1905 = vrot.slane %v1709, 1
      %v1906 = vsel %vm1825, %v1903, %v1905
      %v1907 = vrot.slane %v1710, 1
      %v1908 = vrot.slane %v1711, 1
      %v1909 = vsel %vm1825, %v1907, %v1908
      %v1910 = vrot.slane %v1712, 1
      %v1911 = vsel %vm1825, %v1908, %v1910
      %v1912 = vrot.slane %v1713, 1
      %v1913 = vsel %vm1825, %v1910, %v1912
      %v1914 = vrot.slane %v1714, 1
      %v1915 = vsel %vm1825, %v1912, %v1914
      %v1916 = vrot.slane %v1715, 1
      %v1917 = vrot.slane %v1716, 1
      %v1918 = vsel %vm1825, %v1916, %v1917
      %v1919 = vrot.slane %v1717, 1
      %v1920 = vsel %vm1825, %v1917, %v1919
      %v1921 = vrot.slane %v1718, 1
      %v1922 = vsel %vm1825, %v1919, %v1921
      %v1923 = vrot.slane %v1719, 1
      %v1924 = vsel %vm1825, %v1921, %v1923
      %v1925 = vrot.slane %v1720, 1
      %v1926 = vrot.slane %v1721, 1
      %v1927 = vsel %vm1825, %v1925, %v1926
      %v1928 = vrot.slane %v1722, 1
      %v1929 = vsel %vm1825, %v1926, %v1928
      %v1930 = vrot.slane %v1723, 1
      %v1931 = vsel %vm1825, %v1928, %v1930
      %v1932 = vrot.slane %v1724, 1
      %v1933 = vsel %vm1825, %v1930, %v1932
      %v1934 = vrot.slane %v1725, 1
      %v1935 = vrot.slane %v1726, 1
      %v1936 = vsel %vm1825, %v1934, %v1935
      %v1937 = vrot.slane %v1727, 1
      %v1938 = vsel %vm1825, %v1935, %v1937
      %v1939 = vrot.slane %v1728, 1
      %v1940 = vsel %vm1825, %v1937, %v1939
      %v1941 = vrot.slane %v1729, 1
      %v1942 = vsel %vm1825, %v1939, %v1941
      %v1943 = vrot.slane %v1730, 1
      %v1944 = vrot.slane %v1731, 1
      %v1945 = vsel %vm1825, %v1943, %v1944
      %v1946 = vrot.slane %v1732, 1
      %v1947 = vsel %vm1825, %v1944, %v1946
      %v1948 = vrot.slane %v1733, 1
      %v1949 = vsel %vm1825, %v1946, %v1948
      %v1950 = vrot.slane %v1734, 1
      %v1951 = vsel %vm1825, %v1948, %v1950
      %v1952 = vrot.slane %v1735, 1
      %v1953 = vrot.slane %v1736, 1
      %v1954 = vsel %vm1825, %v1952, %v1953
      %v1955 = vrot.slane %v1737, 1
      %v1956 = vsel %vm1825, %v1953, %v1955
      %v1957 = vrot.slane %v1738, 1
      %v1958 = vsel %vm1825, %v1955, %v1957
      %v1959 = vrot.slane %v1739, 1
      %v1960 = vsel %vm1825, %v1957, %v1959
      %v1961 = vrot.slane %v1740, 1
      %v1962 = vrot.slane %v1741, 1
      %v1963 = vsel %vm1825, %v1961, %v1962
      %v1964 = vrot.slane %v1742, 1
      %v1965 = vsel %vm1825, %v1962, %v1964
      %v1966 = vrot.slane %v1743, 1
      %v1967 = vsel %vm1825, %v1964, %v1966
      %v1968 = vrot.slane %v1744, 1
      %v1969 = vsel %vm1825, %v1966, %v1968
      %v2034 = vadd.f32 %v1597, %v1828
      %v2035 = vadd.f32 %v1598, %v1830
      %v2036 = vadd.f32 %v1599, %v1832
      %v2037 = vadd.f32 %v1600, %v1834
      %v2038 = vadd.f32 %v1601, %v1837
      %v2039 = vadd.f32 %v1602, %v1839
      %v2040 = vadd.f32 %v1603, %v1841
      %v2041 = vadd.f32 %v1604, %v1843
      %v2042 = vadd.f32 %v1605, %v1846
      %v2043 = vadd.f32 %v1606, %v1848
      %v2044 = vadd.f32 %v1607, %v1850
      %v2045 = vadd.f32 %v1608, %v1852
      %v2046 = vadd.f32 %v1609, %v1855
      %v2047 = vadd.f32 %v1610, %v1857
      %v2048 = vadd.f32 %v1611, %v1859
      %v2049 = vadd.f32 %v1612, %v1861
      %v2050 = vadd.f32 %v1613, %v1864
      %v2051 = vadd.f32 %v1614, %v1866
      %v2052 = vadd.f32 %v1615, %v1868
      %v2053 = vadd.f32 %v1616, %v1870
      %v2054 = vadd.f32 %v1617, %v1873
      %v2055 = vadd.f32 %v1618, %v1875
      %v2056 = vadd.f32 %v1619, %v1877
      %v2057 = vadd.f32 %v1620, %v1879
      %v2058 = vadd.f32 %v1621, %v1882
      %v2059 = vadd.f32 %v1622, %v1884
      %v2060 = vadd.f32 %v1623, %v1886
      %v2061 = vadd.f32 %v1624, %v1888
      %v2062 = vadd.f32 %v1625, %v1891
      %v2063 = vadd.f32 %v1626, %v1893
      %v2064 = vadd.f32 %v1627, %v1895
      %v2065 = vadd.f32 %v1628, %v1897
      %v2066 = vadd.f32 %v1629, %v1900
      %v2067 = vadd.f32 %v1630, %v1902
      %v2068 = vadd.f32 %v1631, %v1904
      %v2069 = vadd.f32 %v1632, %v1906
      %v2070 = vadd.f32 %v1633, %v1909
      %v2071 = vadd.f32 %v1634, %v1911
      %v2072 = vadd.f32 %v1635, %v1913
      %v2073 = vadd.f32 %v1636, %v1915
      %v2074 = vadd.f32 %v1637, %v1918
      %v2075 = vadd.f32 %v1638, %v1920
      %v2076 = vadd.f32 %v1639, %v1922
      %v2077 = vadd.f32 %v1640, %v1924
      %v2078 = vadd.f32 %v1641, %v1927
      %v2079 = vadd.f32 %v1642, %v1929
      %v2080 = vadd.f32 %v1643, %v1931
      %v2081 = vadd.f32 %v1644, %v1933
      %v2082 = vadd.f32 %v1645, %v1936
      %v2083 = vadd.f32 %v1646, %v1938
      %v2084 = vadd.f32 %v1647, %v1940
      %v2085 = vadd.f32 %v1648, %v1942
      %v2086 = vadd.f32 %v1649, %v1945
      %v2087 = vadd.f32 %v1650, %v1947
      %v2088 = vadd.f32 %v1651, %v1949
      %v2089 = vadd.f32 %v1652, %v1951
      %v2090 = vadd.f32 %v1653, %v1954
      %v2091 = vadd.f32 %v1654, %v1956
      %v2092 = vadd.f32 %v1655, %v1958
      %v2093 = vadd.f32 %v1656, %v1960
      %v2094 = vadd.f32 %v1657, %v1963
      %v2095 = vadd.f32 %v1658, %v1965
      %v2096 = vadd.f32 %v1659, %v1967
      %v2097 = vadd.f32 %v1660, %v1969
      %v2098 = vlaneseq
      %v2099 = vshrl.u32 %v2098, 7
      %v2100 = vsub.s32 2, %v2099
      %v2101 = vrot.slane %v1526, %v2100
      %v2102 = vmul.f32 %v1436, %v2101
      %v2103 = vmul.f32 %v1437, %v2101
      %v2104 = vmul.f32 %v1438, %v2101
      %v2105 = vmul.f32 %v1439, %v2101
      %v2106 = vmul.f32 %v1440, %v2101
      %v2107 = vmul.f32 %v1441, %v2101
      %v2108 = vmul.f32 %v1442, %v2101
      %v2109 = vmul.f32 %v1443, %v2101
      %v2110 = vmul.f32 %v1444, %v2101
      %v2111 = vmul.f32 %v1445, %v2101
      %v2112 = vmul.f32 %v1446, %v2101
      %v2113 = vmul.f32 %v1447, %v2101
      %v2114 = vmul.f32 %v1448, %v2101
      %v2115 = vmul.f32 %v1449, %v2101
      %v2116 = vmul.f32 %v1450, %v2101
      %v2117 = vmul.f32 %v1451, %v2101
      %v2118 = vmul.f32 %v1452, %v2101
      %v2119 = vmul.f32 %v1453, %v2101
      %v2120 = vmul.f32 %v1454, %v2101
      %v2121 = vmul.f32 %v1455, %v2101
      %v2122 = vmul.f32 %v1456, %v2101
      %v2123 = vmul.f32 %v1457, %v2101
      %v2124 = vmul.f32 %v1458, %v2101
      %v2125 = vmul.f32 %v1459, %v2101
      %v2126 = vmul.f32 %v1460, %v2101
      %v2127 = vmul.f32 %v1461, %v2101
      %v2128 = vmul.f32 %v1462, %v2101
      %v2129 = vmul.f32 %v1463, %v2101
      %v2130 = vmul.f32 %v1464, %v2101
      %v2131 = vmul.f32 %v1465, %v2101
      %v2132 = vmul.f32 %v1466, %v2101
      %v2133 = vmul.f32 %v1467, %v2101
      %v2134 = vmul.f32 %v1468, %v2101
      %v2135 = vmul.f32 %v1469, %v2101
      %v2136 = vmul.f32 %v1470, %v2101
      %v2137 = vmul.f32 %v1471, %v2101
      %v2138 = vmul.f32 %v1472, %v2101
      %v2139 = vmul.f32 %v1473, %v2101
      %v2140 = vmul.f32 %v1474, %v2101
      %v2141 = vmul.f32 %v1475, %v2101
      %v2142 = vmul.f32 %v1476, %v2101
      %v2143 = vmul.f32 %v1477, %v2101
      %v2144 = vmul.f32 %v1478, %v2101
      %v2145 = vmul.f32 %v1479, %v2101
      %v2146 = vmul.f32 %v1480, %v2101
      %v2147 = vmul.f32 %v1481, %v2101
      %v2148 = vmul.f32 %v1482, %v2101
      %v2149 = vmul.f32 %v1483, %v2101
      %v2150 = vmul.f32 %v1484, %v2101
      %v2151 = vmul.f32 %v1485, %v2101
      %v2152 = vmul.f32 %v1486, %v2101
      %v2153 = vmul.f32 %v1487, %v2101
      %v2154 = vmul.f32 %v1488, %v2101
      %v2155 = vmul.f32 %v1489, %v2101
      %v2156 = vmul.f32 %v1490, %v2101
      %v2157 = vmul.f32 %v1491, %v2101
      %v2158 = vmul.f32 %v1492, %v2101
      %v2159 = vmul.f32 %v1493, %v2101
      %v2160 = vmul.f32 %v1494, %v2101
      %v2161 = vmul.f32 %v1495, %v2101
      %v2162 = vmul.f32 %v1496, %v2101
      %v2163 = vmul.f32 %v1497, %v2101
      %v2164 = vmul.f32 %v1498, %v2101
      %v2165 = vmul.f32 %v1499, %v2101
      %v2166 = vmul.f32 %v1500, %v2101
      %v2167 = vmul.f32 %v1501, %v2101
      %v2168 = vmul.f32 %v1502, %v2101
      %v2169 = vmul.f32 %v1503, %v2101
      %v2170 = vmul.f32 %v1504, %v2101
      %v2171 = vmul.f32 %v1505, %v2101
      %v2172 = vmul.f32 %v1506, %v2101
      %v2173 = vmul.f32 %v1507, %v2101
      %v2174 = vmul.f32 %v1508, %v2101
      %v2175 = vmul.f32 %v1509, %v2101
      %v2176 = vmul.f32 %v1510, %v2101
      %v2177 = vmul.f32 %v1511, %v2101
      %v2178 = vmul.f32 %v1512, %v2101
      %v2179 = vmul.f32 %v1513, %v2101
      %v2180 = vmul.f32 %v1514, %v2101
      %v2181 = vmul.f32 %v1515, %v2101
      %vm2262 = vcmask 1045504
      %v2263 = vrot.slane %v2102, 2
      %v2264 = vrot.slane %v2103, 2
      %v2265 = vsel %vm2262, %v2263, %v2264
      %v2266 = vrot.slane %v2104, 2
      %v2267 = vsel %vm2262, %v2264, %v2266
      %v2268 = vrot.slane %v2105, 2
      %v2269 = vsel %vm2262, %v2266, %v2268
      %v2270 = vrot.slane %v2106, 2
      %v2271 = vsel %vm2262, %v2268, %v2270
      %v2272 = vrot.slane %v2107, 2
      %v2273 = vrot.slane %v2108, 2
      %v2274 = vsel %vm2262, %v2272, %v2273
      %v2275 = vrot.slane %v2109, 2
      %v2276 = vsel %vm2262, %v2273, %v2275
      %v2277 = vrot.slane %v2110, 2
      %v2278 = vsel %vm2262, %v2275, %v2277
      %v2279 = vrot.slane %v2111, 2
      %v2280 = vsel %vm2262, %v2277, %v2279
      %v2281 = vrot.slane %v2112, 2
      %v2282 = vrot.slane %v2113, 2
      %v2283 = vsel %vm2262, %v2281, %v2282
      %v2284 = vrot.slane %v2114, 2
      %v2285 = vsel %vm2262, %v2282, %v2284
      %v2286 = vrot.slane %v2115, 2
      %v2287 = vsel %vm2262, %v2284, %v2286
      %v2288 = vrot.slane %v2116, 2
      %v2289 = vsel %vm2262, %v2286, %v2288
      %v2290 = vrot.slane %v2117, 2
      %v2291 = vrot.slane %v2118, 2
      %v2292 = vsel %vm2262, %v2290, %v2291
      %v2293 = vrot.slane %v2119, 2
      %v2294 = vsel %vm2262, %v2291, %v2293
      %v2295 = vrot.slane %v2120, 2
      %v2296 = vsel %vm2262, %v2293, %v2295
      %v2297 = vrot.slane %v2121, 2
      %v2298 = vsel %vm2262, %v2295, %v2297
      %v2299 = vrot.slane %v2122, 2
      %v2300 = vrot.slane %v2123, 2
      %v2301 = vsel %vm2262, %v2299, %v2300
      %v2302 = vrot.slane %v2124, 2
      %v2303 = vsel %vm2262, %v2300, %v2302
      %v2304 = vrot.slane %v2125, 2
      %v2305 = vsel %vm2262, %v2302, %v2304
      %v2306 = vrot.slane %v2126, 2
      %v2307 = vsel %vm2262, %v2304, %v2306
      %v2308 = vrot.slane %v2127, 2
      %v2309 = vrot.slane %v2128, 2
      %v2310 = vsel %vm2262, %v2308, %v2309
      %v2311 = vrot.slane %v2129, 2
      %v2312 = vsel %vm2262, %v2309, %v2311
      %v2313 = vrot.slane %v2130, 2
      %v2314 = vsel %vm2262, %v2311, %v2313
      %v2315 = vrot.slane %v2131, 2
      %v2316 = vsel %vm2262, %v2313, %v2315
      %v2317 = vrot.slane %v2132, 2
      %v2318 = vrot.slane %v2133, 2
      %v2319 = vsel %vm2262, %v2317, %v2318
      %v2320 = vrot.slane %v2134, 2
      %v2321 = vsel %vm2262, %v2318, %v2320
      %v2322 = vrot.slane %v2135, 2
      %v2323 = vsel %vm2262, %v2320, %v2322
      %v2324 = vrot.slane %v2136, 2
      %v2325 = vsel %vm2262, %v2322, %v2324
      %v2326 = vrot.slane %v2137, 2
      %v2327 = vrot.slane %v2138, 2
      %v2328 = vsel %vm2262, %v2326, %v2327
      %v2329 = vrot.slane %v2139, 2
      %v2330 = vsel %vm2262, %v2327, %v2329
      %v2331 = vrot.slane %v2140, 2
      %v2332 = vsel %vm2262, %v2329, %v2331
      %v2333 = vrot.slane %v2141, 2
      %v2334 = vsel %vm2262, %v2331, %v2333
      %v2335 = vrot.slane %v2142, 2
      %v2336 = vrot.slane %v2143, 2
      %v2337 = vsel %vm2262, %v2335, %v2336
      %v2338 = vrot.slane %v2144, 2
      %v2339 = vsel %vm2262, %v2336, %v2338
      %v2340 = vrot.slane %v2145, 2
      %v2341 = vsel %vm2262, %v2338, %v2340
      %v2342 = vrot.slane %v2146, 2
      %v2343 = vsel %vm2262, %v2340, %v2342
      %v2344 = vrot.slane %v2147, 2
      %v2345 = vrot.slane %v2148, 2
      %v2346 = vsel %vm2262, %v2344, %v2345
      %v2347 = vrot.slane %v2149, 2
      %v2348 = vsel %vm2262, %v2345, %v2347
      %v2349 = vrot.slane %v2150, 2
      %v2350 = vsel %vm2262, %v2347, %v2349
      %v2351 = vrot.slane %v2151, 2
      %v2352 = vsel %vm2262, %v2349, %v2351
      %v2353 = vrot.slane %v2152, 2
      %v2354 = vrot.slane %v2153, 2
      %v2355 = vsel %vm2262, %v2353, %v2354
      %v2356 = vrot.slane %v2154, 2
      %v2357 = vsel %vm2262, %v2354, %v2356
      %v2358 = vrot.slane %v2155, 2
      %v2359 = vsel %vm2262, %v2356, %v2358
      %v2360 = vrot.slane %v2156, 2
      %v2361 = vsel %vm2262, %v2358, %v2360
      %v2362 = vrot.slane %v2157, 2
      %v2363 = vrot.slane %v2158, 2
      %v2364 = vsel %vm2262, %v2362, %v2363
      %v2365 = vrot.slane %v2159, 2
      %v2366 = vsel %vm2262, %v2363, %v2365
      %v2367 = vrot.slane %v2160, 2
      %v2368 = vsel %vm2262, %v2365, %v2367
      %v2369 = vrot.slane %v2161, 2
      %v2370 = vsel %vm2262, %v2367, %v2369
      %v2371 = vrot.slane %v2162, 2
      %v2372 = vrot.slane %v2163, 2
      %v2373 = vsel %vm2262, %v2371, %v2372
      %v2374 = vrot.slane %v2164, 2
      %v2375 = vsel %vm2262, %v2372, %v2374
      %v2376 = vrot.slane %v2165, 2
      %v2377 = vsel %vm2262, %v2374, %v2376
      %v2378 = vrot.slane %v2166, 2
      %v2379 = vsel %vm2262, %v2376, %v2378
      %v2380 = vrot.slane %v2167, 2
      %v2381 = vrot.slane %v2168, 2
      %v2382 = vsel %vm2262, %v2380, %v2381
      %v2383 = vrot.slane %v2169, 2
      %v2384 = vsel %vm2262, %v2381, %v2383
      %v2385 = vrot.slane %v2170, 2
      %v2386 = vsel %vm2262, %v2383, %v2385
      %v2387 = vrot.slane %v2171, 2
      %v2388 = vsel %vm2262, %v2385, %v2387
      %v2389 = vrot.slane %v2172, 2
      %v2390 = vrot.slane %v2173, 2
      %v2391 = vsel %vm2262, %v2389, %v2390
      %v2392 = vrot.slane %v2174, 2
      %v2393 = vsel %vm2262, %v2390, %v2392
      %v2394 = vrot.slane %v2175, 2
      %v2395 = vsel %vm2262, %v2392, %v2394
      %v2396 = vrot.slane %v2176, 2
      %v2397 = vsel %vm2262, %v2394, %v2396
      %v2398 = vrot.slane %v2177, 2
      %v2399 = vrot.slane %v2178, 2
      %v2400 = vsel %vm2262, %v2398, %v2399
      %v2401 = vrot.slane %v2179, 2
      %v2402 = vsel %vm2262, %v2399, %v2401
      %v2403 = vrot.slane %v2180, 2
      %v2404 = vsel %vm2262, %v2401, %v2403
      %v2405 = vrot.slane %v2181, 2
      %v2406 = vsel %vm2262, %v2403, %v2405
      %v2471 = vadd.f32 %v2034, %v2265
      %v2472 = vadd.f32 %v2035, %v2267
      %v2473 = vadd.f32 %v2036, %v2269
      %v2474 = vadd.f32 %v2037, %v2271
      %v2475 = vadd.f32 %v2038, %v2274
      %v2476 = vadd.f32 %v2039, %v2276
      %v2477 = vadd.f32 %v2040, %v2278
      %v2478 = vadd.f32 %v2041, %v2280
      %v2479 = vadd.f32 %v2042, %v2283
      %v2480 = vadd.f32 %v2043, %v2285
      %v2481 = vadd.f32 %v2044, %v2287
      %v2482 = vadd.f32 %v2045, %v2289
      %v2483 = vadd.f32 %v2046, %v2292
      %v2484 = vadd.f32 %v2047, %v2294
      %v2485 = vadd.f32 %v2048, %v2296
      %v2486 = vadd.f32 %v2049, %v2298
      %v2487 = vadd.f32 %v2050, %v2301
      %v2488 = vadd.f32 %v2051, %v2303
      %v2489 = vadd.f32 %v2052, %v2305
      %v2490 = vadd.f32 %v2053, %v2307
      %v2491 = vadd.f32 %v2054, %v2310
      %v2492 = vadd.f32 %v2055, %v2312
      %v2493 = vadd.f32 %v2056, %v2314
      %v2494 = vadd.f32 %v2057, %v2316
      %v2495 = vadd.f32 %v2058, %v2319
      %v2496 = vadd.f32 %v2059, %v2321
      %v2497 = vadd.f32 %v2060, %v2323
      %v2498 = vadd.f32 %v2061, %v2325
      %v2499 = vadd.f32 %v2062, %v2328
      %v2500 = vadd.f32 %v2063, %v2330
      %v2501 = vadd.f32 %v2064, %v2332
      %v2502 = vadd.f32 %v2065, %v2334
      %v2503 = vadd.f32 %v2066, %v2337
      %v2504 = vadd.f32 %v2067, %v2339
      %v2505 = vadd.f32 %v2068, %v2341
      %v2506 = vadd.f32 %v2069, %v2343
      %v2507 = vadd.f32 %v2070, %v2346
      %v2508 = vadd.f32 %v2071, %v2348
      %v2509 = vadd.f32 %v2072, %v2350
      %v2510 = vadd.f32 %v2073, %v2352
      %v2511 = vadd.f32 %v2074, %v2355
      %v2512 = vadd.f32 %v2075, %v2357
      %v2513 = vadd.f32 %v2076, %v2359
      %v2514 = vadd.f32 %v2077, %v2361
      %v2515 = vadd.f32 %v2078, %v2364
      %v2516 = vadd.f32 %v2079, %v2366
      %v2517 = vadd.f32 %v2080, %v2368
      %v2518 = vadd.f32 %v2081, %v2370
      %v2519 = vadd.f32 %v2082, %v2373
      %v2520 = vadd.f32 %v2083, %v2375
      %v2521 = vadd.f32 %v2084, %v2377
      %v2522 = vadd.f32 %v2085, %v2379
      %v2523 = vadd.f32 %v2086, %v2382
      %v2524 = vadd.f32 %v2087, %v2384
      %v2525 = vadd.f32 %v2088, %v2386
      %v2526 = vadd.f32 %v2089, %v2388
      %v2527 = vadd.f32 %v2090, %v2391
      %v2528 = vadd.f32 %v2091, %v2393
      %v2529 = vadd.f32 %v2092, %v2395
      %v2530 = vadd.f32 %v2093, %v2397
      %v2531 = vadd.f32 %v2094, %v2400
      %v2532 = vadd.f32 %v2095, %v2402
      %v2533 = vadd.f32 %v2096, %v2404
      %v2534 = vadd.f32 %v2097, %v2406
      %v2535 = vlaneseq
      %v2536 = vshrl.u32 %v2535, 7
      %v2537 = vsub.s32 0, %v2536
      %v2538 = vrot.slane %v1527, %v2537
      %v2539 = vmul.f32 %v1441, %v2538
      %v2540 = vmul.f32 %v1442, %v2538
      %v2541 = vmul.f32 %v1443, %v2538
      %v2542 = vmul.f32 %v1444, %v2538
      %v2543 = vmul.f32 %v1446, %v2538
      %v2544 = vmul.f32 %v1447, %v2538
      %v2545 = vmul.f32 %v1448, %v2538
      %v2546 = vmul.f32 %v1449, %v2538
      %v2547 = vmul.f32 %v1451, %v2538
      %v2548 = vmul.f32 %v1452, %v2538
      %v2549 = vmul.f32 %v1453, %v2538
      %v2550 = vmul.f32 %v1454, %v2538
      %v2551 = vmul.f32 %v1456, %v2538
      %v2552 = vmul.f32 %v1457, %v2538
      %v2553 = vmul.f32 %v1458, %v2538
      %v2554 = vmul.f32 %v1459, %v2538
      %v2555 = vmul.f32 %v1461, %v2538
      %v2556 = vmul.f32 %v1462, %v2538
      %v2557 = vmul.f32 %v1463, %v2538
      %v2558 = vmul.f32 %v1464, %v2538
      %v2559 = vmul.f32 %v1466, %v2538
      %v2560 = vmul.f32 %v1467, %v2538
      %v2561 = vmul.f32 %v1468, %v2538
      %v2562 = vmul.f32 %v1469, %v2538
      %v2563 = vmul.f32 %v1471, %v2538
      %v2564 = vmul.f32 %v1472, %v2538
      %v2565 = vmul.f32 %v1473, %v2538
      %v2566 = vmul.f32 %v1474, %v2538
      %v2567 = vmul.f32 %v1476, %v2538
      %v2568 = vmul.f32 %v1477, %v2538
      %v2569 = vmul.f32 %v1478, %v2538
      %v2570 = vmul.f32 %v1479, %v2538
      %v2571 = vmul.f32 %v1481, %v2538
      %v2572 = vmul.f32 %v1482, %v2538
      %v2573 = vmul.f32 %v1483, %v2538
      %v2574 = vmul.f32 %v1484, %v2538
      %v2575 = vmul.f32 %v1486, %v2538
      %v2576 = vmul.f32 %v1487, %v2538
      %v2577 = vmul.f32 %v1488, %v2538
      %v2578 = vmul.f32 %v1489, %v2538
      %v2579 = vmul.f32 %v1491, %v2538
      %v2580 = vmul.f32 %v1492, %v2538
      %v2581 = vmul.f32 %v1493, %v2538
      %v2582 = vmul.f32 %v1494, %v2538
      %v2583 = vmul.f32 %v1496, %v2538
      %v2584 = vmul.f32 %v1497, %v2538
      %v2585 = vmul.f32 %v1498, %v2538
      %v2586 = vmul.f32 %v1499, %v2538
      %v2587 = vmul.f32 %v1501, %v2538
      %v2588 = vmul.f32 %v1502, %v2538
      %v2589 = vmul.f32 %v1503, %v2538
      %v2590 = vmul.f32 %v1504, %v2538
      %v2591 = vmul.f32 %v1506, %v2538
      %v2592 = vmul.f32 %v1507, %v2538
      %v2593 = vmul.f32 %v1508, %v2538
      %v2594 = vmul.f32 %v1509, %v2538
      %v2595 = vmul.f32 %v1511, %v2538
      %v2596 = vmul.f32 %v1512, %v2538
      %v2597 = vmul.f32 %v1513, %v2538
      %v2598 = vmul.f32 %v1514, %v2538
      %v2599 = vmul.f32 %v1516, %v2538
      %v2600 = vmul.f32 %v1517, %v2538
      %v2601 = vmul.f32 %v1518, %v2538
      %v2602 = vmul.f32 %v1519, %v2538
      %v2603 = vadd.f32 %v2471, %v2539
      %v2604 = vadd.f32 %v2472, %v2540
      %v2605 = vadd.f32 %v2473, %v2541
      %v2606 = vadd.f32 %v2474, %v2542
      %v2607 = vadd.f32 %v2475, %v2543
      %v2608 = vadd.f32 %v2476, %v2544
      %v2609 = vadd.f32 %v2477, %v2545
      %v2610 = vadd.f32 %v2478, %v2546
      %v2611 = vadd.f32 %v2479, %v2547
      %v2612 = vadd.f32 %v2480, %v2548
      %v2613 = vadd.f32 %v2481, %v2549
      %v2614 = vadd.f32 %v2482, %v2550
      %v2615 = vadd.f32 %v2483, %v2551
      %v2616 = vadd.f32 %v2484, %v2552
      %v2617 = vadd.f32 %v2485, %v2553
      %v2618 = vadd.f32 %v2486, %v2554
      %v2619 = vadd.f32 %v2487, %v2555
      %v2620 = vadd.f32 %v2488, %v2556
      %v2621 = vadd.f32 %v2489, %v2557
      %v2622 = vadd.f32 %v2490, %v2558
      %v2623 = vadd.f32 %v2491, %v2559
      %v2624 = vadd.f32 %v2492, %v2560
      %v2625 = vadd.f32 %v2493, %v2561
      %v2626 = vadd.f32 %v2494, %v2562
      %v2627 = vadd.f32 %v2495, %v2563
      %v2628 = vadd.f32 %v2496, %v2564
      %v2629 = vadd.f32 %v2497, %v2565
      %v2630 = vadd.f32 %v2498, %v2566
      %v2631 = vadd.f32 %v2499, %v2567
      %v2632 = vadd.f32 %v2500, %v2568
      %v2633 = vadd.f32 %v2501, %v2569
      %v2634 = vadd.f32 %v2502, %v2570
      %v2635 = vadd.f32 %v2503, %v2571
      %v2636 = vadd.f32 %v2504, %v2572
      %v2637 = vadd.f32 %v2505, %v2573
      %v2638 = vadd.f32 %v2506, %v2574
      %v2639 = vadd.f32 %v2507, %v2575
      %v2640 = vadd.f32 %v2508, %v2576
      %v2641 = vadd.f32 %v2509, %v2577
      %v2642 = vadd.f32 %v2510, %v2578
      %v2643 = vadd.f32 %v2511, %v2579
      %v2644 = vadd.f32 %v2512, %v2580
      %v2645 = vadd.f32 %v2513, %v2581
      %v2646 = vadd.f32 %v2514, %v2582
      %v2647 = vadd.f32 %v2515, %v2583
      %v2648 = vadd.f32 %v2516, %v2584
      %v2649 = vadd.f32 %v2517, %v2585
      %v2650 = vadd.f32 %v2518, %v2586
      %v2651 = vadd.f32 %v2519, %v2587
      %v2652 = vadd.f32 %v2520, %v2588
      %v2653 = vadd.f32 %v2521, %v2589
      %v2654 = vadd.f32 %v2522, %v2590
      %v2655 = vadd.f32 %v2523, %v2591
      %v2656 = vadd.f32 %v2524, %v2592
      %v2657 = vadd.f32 %v2525, %v2593
      %v2658 = vadd.f32 %v2526, %v2594
      %v2659 = vadd.f32 %v2527, %v2595
      %v2660 = vadd.f32 %v2528, %v2596
      %v2661 = vadd.f32 %v2529, %v2597
      %v2662 = vadd.f32 %v2530, %v2598
      %v2663 = vadd.f32 %v2531, %v2599
      %v2664 = vadd.f32 %v2532, %v2600
      %v2665 = vadd.f32 %v2533, %v2601
      %v2666 = vadd.f32 %v2534, %v2602
      %v2667 = vlaneseq
      %v2668 = vshrl.u32 %v2667, 7
      %v2669 = vsub.s32 1, %v2668
      %v2670 = vrot.slane %v1527, %v2669
      %v2671 = vmul.f32 %v1441, %v2670
      %v2672 = vmul.f32 %v1442, %v2670
      %v2673 = vmul.f32 %v1443, %v2670
      %v2674 = vmul.f32 %v1444, %v2670
      %v2675 = vmul.f32 %v1445, %v2670
      %v2676 = vmul.f32 %v1446, %v2670
      %v2677 = vmul.f32 %v1447, %v2670
      %v2678 = vmul.f32 %v1448, %v2670
      %v2679 = vmul.f32 %v1449, %v2670
      %v2680 = vmul.f32 %v1450, %v2670
      %v2681 = vmul.f32 %v1451, %v2670
      %v2682 = vmul.f32 %v1452, %v2670
      %v2683 = vmul.f32 %v1453, %v2670
      %v2684 = vmul.f32 %v1454, %v2670
      %v2685 = vmul.f32 %v1455, %v2670
      %v2686 = vmul.f32 %v1456, %v2670
      %v2687 = vmul.f32 %v1457, %v2670
      %v2688 = vmul.f32 %v1458, %v2670
      %v2689 = vmul.f32 %v1459, %v2670
      %v2690 = vmul.f32 %v1460, %v2670
      %v2691 = vmul.f32 %v1461, %v2670
      %v2692 = vmul.f32 %v1462, %v2670
      %v2693 = vmul.f32 %v1463, %v2670
      %v2694 = vmul.f32 %v1464, %v2670
      %v2695 = vmul.f32 %v1465, %v2670
      %v2696 = vmul.f32 %v1466, %v2670
      %v2697 = vmul.f32 %v1467, %v2670
      %v2698 = vmul.f32 %v1468, %v2670
      %v2699 = vmul.f32 %v1469, %v2670
      %v2700 = vmul.f32 %v1470, %v2670
      %v2701 = vmul.f32 %v1471, %v2670
      %v2702 = vmul.f32 %v1472, %v2670
      %v2703 = vmul.f32 %v1473, %v2670
      %v2704 = vmul.f32 %v1474, %v2670
      %v2705 = vmul.f32 %v1475, %v2670
      %v2706 = vmul.f32 %v1476, %v2670
      %v2707 = vmul.f32 %v1477, %v2670
      %v2708 = vmul.f32 %v1478, %v2670
      %v2709 = vmul.f32 %v1479, %v2670
      %v2710 = vmul.f32 %v1480, %v2670
      %v2711 = vmul.f32 %v1481, %v2670
      %v2712 = vmul.f32 %v1482, %v2670
      %v2713 = vmul.f32 %v1483, %v2670
      %v2714 = vmul.f32 %v1484, %v2670
      %v2715 = vmul.f32 %v1485, %v2670
      %v2716 = vmul.f32 %v1486, %v2670
      %v2717 = vmul.f32 %v1487, %v2670
      %v2718 = vmul.f32 %v1488, %v2670
      %v2719 = vmul.f32 %v1489, %v2670
      %v2720 = vmul.f32 %v1490, %v2670
      %v2721 = vmul.f32 %v1491, %v2670
      %v2722 = vmul.f32 %v1492, %v2670
      %v2723 = vmul.f32 %v1493, %v2670
      %v2724 = vmul.f32 %v1494, %v2670
      %v2725 = vmul.f32 %v1495, %v2670
      %v2726 = vmul.f32 %v1496, %v2670
      %v2727 = vmul.f32 %v1497, %v2670
      %v2728 = vmul.f32 %v1498, %v2670
      %v2729 = vmul.f32 %v1499, %v2670
      %v2730 = vmul.f32 %v1500, %v2670
      %v2731 = vmul.f32 %v1501, %v2670
      %v2732 = vmul.f32 %v1502, %v2670
      %v2733 = vmul.f32 %v1503, %v2670
      %v2734 = vmul.f32 %v1504, %v2670
      %v2735 = vmul.f32 %v1505, %v2670
      %v2736 = vmul.f32 %v1506, %v2670
      %v2737 = vmul.f32 %v1507, %v2670
      %v2738 = vmul.f32 %v1508, %v2670
      %v2739 = vmul.f32 %v1509, %v2670
      %v2740 = vmul.f32 %v1510, %v2670
      %v2741 = vmul.f32 %v1511, %v2670
      %v2742 = vmul.f32 %v1512, %v2670
      %v2743 = vmul.f32 %v1513, %v2670
      %v2744 = vmul.f32 %v1514, %v2670
      %v2745 = vmul.f32 %v1515, %v2670
      %v2746 = vmul.f32 %v1516, %v2670
      %v2747 = vmul.f32 %v1517, %v2670
      %v2748 = vmul.f32 %v1518, %v2670
      %v2749 = vmul.f32 %v1519, %v2670
      %v2750 = vmul.f32 %v1520, %v2670
      %v2831 = vrot.slane %v2671, 1
      %v2832 = vrot.slane %v2672, 1
      %v2833 = vsel %vm1825, %v2831, %v2832
      %v2834 = vrot.slane %v2673, 1
      %v2835 = vsel %vm1825, %v2832, %v2834
      %v2836 = vrot.slane %v2674, 1
      %v2837 = vsel %vm1825, %v2834, %v2836
      %v2838 = vrot.slane %v2675, 1
      %v2839 = vsel %vm1825, %v2836, %v2838
      %v2840 = vrot.slane %v2676, 1
      %v2841 = vrot.slane %v2677, 1
      %v2842 = vsel %vm1825, %v2840, %v2841
      %v2843 = vrot.slane %v2678, 1
      %v2844 = vsel %vm1825, %v2841, %v2843
      %v2845 = vrot.slane %v2679, 1
      %v2846 = vsel %vm1825, %v2843, %v2845
      %v2847 = vrot.slane %v2680, 1
      %v2848 = vsel %vm1825, %v2845, %v2847
      %v2849 = vrot.slane %v2681, 1
      %v2850 = vrot.slane %v2682, 1
      %v2851 = vsel %vm1825, %v2849, %v2850
      %v2852 = vrot.slane %v2683, 1
      %v2853 = vsel %vm1825, %v2850, %v2852
      %v2854 = vrot.slane %v2684, 1
      %v2855 = vsel %vm1825, %v2852, %v2854
      %v2856 = vrot.slane %v2685, 1
      %v2857 = vsel %vm1825, %v2854, %v2856
      %v2858 = vrot.slane %v2686, 1
      %v2859 = vrot.slane %v2687, 1
      %v2860 = vsel %vm1825, %v2858, %v2859
      %v2861 = vrot.slane %v2688, 1
      %v2862 = vsel %vm1825, %v2859, %v2861
      %v2863 = vrot.slane %v2689, 1
      %v2864 = vsel %vm1825, %v2861, %v2863
      %v2865 = vrot.slane %v2690, 1
      %v2866 = vsel %vm1825, %v2863, %v2865
      %v2867 = vrot.slane %v2691, 1
      %v2868 = vrot.slane %v2692, 1
      %v2869 = vsel %vm1825, %v2867, %v2868
      %v2870 = vrot.slane %v2693, 1
      %v2871 = vsel %vm1825, %v2868, %v2870
      %v2872 = vrot.slane %v2694, 1
      %v2873 = vsel %vm1825, %v2870, %v2872
      %v2874 = vrot.slane %v2695, 1
      %v2875 = vsel %vm1825, %v2872, %v2874
      %v2876 = vrot.slane %v2696, 1
      %v2877 = vrot.slane %v2697, 1
      %v2878 = vsel %vm1825, %v2876, %v2877
      %v2879 = vrot.slane %v2698, 1
      %v2880 = vsel %vm1825, %v2877, %v2879
      %v2881 = vrot.slane %v2699, 1
      %v2882 = vsel %vm1825, %v2879, %v2881
      %v2883 = vrot.slane %v2700, 1
      %v2884 = vsel %vm1825, %v2881, %v2883
      %v2885 = vrot.slane %v2701, 1
      %v2886 = vrot.slane %v2702, 1
      %v2887 = vsel %vm1825, %v2885, %v2886
      %v2888 = vrot.slane %v2703, 1
      %v2889 = vsel %vm1825, %v2886, %v2888
      %v2890 = vrot.slane %v2704, 1
      %v2891 = vsel %vm1825, %v2888, %v2890
      %v2892 = vrot.slane %v2705, 1
      %v2893 = vsel %vm1825, %v2890, %v2892
      %v2894 = vrot.slane %v2706, 1
      %v2895 = vrot.slane %v2707, 1
      %v2896 = vsel %vm1825, %v2894, %v2895
      %v2897 = vrot.slane %v2708, 1
      %v2898 = vsel %vm1825, %v2895, %v2897
      %v2899 = vrot.slane %v2709, 1
      %v2900 = vsel %vm1825, %v2897, %v2899
      %v2901 = vrot.slane %v2710, 1
      %v2902 = vsel %vm1825, %v2899, %v2901
      %v2903 = vrot.slane %v2711, 1
      %v2904 = vrot.slane %v2712, 1
      %v2905 = vsel %vm1825, %v2903, %v2904
      %v2906 = vrot.slane %v2713, 1
      %v2907 = vsel %vm1825, %v2904, %v2906
      %v2908 = vrot.slane %v2714, 1
      %v2909 = vsel %vm1825, %v2906, %v2908
      %v2910 = vrot.slane %v2715, 1
      %v2911 = vsel %vm1825, %v2908, %v2910
      %v2912 = vrot.slane %v2716, 1
      %v2913 = vrot.slane %v2717, 1
      %v2914 = vsel %vm1825, %v2912, %v2913
      %v2915 = vrot.slane %v2718, 1
      %v2916 = vsel %vm1825, %v2913, %v2915
      %v2917 = vrot.slane %v2719, 1
      %v2918 = vsel %vm1825, %v2915, %v2917
      %v2919 = vrot.slane %v2720, 1
      %v2920 = vsel %vm1825, %v2917, %v2919
      %v2921 = vrot.slane %v2721, 1
      %v2922 = vrot.slane %v2722, 1
      %v2923 = vsel %vm1825, %v2921, %v2922
      %v2924 = vrot.slane %v2723, 1
      %v2925 = vsel %vm1825, %v2922, %v2924
      %v2926 = vrot.slane %v2724, 1
      %v2927 = vsel %vm1825, %v2924, %v2926
      %v2928 = vrot.slane %v2725, 1
      %v2929 = vsel %vm1825, %v2926, %v2928
      %v2930 = vrot.slane %v2726, 1
      %v2931 = vrot.slane %v2727, 1
      %v2932 = vsel %vm1825, %v2930, %v2931
      %v2933 = vrot.slane %v2728, 1
      %v2934 = vsel %vm1825, %v2931, %v2933
      %v2935 = vrot.slane %v2729, 1
      %v2936 = vsel %vm1825, %v2933, %v2935
      %v2937 = vrot.slane %v2730, 1
      %v2938 = vsel %vm1825, %v2935, %v2937
      %v2939 = vrot.slane %v2731, 1
      %v2940 = vrot.slane %v2732, 1
      %v2941 = vsel %vm1825, %v2939, %v2940
      %v2942 = vrot.slane %v2733, 1
      %v2943 = vsel %vm1825, %v2940, %v2942
      %v2944 = vrot.slane %v2734, 1
      %v2945 = vsel %vm1825, %v2942, %v2944
      %v2946 = vrot.slane %v2735, 1
      %v2947 = vsel %vm1825, %v2944, %v2946
      %v2948 = vrot.slane %v2736, 1
      %v2949 = vrot.slane %v2737, 1
      %v2950 = vsel %vm1825, %v2948, %v2949
      %v2951 = vrot.slane %v2738, 1
      %v2952 = vsel %vm1825, %v2949, %v2951
      %v2953 = vrot.slane %v2739, 1
      %v2954 = vsel %vm1825, %v2951, %v2953
      %v2955 = vrot.slane %v2740, 1
      %v2956 = vsel %vm1825, %v2953, %v2955
      %v2957 = vrot.slane %v2741, 1
      %v2958 = vrot.slane %v2742, 1
      %v2959 = vsel %vm1825, %v2957, %v2958
      %v2960 = vrot.slane %v2743, 1
      %v2961 = vsel %vm1825, %v2958, %v2960
      %v2962 = vrot.slane %v2744, 1
      %v2963 = vsel %vm1825, %v2960, %v2962
      %v2964 = vrot.slane %v2745, 1
      %v2965 = vsel %vm1825, %v2962, %v2964
      %v2966 = vrot.slane %v2746, 1
      %v2967 = vrot.slane %v2747, 1
      %v2968 = vsel %vm1825, %v2966, %v2967
      %v2969 = vrot.slane %v2748, 1
      %v2970 = vsel %vm1825, %v2967, %v2969
      %v2971 = vrot.slane %v2749, 1
      %v2972 = vsel %vm1825, %v2969, %v2971
      %v2973 = vrot.slane %v2750, 1
      %v2974 = vsel %vm1825, %v2971, %v2973
      %v3039 = vadd.f32 %v2603, %v2833
      %v3040 = vadd.f32 %v2604, %v2835
      %v3041 = vadd.f32 %v2605, %v2837
      %v3042 = vadd.f32 %v2606, %v2839
      %v3043 = vadd.f32 %v2607, %v2842
      %v3044 = vadd.f32 %v2608, %v2844
      %v3045 = vadd.f32 %v2609, %v2846
      %v3046 = vadd.f32 %v2610, %v2848
      %v3047 = vadd.f32 %v2611, %v2851
      %v3048 = vadd.f32 %v2612, %v2853
      %v3049 = vadd.f32 %v2613, %v2855
      %v3050 = vadd.f32 %v2614, %v2857
      %v3051 = vadd.f32 %v2615, %v2860
      %v3052 = vadd.f32 %v2616, %v2862
      %v3053 = vadd.f32 %v2617, %v2864
      %v3054 = vadd.f32 %v2618, %v2866
      %v3055 = vadd.f32 %v2619, %v2869
      %v3056 = vadd.f32 %v2620, %v2871
      %v3057 = vadd.f32 %v2621, %v2873
      %v3058 = vadd.f32 %v2622, %v2875
      %v3059 = vadd.f32 %v2623, %v2878
      %v3060 = vadd.f32 %v2624, %v2880
      %v3061 = vadd.f32 %v2625, %v2882
      %v3062 = vadd.f32 %v2626, %v2884
      %v3063 = vadd.f32 %v2627, %v2887
      %v3064 = vadd.f32 %v2628, %v2889
      %v3065 = vadd.f32 %v2629, %v2891
      %v3066 = vadd.f32 %v2630, %v2893
      %v3067 = vadd.f32 %v2631, %v2896
      %v3068 = vadd.f32 %v2632, %v2898
      %v3069 = vadd.f32 %v2633, %v2900
      %v3070 = vadd.f32 %v2634, %v2902
      %v3071 = vadd.f32 %v2635, %v2905
      %v3072 = vadd.f32 %v2636, %v2907
      %v3073 = vadd.f32 %v2637, %v2909
      %v3074 = vadd.f32 %v2638, %v2911
      %v3075 = vadd.f32 %v2639, %v2914
      %v3076 = vadd.f32 %v2640, %v2916
      %v3077 = vadd.f32 %v2641, %v2918
      %v3078 = vadd.f32 %v2642, %v2920
      %v3079 = vadd.f32 %v2643, %v2923
      %v3080 = vadd.f32 %v2644, %v2925
      %v3081 = vadd.f32 %v2645, %v2927
      %v3082 = vadd.f32 %v2646, %v2929
      %v3083 = vadd.f32 %v2647, %v2932
      %v3084 = vadd.f32 %v2648, %v2934
      %v3085 = vadd.f32 %v2649, %v2936
      %v3086 = vadd.f32 %v2650, %v2938
      %v3087 = vadd.f32 %v2651, %v2941
      %v3088 = vadd.f32 %v2652, %v2943
      %v3089 = vadd.f32 %v2653, %v2945
      %v3090 = vadd.f32 %v2654, %v2947
      %v3091 = vadd.f32 %v2655, %v2950
      %v3092 = vadd.f32 %v2656, %v2952
      %v3093 = vadd.f32 %v2657, %v2954
      %v3094 = vadd.f32 %v2658, %v2956
      %v3095 = vadd.f32 %v2659, %v2959
      %v3096 = vadd.f32 %v2660, %v2961
      %v3097 = vadd.f32 %v2661, %v2963
      %v3098 = vadd.f32 %v2662, %v2965
      %v3099 = vadd.f32 %v2663, %v2968
      %v3100 = vadd.f32 %v2664, %v2970
      %v3101 = vadd.f32 %v2665, %v2972
      %v3102 = vadd.f32 %v2666, %v2974
      %v3103 = vlaneseq
      %v3104 = vshrl.u32 %v3103, 7
      %v3105 = vsub.s32 2, %v3104
      %v3106 = vrot.slane %v1527, %v3105
      %v3107 = vmul.f32 %v1441, %v3106
      %v3108 = vmul.f32 %v1442, %v3106
      %v3109 = vmul.f32 %v1443, %v3106
      %v3110 = vmul.f32 %v1444, %v3106
      %v3111 = vmul.f32 %v1445, %v3106
      %v3112 = vmul.f32 %v1446, %v3106
      %v3113 = vmul.f32 %v1447, %v3106
      %v3114 = vmul.f32 %v1448, %v3106
      %v3115 = vmul.f32 %v1449, %v3106
      %v3116 = vmul.f32 %v1450, %v3106
      %v3117 = vmul.f32 %v1451, %v3106
      %v3118 = vmul.f32 %v1452, %v3106
      %v3119 = vmul.f32 %v1453, %v3106
      %v3120 = vmul.f32 %v1454, %v3106
      %v3121 = vmul.f32 %v1455, %v3106
      %v3122 = vmul.f32 %v1456, %v3106
      %v3123 = vmul.f32 %v1457, %v3106
      %v3124 = vmul.f32 %v1458, %v3106
      %v3125 = vmul.f32 %v1459, %v3106
      %v3126 = vmul.f32 %v1460, %v3106
      %v3127 = vmul.f32 %v1461, %v3106
      %v3128 = vmul.f32 %v1462, %v3106
      %v3129 = vmul.f32 %v1463, %v3106
      %v3130 = vmul.f32 %v1464, %v3106
      %v3131 = vmul.f32 %v1465, %v3106
      %v3132 = vmul.f32 %v1466, %v3106
      %v3133 = vmul.f32 %v1467, %v3106
      %v3134 = vmul.f32 %v1468, %v3106
      %v3135 = vmul.f32 %v1469, %v3106
      %v3136 = vmul.f32 %v1470, %v3106
      %v3137 = vmul.f32 %v1471, %v3106
      %v3138 = vmul.f32 %v1472, %v3106
      %v3139 = vmul.f32 %v1473, %v3106
      %v3140 = vmul.f32 %v1474, %v3106
      %v3141 = vmul.f32 %v1475, %v3106
      %v3142 = vmul.f32 %v1476, %v3106
      %v3143 = vmul.f32 %v1477, %v3106
      %v3144 = vmul.f32 %v1478, %v3106
      %v3145 = vmul.f32 %v1479, %v3106
      %v3146 = vmul.f32 %v1480, %v3106
      %v3147 = vmul.f32 %v1481, %v3106
      %v3148 = vmul.f32 %v1482, %v3106
      %v3149 = vmul.f32 %v1483, %v3106
      %v3150 = vmul.f32 %v1484, %v3106
      %v3151 = vmul.f32 %v1485, %v3106
      %v3152 = vmul.f32 %v1486, %v3106
      %v3153 = vmul.f32 %v1487, %v3106
      %v3154 = vmul.f32 %v1488, %v3106
      %v3155 = vmul.f32 %v1489, %v3106
      %v3156 = vmul.f32 %v1490, %v3106
      %v3157 = vmul.f32 %v1491, %v3106
      %v3158 = vmul.f32 %v1492, %v3106
      %v3159 = vmul.f32 %v1493, %v3106
      %v3160 = vmul.f32 %v1494, %v3106
      %v3161 = vmul.f32 %v1495, %v3106
      %v3162 = vmul.f32 %v1496, %v3106
      %v3163 = vmul.f32 %v1497, %v3106
      %v3164 = vmul.f32 %v1498, %v3106
      %v3165 = vmul.f32 %v1499, %v3106
      %v3166 = vmul.f32 %v1500, %v3106
      %v3167 = vmul.f32 %v1501, %v3106
      %v3168 = vmul.f32 %v1502, %v3106
      %v3169 = vmul.f32 %v1503, %v3106
      %v3170 = vmul.f32 %v1504, %v3106
      %v3171 = vmul.f32 %v1505, %v3106
      %v3172 = vmul.f32 %v1506, %v3106
      %v3173 = vmul.f32 %v1507, %v3106
      %v3174 = vmul.f32 %v1508, %v3106
      %v3175 = vmul.f32 %v1509, %v3106
      %v3176 = vmul.f32 %v1510, %v3106
      %v3177 = vmul.f32 %v1511, %v3106
      %v3178 = vmul.f32 %v1512, %v3106
      %v3179 = vmul.f32 %v1513, %v3106
      %v3180 = vmul.f32 %v1514, %v3106
      %v3181 = vmul.f32 %v1515, %v3106
      %v3182 = vmul.f32 %v1516, %v3106
      %v3183 = vmul.f32 %v1517, %v3106
      %v3184 = vmul.f32 %v1518, %v3106
      %v3185 = vmul.f32 %v1519, %v3106
      %v3186 = vmul.f32 %v1520, %v3106
      %v3267 = vrot.slane %v3107, 2
      %v3268 = vrot.slane %v3108, 2
      %v3269 = vsel %vm2262, %v3267, %v3268
      %v3270 = vrot.slane %v3109, 2
      %v3271 = vsel %vm2262, %v3268, %v3270
      %v3272 = vrot.slane %v3110, 2
      %v3273 = vsel %vm2262, %v3270, %v3272
      %v3274 = vrot.slane %v3111, 2
      %v3275 = vsel %vm2262, %v3272, %v3274
      %v3276 = vrot.slane %v3112, 2
      %v3277 = vrot.slane %v3113, 2
      %v3278 = vsel %vm2262, %v3276, %v3277
      %v3279 = vrot.slane %v3114, 2
      %v3280 = vsel %vm2262, %v3277, %v3279
      %v3281 = vrot.slane %v3115, 2
      %v3282 = vsel %vm2262, %v3279, %v3281
      %v3283 = vrot.slane %v3116, 2
      %v3284 = vsel %vm2262, %v3281, %v3283
      %v3285 = vrot.slane %v3117, 2
      %v3286 = vrot.slane %v3118, 2
      %v3287 = vsel %vm2262, %v3285, %v3286
      %v3288 = vrot.slane %v3119, 2
      %v3289 = vsel %vm2262, %v3286, %v3288
      %v3290 = vrot.slane %v3120, 2
      %v3291 = vsel %vm2262, %v3288, %v3290
      %v3292 = vrot.slane %v3121, 2
      %v3293 = vsel %vm2262, %v3290, %v3292
      %v3294 = vrot.slane %v3122, 2
      %v3295 = vrot.slane %v3123, 2
      %v3296 = vsel %vm2262, %v3294, %v3295
      %v3297 = vrot.slane %v3124, 2
      %v3298 = vsel %vm2262, %v3295, %v3297
      %v3299 = vrot.slane %v3125, 2
      %v3300 = vsel %vm2262, %v3297, %v3299
      %v3301 = vrot.slane %v3126, 2
      %v3302 = vsel %vm2262, %v3299, %v3301
      %v3303 = vrot.slane %v3127, 2
      %v3304 = vrot.slane %v3128, 2
      %v3305 = vsel %vm2262, %v3303, %v3304
      %v3306 = vrot.slane %v3129, 2
      %v3307 = vsel %vm2262, %v3304, %v3306
      %v3308 = vrot.slane %v3130, 2
      %v3309 = vsel %vm2262, %v3306, %v3308
      %v3310 = vrot.slane %v3131, 2
      %v3311 = vsel %vm2262, %v3308, %v3310
      %v3312 = vrot.slane %v3132, 2
      %v3313 = vrot.slane %v3133, 2
      %v3314 = vsel %vm2262, %v3312, %v3313
      %v3315 = vrot.slane %v3134, 2
      %v3316 = vsel %vm2262, %v3313, %v3315
      %v3317 = vrot.slane %v3135, 2
      %v3318 = vsel %vm2262, %v3315, %v3317
      %v3319 = vrot.slane %v3136, 2
      %v3320 = vsel %vm2262, %v3317, %v3319
      %v3321 = vrot.slane %v3137, 2
      %v3322 = vrot.slane %v3138, 2
      %v3323 = vsel %vm2262, %v3321, %v3322
      %v3324 = vrot.slane %v3139, 2
      %v3325 = vsel %vm2262, %v3322, %v3324
      %v3326 = vrot.slane %v3140, 2
      %v3327 = vsel %vm2262, %v3324, %v3326
      %v3328 = vrot.slane %v3141, 2
      %v3329 = vsel %vm2262, %v3326, %v3328
      %v3330 = vrot.slane %v3142, 2
      %v3331 = vrot.slane %v3143, 2
      %v3332 = vsel %vm2262, %v3330, %v3331
      %v3333 = vrot.slane %v3144, 2
      %v3334 = vsel %vm2262, %v3331, %v3333
      %v3335 = vrot.slane %v3145, 2
      %v3336 = vsel %vm2262, %v3333, %v3335
      %v3337 = vrot.slane %v3146, 2
      %v3338 = vsel %vm2262, %v3335, %v3337
      %v3339 = vrot.slane %v3147, 2
      %v3340 = vrot.slane %v3148, 2
      %v3341 = vsel %vm2262, %v3339, %v3340
      %v3342 = vrot.slane %v3149, 2
      %v3343 = vsel %vm2262, %v3340, %v3342
      %v3344 = vrot.slane %v3150, 2
      %v3345 = vsel %vm2262, %v3342, %v3344
      %v3346 = vrot.slane %v3151, 2
      %v3347 = vsel %vm2262, %v3344, %v3346
      %v3348 = vrot.slane %v3152, 2
      %v3349 = vrot.slane %v3153, 2
      %v3350 = vsel %vm2262, %v3348, %v3349
      %v3351 = vrot.slane %v3154, 2
      %v3352 = vsel %vm2262, %v3349, %v3351
      %v3353 = vrot.slane %v3155, 2
      %v3354 = vsel %vm2262, %v3351, %v3353
      %v3355 = vrot.slane %v3156, 2
      %v3356 = vsel %vm2262, %v3353, %v3355
      %v3357 = vrot.slane %v3157, 2
      %v3358 = vrot.slane %v3158, 2
      %v3359 = vsel %vm2262, %v3357, %v3358
      %v3360 = vrot.slane %v3159, 2
      %v3361 = vsel %vm2262, %v3358, %v3360
      %v3362 = vrot.slane %v3160, 2
      %v3363 = vsel %vm2262, %v3360, %v3362
      %v3364 = vrot.slane %v3161, 2
      %v3365 = vsel %vm2262, %v3362, %v3364
      %v3366 = vrot.slane %v3162, 2
      %v3367 = vrot.slane %v3163, 2
      %v3368 = vsel %vm2262, %v3366, %v3367
      %v3369 = vrot.slane %v3164, 2
      %v3370 = vsel %vm2262, %v3367, %v3369
      %v3371 = vrot.slane %v3165, 2
      %v3372 = vsel %vm2262, %v3369, %v3371
      %v3373 = vrot.slane %v3166, 2
      %v3374 = vsel %vm2262, %v3371, %v3373
      %v3375 = vrot.slane %v3167, 2
      %v3376 = vrot.slane %v3168, 2
      %v3377 = vsel %vm2262, %v3375, %v3376
      %v3378 = vrot.slane %v3169, 2
      %v3379 = vsel %vm2262, %v3376, %v3378
      %v3380 = vrot.slane %v3170, 2
      %v3381 = vsel %vm2262, %v3378, %v3380
      %v3382 = vrot.slane %v3171, 2
      %v3383 = vsel %vm2262, %v3380, %v3382
      %v3384 = vrot.slane %v3172, 2
      %v3385 = vrot.slane %v3173, 2
      %v3386 = vsel %vm2262, %v3384, %v3385
      %v3387 = vrot.slane %v3174, 2
      %v3388 = vsel %vm2262, %v3385, %v3387
      %v3389 = vrot.slane %v3175, 2
      %v3390 = vsel %vm2262, %v3387, %v3389
      %v3391 = vrot.slane %v3176, 2
      %v3392 = vsel %vm2262, %v3389, %v3391
      %v3393 = vrot.slane %v3177, 2
      %v3394 = vrot.slane %v3178, 2
      %v3395 = vsel %vm2262, %v3393, %v3394
      %v3396 = vrot.slane %v3179, 2
      %v3397 = vsel %vm2262, %v3394, %v3396
      %v3398 = vrot.slane %v3180, 2
      %v3399 = vsel %vm2262, %v3396, %v3398
      %v3400 = vrot.slane %v3181, 2
      %v3401 = vsel %vm2262, %v3398, %v3400
      %v3402 = vrot.slane %v3182, 2
      %v3403 = vrot.slane %v3183, 2
      %v3404 = vsel %vm2262, %v3402, %v3403
      %v3405 = vrot.slane %v3184, 2
      %v3406 = vsel %vm2262, %v3403, %v3405
      %v3407 = vrot.slane %v3185, 2
      %v3408 = vsel %vm2262, %v3405, %v3407
      %v3409 = vrot.slane %v3186, 2
      %v3410 = vsel %vm2262, %v3407, %v3409
      %v3475 = vadd.f32 %v3039, %v3269
      %v3476 = vadd.f32 %v3040, %v3271
      %v3477 = vadd.f32 %v3041, %v3273
      %v3478 = vadd.f32 %v3042, %v3275
      %v3479 = vadd.f32 %v3043, %v3278
      %v3480 = vadd.f32 %v3044, %v3280
      %v3481 = vadd.f32 %v3045, %v3282
      %v3482 = vadd.f32 %v3046, %v3284
      %v3483 = vadd.f32 %v3047, %v3287
      %v3484 = vadd.f32 %v3048, %v3289
      %v3485 = vadd.f32 %v3049, %v3291
      %v3486 = vadd.f32 %v3050, %v3293
      %v3487 = vadd.f32 %v3051, %v3296
      %v3488 = vadd.f32 %v3052, %v3298
      %v3489 = vadd.f32 %v3053, %v3300
      %v3490 = vadd.f32 %v3054, %v3302
      %v3491 = vadd.f32 %v3055, %v3305
      %v3492 = vadd.f32 %v3056, %v3307
      %v3493 = vadd.f32 %v3057, %v3309
      %v3494 = vadd.f32 %v3058, %v3311
      %v3495 = vadd.f32 %v3059, %v3314
      %v3496 = vadd.f32 %v3060, %v3316
      %v3497 = vadd.f32 %v3061, %v3318
      %v3498 = vadd.f32 %v3062, %v3320
      %v3499 = vadd.f32 %v3063, %v3323
      %v3500 = vadd.f32 %v3064, %v3325
      %v3501 = vadd.f32 %v3065, %v3327
      %v3502 = vadd.f32 %v3066, %v3329
      %v3503 = vadd.f32 %v3067, %v3332
      %v3504 = vadd.f32 %v3068, %v3334
      %v3505 = vadd.f32 %v3069, %v3336
      %v3506 = vadd.f32 %v3070, %v3338
      %v3507 = vadd.f32 %v3071, %v3341
      %v3508 = vadd.f32 %v3072, %v3343
      %v3509 = vadd.f32 %v3073, %v3345
      %v3510 = vadd.f32 %v3074, %v3347
      %v3511 = vadd.f32 %v3075, %v3350
      %v3512 = vadd.f32 %v3076, %v3352
      %v3513 = vadd.f32 %v3077, %v3354
      %v3514 = vadd.f32 %v3078, %v3356
      %v3515 = vadd.f32 %v3079, %v3359
      %v3516 = vadd.f32 %v3080, %v3361
      %v3517 = vadd.f32 %v3081, %v3363
      %v3518 = vadd.f32 %v3082, %v3365
      %v3519 = vadd.f32 %v3083, %v3368
      %v3520 = vadd.f32 %v3084, %v3370
      %v3521 = vadd.f32 %v3085, %v3372
      %v3522 = vadd.f32 %v3086, %v3374
      %v3523 = vadd.f32 %v3087, %v3377
      %v3524 = vadd.f32 %v3088, %v3379
      %v3525 = vadd.f32 %v3089, %v3381
      %v3526 = vadd.f32 %v3090, %v3383
      %v3527 = vadd.f32 %v3091, %v3386
      %v3528 = vadd.f32 %v3092, %v3388
      %v3529 = vadd.f32 %v3093, %v3390
      %v3530 = vadd.f32 %v3094, %v3392
      %v3531 = vadd.f32 %v3095, %v3395
      %v3532 = vadd.f32 %v3096, %v3397
      %v3533 = vadd.f32 %v3097, %v3399
      %v3534 = vadd.f32 %v3098, %v3401
      %v3535 = vadd.f32 %v3099, %v3404
      %v3536 = vadd.f32 %v3100, %v3406
      %v3537 = vadd.f32 %v3101, %v3408
      %v3538 = vadd.f32 %v3102, %v3410
      %v3539 = vlaneseq
      %v3540 = vshrl.u32 %v3539, 7
      %v3541 = vsub.s32 0, %v3540
      %v3542 = vrot.slane %v1528, %v3541
      %v3543 = vmul.f32 %v1446, %v3542
      %v3544 = vmul.f32 %v1447, %v3542
      %v3545 = vmul.f32 %v1448, %v3542
      %v3546 = vmul.f32 %v1449, %v3542
      %v3547 = vmul.f32 %v1451, %v3542
      %v3548 = vmul.f32 %v1452, %v3542
      %v3549 = vmul.f32 %v1453, %v3542
      %v3550 = vmul.f32 %v1454, %v3542
      %v3551 = vmul.f32 %v1456, %v3542
      %v3552 = vmul.f32 %v1457, %v3542
      %v3553 = vmul.f32 %v1458, %v3542
      %v3554 = vmul.f32 %v1459, %v3542
      %v3555 = vmul.f32 %v1461, %v3542
      %v3556 = vmul.f32 %v1462, %v3542
      %v3557 = vmul.f32 %v1463, %v3542
      %v3558 = vmul.f32 %v1464, %v3542
      %v3559 = vmul.f32 %v1466, %v3542
      %v3560 = vmul.f32 %v1467, %v3542
      %v3561 = vmul.f32 %v1468, %v3542
      %v3562 = vmul.f32 %v1469, %v3542
      %v3563 = vmul.f32 %v1471, %v3542
      %v3564 = vmul.f32 %v1472, %v3542
      %v3565 = vmul.f32 %v1473, %v3542
      %v3566 = vmul.f32 %v1474, %v3542
      %v3567 = vmul.f32 %v1476, %v3542
      %v3568 = vmul.f32 %v1477, %v3542
      %v3569 = vmul.f32 %v1478, %v3542
      %v3570 = vmul.f32 %v1479, %v3542
      %v3571 = vmul.f32 %v1481, %v3542
      %v3572 = vmul.f32 %v1482, %v3542
      %v3573 = vmul.f32 %v1483, %v3542
      %v3574 = vmul.f32 %v1484, %v3542
      %v3575 = vmul.f32 %v1486, %v3542
      %v3576 = vmul.f32 %v1487, %v3542
      %v3577 = vmul.f32 %v1488, %v3542
      %v3578 = vmul.f32 %v1489, %v3542
      %v3579 = vmul.f32 %v1491, %v3542
      %v3580 = vmul.f32 %v1492, %v3542
      %v3581 = vmul.f32 %v1493, %v3542
      %v3582 = vmul.f32 %v1494, %v3542
      %v3583 = vmul.f32 %v1496, %v3542
      %v3584 = vmul.f32 %v1497, %v3542
      %v3585 = vmul.f32 %v1498, %v3542
      %v3586 = vmul.f32 %v1499, %v3542
      %v3587 = vmul.f32 %v1501, %v3542
      %v3588 = vmul.f32 %v1502, %v3542
      %v3589 = vmul.f32 %v1503, %v3542
      %v3590 = vmul.f32 %v1504, %v3542
      %v3591 = vmul.f32 %v1506, %v3542
      %v3592 = vmul.f32 %v1507, %v3542
      %v3593 = vmul.f32 %v1508, %v3542
      %v3594 = vmul.f32 %v1509, %v3542
      %v3595 = vmul.f32 %v1511, %v3542
      %v3596 = vmul.f32 %v1512, %v3542
      %v3597 = vmul.f32 %v1513, %v3542
      %v3598 = vmul.f32 %v1514, %v3542
      %v3599 = vmul.f32 %v1516, %v3542
      %v3600 = vmul.f32 %v1517, %v3542
      %v3601 = vmul.f32 %v1518, %v3542
      %v3602 = vmul.f32 %v1519, %v3542
      %v3603 = vmul.f32 %v1521, %v3542
      %v3604 = vmul.f32 %v1522, %v3542
      %v3605 = vmul.f32 %v1523, %v3542
      %v3606 = vmul.f32 %v1524, %v3542
      %v3607 = vadd.f32 %v3475, %v3543
      %v3608 = vadd.f32 %v3476, %v3544
      %v3609 = vadd.f32 %v3477, %v3545
      %v3610 = vadd.f32 %v3478, %v3546
      %v3611 = vadd.f32 %v3479, %v3547
      %v3612 = vadd.f32 %v3480, %v3548
      %v3613 = vadd.f32 %v3481, %v3549
      %v3614 = vadd.f32 %v3482, %v3550
      %v3615 = vadd.f32 %v3483, %v3551
      %v3616 = vadd.f32 %v3484, %v3552
      %v3617 = vadd.f32 %v3485, %v3553
      %v3618 = vadd.f32 %v3486, %v3554
      %v3619 = vadd.f32 %v3487, %v3555
      %v3620 = vadd.f32 %v3488, %v3556
      %v3621 = vadd.f32 %v3489, %v3557
      %v3622 = vadd.f32 %v3490, %v3558
      %v3623 = vadd.f32 %v3491, %v3559
      %v3624 = vadd.f32 %v3492, %v3560
      %v3625 = vadd.f32 %v3493, %v3561
      %v3626 = vadd.f32 %v3494, %v3562
      %v3627 = vadd.f32 %v3495, %v3563
      %v3628 = vadd.f32 %v3496, %v3564
      %v3629 = vadd.f32 %v3497, %v3565
      %v3630 = vadd.f32 %v3498, %v3566
      %v3631 = vadd.f32 %v3499, %v3567
      %v3632 = vadd.f32 %v3500, %v3568
      %v3633 = vadd.f32 %v3501, %v3569
      %v3634 = vadd.f32 %v3502, %v3570
      %v3635 = vadd.f32 %v3503, %v3571
      %v3636 = vadd.f32 %v3504, %v3572
      %v3637 = vadd.f32 %v3505, %v3573
      %v3638 = vadd.f32 %v3506, %v3574
      %v3639 = vadd.f32 %v3507, %v3575
      %v3640 = vadd.f32 %v3508, %v3576
      %v3641 = vadd.f32 %v3509, %v3577
      %v3642 = vadd.f32 %v3510, %v3578
      %v3643 = vadd.f32 %v3511, %v3579
      %v3644 = vadd.f32 %v3512, %v3580
      %v3645 = vadd.f32 %v3513, %v3581
      %v3646 = vadd.f32 %v3514, %v3582
      %v3647 = vadd.f32 %v3515, %v3583
      %v3648 = vadd.f32 %v3516, %v3584
      %v3649 = vadd.f32 %v3517, %v3585
      %v3650 = vadd.f32 %v3518, %v3586
      %v3651 = vadd.f32 %v3519, %v3587
      %v3652 = vadd.f32 %v3520, %v3588
      %v3653 = vadd.f32 %v3521, %v3589
      %v3654 = vadd.f32 %v3522, %v3590
      %v3655 = vadd.f32 %v3523, %v3591
      %v3656 = vadd.f32 %v3524, %v3592
      %v3657 = vadd.f32 %v3525, %v3593
      %v3658 = vadd.f32 %v3526, %v3594
      %v3659 = vadd.f32 %v3527, %v3595
      %v3660 = vadd.f32 %v3528, %v3596
      %v3661 = vadd.f32 %v3529, %v3597
      %v3662 = vadd.f32 %v3530, %v3598
      %v3663 = vadd.f32 %v3531, %v3599
      %v3664 = vadd.f32 %v3532, %v3600
      %v3665 = vadd.f32 %v3533, %v3601
      %v3666 = vadd.f32 %v3534, %v3602
      %v3667 = vadd.f32 %v3535, %v3603
      %v3668 = vadd.f32 %v3536, %v3604
      %v3669 = vadd.f32 %v3537, %v3605
      %v3670 = vadd.f32 %v3538, %v3606
      %v3671 = vlaneseq
      %v3672 = vshrl.u32 %v3671, 7
      %v3673 = vsub.s32 1, %v3672
      %v3674 = vrot.slane %v1528, %v3673
      %v3675 = vmul.f32 %v1446, %v3674
      %v3676 = vmul.f32 %v1447, %v3674
      %v3677 = vmul.f32 %v1448, %v3674
      %v3678 = vmul.f32 %v1449, %v3674
      %v3679 = vmul.f32 %v1450, %v3674
      %v3680 = vmul.f32 %v1451, %v3674
      %v3681 = vmul.f32 %v1452, %v3674
      %v3682 = vmul.f32 %v1453, %v3674
      %v3683 = vmul.f32 %v1454, %v3674
      %v3684 = vmul.f32 %v1455, %v3674
      %v3685 = vmul.f32 %v1456, %v3674
      %v3686 = vmul.f32 %v1457, %v3674
      %v3687 = vmul.f32 %v1458, %v3674
      %v3688 = vmul.f32 %v1459, %v3674
      %v3689 = vmul.f32 %v1460, %v3674
      %v3690 = vmul.f32 %v1461, %v3674
      %v3691 = vmul.f32 %v1462, %v3674
      %v3692 = vmul.f32 %v1463, %v3674
      %v3693 = vmul.f32 %v1464, %v3674
      %v3694 = vmul.f32 %v1465, %v3674
      %v3695 = vmul.f32 %v1466, %v3674
      %v3696 = vmul.f32 %v1467, %v3674
      %v3697 = vmul.f32 %v1468, %v3674
      %v3698 = vmul.f32 %v1469, %v3674
      %v3699 = vmul.f32 %v1470, %v3674
      %v3700 = vmul.f32 %v1471, %v3674
      %v3701 = vmul.f32 %v1472, %v3674
      %v3702 = vmul.f32 %v1473, %v3674
      %v3703 = vmul.f32 %v1474, %v3674
      %v3704 = vmul.f32 %v1475, %v3674
      %v3705 = vmul.f32 %v1476, %v3674
      %v3706 = vmul.f32 %v1477, %v3674
      %v3707 = vmul.f32 %v1478, %v3674
      %v3708 = vmul.f32 %v1479, %v3674
      %v3709 = vmul.f32 %v1480, %v3674
      %v3710 = vmul.f32 %v1481, %v3674
      %v3711 = vmul.f32 %v1482, %v3674
      %v3712 = vmul.f32 %v1483, %v3674
      %v3713 = vmul.f32 %v1484, %v3674
      %v3714 = vmul.f32 %v1485, %v3674
      %v3715 = vmul.f32 %v1486, %v3674
      %v3716 = vmul.f32 %v1487, %v3674
      %v3717 = vmul.f32 %v1488, %v3674
      %v3718 = vmul.f32 %v1489, %v3674
      %v3719 = vmul.f32 %v1490, %v3674
      %v3720 = vmul.f32 %v1491, %v3674
      %v3721 = vmul.f32 %v1492, %v3674
      %v3722 = vmul.f32 %v1493, %v3674
      %v3723 = vmul.f32 %v1494, %v3674
      %v3724 = vmul.f32 %v1495, %v3674
      %v3725 = vmul.f32 %v1496, %v3674
      %v3726 = vmul.f32 %v1497, %v3674
      %v3727 = vmul.f32 %v1498, %v3674
      %v3728 = vmul.f32 %v1499, %v3674
      %v3729 = vmul.f32 %v1500, %v3674
      %v3730 = vmul.f32 %v1501, %v3674
      %v3731 = vmul.f32 %v1502, %v3674
      %v3732 = vmul.f32 %v1503, %v3674
      %v3733 = vmul.f32 %v1504, %v3674
      %v3734 = vmul.f32 %v1505, %v3674
      %v3735 = vmul.f32 %v1506, %v3674
      %v3736 = vmul.f32 %v1507, %v3674
      %v3737 = vmul.f32 %v1508, %v3674
      %v3738 = vmul.f32 %v1509, %v3674
      %v3739 = vmul.f32 %v1510, %v3674
      %v3740 = vmul.f32 %v1511, %v3674
      %v3741 = vmul.f32 %v1512, %v3674
      %v3742 = vmul.f32 %v1513, %v3674
      %v3743 = vmul.f32 %v1514, %v3674
      %v3744 = vmul.f32 %v1515, %v3674
      %v3745 = vmul.f32 %v1516, %v3674
      %v3746 = vmul.f32 %v1517, %v3674
      %v3747 = vmul.f32 %v1518, %v3674
      %v3748 = vmul.f32 %v1519, %v3674
      %v3749 = vmul.f32 %v1520, %v3674
      %v3750 = vmul.f32 %v1521, %v3674
      %v3751 = vmul.f32 %v1522, %v3674
      %v3752 = vmul.f32 %v1523, %v3674
      %v3753 = vmul.f32 %v1524, %v3674
      %v3754 = vmul.f32 %v1525, %v3674
      %v3835 = vrot.slane %v3675, 1
      %v3836 = vrot.slane %v3676, 1
      %v3837 = vsel %vm1825, %v3835, %v3836
      %v3838 = vrot.slane %v3677, 1
      %v3839 = vsel %vm1825, %v3836, %v3838
      %v3840 = vrot.slane %v3678, 1
      %v3841 = vsel %vm1825, %v3838, %v3840
      %v3842 = vrot.slane %v3679, 1
      %v3843 = vsel %vm1825, %v3840, %v3842
      %v3844 = vrot.slane %v3680, 1
      %v3845 = vrot.slane %v3681, 1
      %v3846 = vsel %vm1825, %v3844, %v3845
      %v3847 = vrot.slane %v3682, 1
      %v3848 = vsel %vm1825, %v3845, %v3847
      %v3849 = vrot.slane %v3683, 1
      %v3850 = vsel %vm1825, %v3847, %v3849
      %v3851 = vrot.slane %v3684, 1
      %v3852 = vsel %vm1825, %v3849, %v3851
      %v3853 = vrot.slane %v3685, 1
      %v3854 = vrot.slane %v3686, 1
      %v3855 = vsel %vm1825, %v3853, %v3854
      %v3856 = vrot.slane %v3687, 1
      %v3857 = vsel %vm1825, %v3854, %v3856
      %v3858 = vrot.slane %v3688, 1
      %v3859 = vsel %vm1825, %v3856, %v3858
      %v3860 = vrot.slane %v3689, 1
      %v3861 = vsel %vm1825, %v3858, %v3860
      %v3862 = vrot.slane %v3690, 1
      %v3863 = vrot.slane %v3691, 1
      %v3864 = vsel %vm1825, %v3862, %v3863
      %v3865 = vrot.slane %v3692, 1
      %v3866 = vsel %vm1825, %v3863, %v3865
      %v3867 = vrot.slane %v3693, 1
      %v3868 = vsel %vm1825, %v3865, %v3867
      %v3869 = vrot.slane %v3694, 1
      %v3870 = vsel %vm1825, %v3867, %v3869
      %v3871 = vrot.slane %v3695, 1
      %v3872 = vrot.slane %v3696, 1
      %v3873 = vsel %vm1825, %v3871, %v3872
      %v3874 = vrot.slane %v3697, 1
      %v3875 = vsel %vm1825, %v3872, %v3874
      %v3876 = vrot.slane %v3698, 1
      %v3877 = vsel %vm1825, %v3874, %v3876
      %v3878 = vrot.slane %v3699, 1
      %v3879 = vsel %vm1825, %v3876, %v3878
      %v3880 = vrot.slane %v3700, 1
      %v3881 = vrot.slane %v3701, 1
      %v3882 = vsel %vm1825, %v3880, %v3881
      %v3883 = vrot.slane %v3702, 1
      %v3884 = vsel %vm1825, %v3881, %v3883
      %v3885 = vrot.slane %v3703, 1
      %v3886 = vsel %vm1825, %v3883, %v3885
      %v3887 = vrot.slane %v3704, 1
      %v3888 = vsel %vm1825, %v3885, %v3887
      %v3889 = vrot.slane %v3705, 1
      %v3890 = vrot.slane %v3706, 1
      %v3891 = vsel %vm1825, %v3889, %v3890
      %v3892 = vrot.slane %v3707, 1
      %v3893 = vsel %vm1825, %v3890, %v3892
      %v3894 = vrot.slane %v3708, 1
      %v3895 = vsel %vm1825, %v3892, %v3894
      %v3896 = vrot.slane %v3709, 1
      %v3897 = vsel %vm1825, %v3894, %v3896
      %v3898 = vrot.slane %v3710, 1
      %v3899 = vrot.slane %v3711, 1
      %v3900 = vsel %vm1825, %v3898, %v3899
      %v3901 = vrot.slane %v3712, 1
      %v3902 = vsel %vm1825, %v3899, %v3901
      %v3903 = vrot.slane %v3713, 1
      %v3904 = vsel %vm1825, %v3901, %v3903
      %v3905 = vrot.slane %v3714, 1
      %v3906 = vsel %vm1825, %v3903, %v3905
      %v3907 = vrot.slane %v3715, 1
      %v3908 = vrot.slane %v3716, 1
      %v3909 = vsel %vm1825, %v3907, %v3908
      %v3910 = vrot.slane %v3717, 1
      %v3911 = vsel %vm1825, %v3908, %v3910
      %v3912 = vrot.slane %v3718, 1
      %v3913 = vsel %vm1825, %v3910, %v3912
      %v3914 = vrot.slane %v3719, 1
      %v3915 = vsel %vm1825, %v3912, %v3914
      %v3916 = vrot.slane %v3720, 1
      %v3917 = vrot.slane %v3721, 1
      %v3918 = vsel %vm1825, %v3916, %v3917
      %v3919 = vrot.slane %v3722, 1
      %v3920 = vsel %vm1825, %v3917, %v3919
      %v3921 = vrot.slane %v3723, 1
      %v3922 = vsel %vm1825, %v3919, %v3921
      %v3923 = vrot.slane %v3724, 1
      %v3924 = vsel %vm1825, %v3921, %v3923
      %v3925 = vrot.slane %v3725, 1
      %v3926 = vrot.slane %v3726, 1
      %v3927 = vsel %vm1825, %v3925, %v3926
      %v3928 = vrot.slane %v3727, 1
      %v3929 = vsel %vm1825, %v3926, %v3928
      %v3930 = vrot.slane %v3728, 1
      %v3931 = vsel %vm1825, %v3928, %v3930
      %v3932 = vrot.slane %v3729, 1
      %v3933 = vsel %vm1825, %v3930, %v3932
      %v3934 = vrot.slane %v3730, 1
      %v3935 = vrot.slane %v3731, 1
      %v3936 = vsel %vm1825, %v3934, %v3935
      %v3937 = vrot.slane %v3732, 1
      %v3938 = vsel %vm1825, %v3935, %v3937
      %v3939 = vrot.slane %v3733, 1
      %v3940 = vsel %vm1825, %v3937, %v3939
      %v3941 = vrot.slane %v3734, 1
      %v3942 = vsel %vm1825, %v3939, %v3941
      %v3943 = vrot.slane %v3735, 1
      %v3944 = vrot.slane %v3736, 1
      %v3945 = vsel %vm1825, %v3943, %v3944
      %v3946 = vrot.slane %v3737, 1
      %v3947 = vsel %vm1825, %v3944, %v3946
      %v3948 = vrot.slane %v3738, 1
      %v3949 = vsel %vm1825, %v3946, %v3948
      %v3950 = vrot.slane %v3739, 1
      %v3951 = vsel %vm1825, %v3948, %v3950
      %v3952 = vrot.slane %v3740, 1
      %v3953 = vrot.slane %v3741, 1
      %v3954 = vsel %vm1825, %v3952, %v3953
      %v3955 = vrot.slane %v3742, 1
      %v3956 = vsel %vm1825, %v3953, %v3955
      %v3957 = vrot.slane %v3743, 1
      %v3958 = vsel %vm1825, %v3955, %v3957
      %v3959 = vrot.slane %v3744, 1
      %v3960 = vsel %vm1825, %v3957, %v3959
      %v3961 = vrot.slane %v3745, 1
      %v3962 = vrot.slane %v3746, 1
      %v3963 = vsel %vm1825, %v3961, %v3962
      %v3964 = vrot.slane %v3747, 1
      %v3965 = vsel %vm1825, %v3962, %v3964
      %v3966 = vrot.slane %v3748, 1
      %v3967 = vsel %vm1825, %v3964, %v3966
      %v3968 = vrot.slane %v3749, 1
      %v3969 = vsel %vm1825, %v3966, %v3968
      %v3970 = vrot.slane %v3750, 1
      %v3971 = vrot.slane %v3751, 1
      %v3972 = vsel %vm1825, %v3970, %v3971
      %v3973 = vrot.slane %v3752, 1
      %v3974 = vsel %vm1825, %v3971, %v3973
      %v3975 = vrot.slane %v3753, 1
      %v3976 = vsel %vm1825, %v3973, %v3975
      %v3977 = vrot.slane %v3754, 1
      %v3978 = vsel %vm1825, %v3975, %v3977
      %v4043 = vadd.f32 %v3607, %v3837
      %v4044 = vadd.f32 %v3608, %v3839
      %v4045 = vadd.f32 %v3609, %v3841
      %v4046 = vadd.f32 %v3610, %v3843
      %v4047 = vadd.f32 %v3611, %v3846
      %v4048 = vadd.f32 %v3612, %v3848
      %v4049 = vadd.f32 %v3613, %v3850
      %v4050 = vadd.f32 %v3614, %v3852
      %v4051 = vadd.f32 %v3615, %v3855
      %v4052 = vadd.f32 %v3616, %v3857
      %v4053 = vadd.f32 %v3617, %v3859
      %v4054 = vadd.f32 %v3618, %v3861
      %v4055 = vadd.f32 %v3619, %v3864
      %v4056 = vadd.f32 %v3620, %v3866
      %v4057 = vadd.f32 %v3621, %v3868
      %v4058 = vadd.f32 %v3622, %v3870
      %v4059 = vadd.f32 %v3623, %v3873
      %v4060 = vadd.f32 %v3624, %v3875
      %v4061 = vadd.f32 %v3625, %v3877
      %v4062 = vadd.f32 %v3626, %v3879
      %v4063 = vadd.f32 %v3627, %v3882
      %v4064 = vadd.f32 %v3628, %v3884
      %v4065 = vadd.f32 %v3629, %v3886
      %v4066 = vadd.f32 %v3630, %v3888
      %v4067 = vadd.f32 %v3631, %v3891
      %v4068 = vadd.f32 %v3632, %v3893
      %v4069 = vadd.f32 %v3633, %v3895
      %v4070 = vadd.f32 %v3634, %v3897
      %v4071 = vadd.f32 %v3635, %v3900
      %v4072 = vadd.f32 %v3636, %v3902
      %v4073 = vadd.f32 %v3637, %v3904
      %v4074 = vadd.f32 %v3638, %v3906
      %v4075 = vadd.f32 %v3639, %v3909
      %v4076 = vadd.f32 %v3640, %v3911
      %v4077 = vadd.f32 %v3641, %v3913
      %v4078 = vadd.f32 %v3642, %v3915
      %v4079 = vadd.f32 %v3643, %v3918
      %v4080 = vadd.f32 %v3644, %v3920
      %v4081 = vadd.f32 %v3645, %v3922
      %v4082 = vadd.f32 %v3646, %v3924
      %v4083 = vadd.f32 %v3647, %v3927
      %v4084 = vadd.f32 %v3648, %v3929
      %v4085 = vadd.f32 %v3649, %v3931
      %v4086 = vadd.f32 %v3650, %v3933
      %v4087 = vadd.f32 %v3651, %v3936
      %v4088 = vadd.f32 %v3652, %v3938
      %v4089 = vadd.f32 %v3653, %v3940
      %v4090 = vadd.f32 %v3654, %v3942
      %v4091 = vadd.f32 %v3655, %v3945
      %v4092 = vadd.f32 %v3656, %v3947
      %v4093 = vadd.f32 %v3657, %v3949
      %v4094 = vadd.f32 %v3658, %v3951
      %v4095 = vadd.f32 %v3659, %v3954
      %v4096 = vadd.f32 %v3660, %v3956
      %v4097 = vadd.f32 %v3661, %v3958
      %v4098 = vadd.f32 %v3662, %v3960
      %v4099 = vadd.f32 %v3663, %v3963
      %v4100 = vadd.f32 %v3664, %v3965
      %v4101 = vadd.f32 %v3665, %v3967
      %v4102 = vadd.f32 %v3666, %v3969
      %v4103 = vadd.f32 %v3667, %v3972
      %v4104 = vadd.f32 %v3668, %v3974
      %v4105 = vadd.f32 %v3669, %v3976
      %v4106 = vadd.f32 %v3670, %v3978
      %v4107 = vlaneseq
      %v4108 = vshrl.u32 %v4107, 7
      %v4109 = vsub.s32 2, %v4108
      %v4110 = vrot.slane %v1528, %v4109
      %v4111 = vmul.f32 %v1446, %v4110
      %v4112 = vmul.f32 %v1447, %v4110
      %v4113 = vmul.f32 %v1448, %v4110
      %v4114 = vmul.f32 %v1449, %v4110
      %v4115 = vmul.f32 %v1450, %v4110
      %v4116 = vmul.f32 %v1451, %v4110
      %v4117 = vmul.f32 %v1452, %v4110
      %v4118 = vmul.f32 %v1453, %v4110
      %v4119 = vmul.f32 %v1454, %v4110
      %v4120 = vmul.f32 %v1455, %v4110
      %v4121 = vmul.f32 %v1456, %v4110
      %v4122 = vmul.f32 %v1457, %v4110
      %v4123 = vmul.f32 %v1458, %v4110
      %v4124 = vmul.f32 %v1459, %v4110
      %v4125 = vmul.f32 %v1460, %v4110
      %v4126 = vmul.f32 %v1461, %v4110
      %v4127 = vmul.f32 %v1462, %v4110
      %v4128 = vmul.f32 %v1463, %v4110
      %v4129 = vmul.f32 %v1464, %v4110
      %v4130 = vmul.f32 %v1465, %v4110
      %v4131 = vmul.f32 %v1466, %v4110
      %v4132 = vmul.f32 %v1467, %v4110
      %v4133 = vmul.f32 %v1468, %v4110
      %v4134 = vmul.f32 %v1469, %v4110
      %v4135 = vmul.f32 %v1470, %v4110
      %v4136 = vmul.f32 %v1471, %v4110
      %v4137 = vmul.f32 %v1472, %v4110
      %v4138 = vmul.f32 %v1473, %v4110
      %v4139 = vmul.f32 %v1474, %v4110
      %v4140 = vmul.f32 %v1475, %v4110
      %v4141 = vmul.f32 %v1476, %v4110
      %v4142 = vmul.f32 %v1477, %v4110
      %v4143 = vmul.f32 %v1478, %v4110
      %v4144 = vmul.f32 %v1479, %v4110
      %v4145 = vmul.f32 %v1480, %v4110
      %v4146 = vmul.f32 %v1481, %v4110
      %v4147 = vmul.f32 %v1482, %v4110
      %v4148 = vmul.f32 %v1483, %v4110
      %v4149 = vmul.f32 %v1484, %v4110
      %v4150 = vmul.f32 %v1485, %v4110
      %v4151 = vmul.f32 %v1486, %v4110
      %v4152 = vmul.f32 %v1487, %v4110
      %v4153 = vmul.f32 %v1488, %v4110
      %v4154 = vmul.f32 %v1489, %v4110
      %v4155 = vmul.f32 %v1490, %v4110
      %v4156 = vmul.f32 %v1491, %v4110
      %v4157 = vmul.f32 %v1492, %v4110
      %v4158 = vmul.f32 %v1493, %v4110
      %v4159 = vmul.f32 %v1494, %v4110
      %v4160 = vmul.f32 %v1495, %v4110
      %v4161 = vmul.f32 %v1496, %v4110
      %v4162 = vmul.f32 %v1497, %v4110
      %v4163 = vmul.f32 %v1498, %v4110
      %v4164 = vmul.f32 %v1499, %v4110
      %v4165 = vmul.f32 %v1500, %v4110
      %v4166 = vmul.f32 %v1501, %v4110
      %v4167 = vmul.f32 %v1502, %v4110
      %v4168 = vmul.f32 %v1503, %v4110
      %v4169 = vmul.f32 %v1504, %v4110
      %v4170 = vmul.f32 %v1505, %v4110
      %v4171 = vmul.f32 %v1506, %v4110
      %v4172 = vmul.f32 %v1507, %v4110
      %v4173 = vmul.f32 %v1508, %v4110
      %v4174 = vmul.f32 %v1509, %v4110
      %v4175 = vmul.f32 %v1510, %v4110
      %v4176 = vmul.f32 %v1511, %v4110
      %v4177 = vmul.f32 %v1512, %v4110
      %v4178 = vmul.f32 %v1513, %v4110
      %v4179 = vmul.f32 %v1514, %v4110
      %v4180 = vmul.f32 %v1515, %v4110
      %v4181 = vmul.f32 %v1516, %v4110
      %v4182 = vmul.f32 %v1517, %v4110
      %v4183 = vmul.f32 %v1518, %v4110
      %v4184 = vmul.f32 %v1519, %v4110
      %v4185 = vmul.f32 %v1520, %v4110
      %v4186 = vmul.f32 %v1521, %v4110
      %v4187 = vmul.f32 %v1522, %v4110
      %v4188 = vmul.f32 %v1523, %v4110
      %v4189 = vmul.f32 %v1524, %v4110
      %v4190 = vmul.f32 %v1525, %v4110
      %v4271 = vrot.slane %v4111, 2
      %v4272 = vrot.slane %v4112, 2
      %v4273 = vsel %vm2262, %v4271, %v4272
      %v4274 = vrot.slane %v4113, 2
      %v4275 = vsel %vm2262, %v4272, %v4274
      %v4276 = vrot.slane %v4114, 2
      %v4277 = vsel %vm2262, %v4274, %v4276
      %v4278 = vrot.slane %v4115, 2
      %v4279 = vsel %vm2262, %v4276, %v4278
      %v4280 = vrot.slane %v4116, 2
      %v4281 = vrot.slane %v4117, 2
      %v4282 = vsel %vm2262, %v4280, %v4281
      %v4283 = vrot.slane %v4118, 2
      %v4284 = vsel %vm2262, %v4281, %v4283
      %v4285 = vrot.slane %v4119, 2
      %v4286 = vsel %vm2262, %v4283, %v4285
      %v4287 = vrot.slane %v4120, 2
      %v4288 = vsel %vm2262, %v4285, %v4287
      %v4289 = vrot.slane %v4121, 2
      %v4290 = vrot.slane %v4122, 2
      %v4291 = vsel %vm2262, %v4289, %v4290
      %v4292 = vrot.slane %v4123, 2
      %v4293 = vsel %vm2262, %v4290, %v4292
      %v4294 = vrot.slane %v4124, 2
      %v4295 = vsel %vm2262, %v4292, %v4294
      %v4296 = vrot.slane %v4125, 2
      %v4297 = vsel %vm2262, %v4294, %v4296
      %v4298 = vrot.slane %v4126, 2
      %v4299 = vrot.slane %v4127, 2
      %v4300 = vsel %vm2262, %v4298, %v4299
      %v4301 = vrot.slane %v4128, 2
      %v4302 = vsel %vm2262, %v4299, %v4301
      %v4303 = vrot.slane %v4129, 2
      %v4304 = vsel %vm2262, %v4301, %v4303
      %v4305 = vrot.slane %v4130, 2
      %v4306 = vsel %vm2262, %v4303, %v4305
      %v4307 = vrot.slane %v4131, 2
      %v4308 = vrot.slane %v4132, 2
      %v4309 = vsel %vm2262, %v4307, %v4308
      %v4310 = vrot.slane %v4133, 2
      %v4311 = vsel %vm2262, %v4308, %v4310
      %v4312 = vrot.slane %v4134, 2
      %v4313 = vsel %vm2262, %v4310, %v4312
      %v4314 = vrot.slane %v4135, 2
      %v4315 = vsel %vm2262, %v4312, %v4314
      %v4316 = vrot.slane %v4136, 2
      %v4317 = vrot.slane %v4137, 2
      %v4318 = vsel %vm2262, %v4316, %v4317
      %v4319 = vrot.slane %v4138, 2
      %v4320 = vsel %vm2262, %v4317, %v4319
      %v4321 = vrot.slane %v4139, 2
      %v4322 = vsel %vm2262, %v4319, %v4321
      %v4323 = vrot.slane %v4140, 2
      %v4324 = vsel %vm2262, %v4321, %v4323
      %v4325 = vrot.slane %v4141, 2
      %v4326 = vrot.slane %v4142, 2
      %v4327 = vsel %vm2262, %v4325, %v4326
      %v4328 = vrot.slane %v4143, 2
      %v4329 = vsel %vm2262, %v4326, %v4328
      %v4330 = vrot.slane %v4144, 2
      %v4331 = vsel %vm2262, %v4328, %v4330
      %v4332 = vrot.slane %v4145, 2
      %v4333 = vsel %vm2262, %v4330, %v4332
      %v4334 = vrot.slane %v4146, 2
      %v4335 = vrot.slane %v4147, 2
      %v4336 = vsel %vm2262, %v4334, %v4335
      %v4337 = vrot.slane %v4148, 2
      %v4338 = vsel %vm2262, %v4335, %v4337
      %v4339 = vrot.slane %v4149, 2
      %v4340 = vsel %vm2262, %v4337, %v4339
      %v4341 = vrot.slane %v4150, 2
      %v4342 = vsel %vm2262, %v4339, %v4341
      %v4343 = vrot.slane %v4151, 2
      %v4344 = vrot.slane %v4152, 2
      %v4345 = vsel %vm2262, %v4343, %v4344
      %v4346 = vrot.slane %v4153, 2
      %v4347 = vsel %vm2262, %v4344, %v4346
      %v4348 = vrot.slane %v4154, 2
      %v4349 = vsel %vm2262, %v4346, %v4348
      %v4350 = vrot.slane %v4155, 2
      %v4351 = vsel %vm2262, %v4348, %v4350
      %v4352 = vrot.slane %v4156, 2
      %v4353 = vrot.slane %v4157, 2
      %v4354 = vsel %vm2262, %v4352, %v4353
      %v4355 = vrot.slane %v4158, 2
      %v4356 = vsel %vm2262, %v4353, %v4355
      %v4357 = vrot.slane %v4159, 2
      %v4358 = vsel %vm2262, %v4355, %v4357
      %v4359 = vrot.slane %v4160, 2
      %v4360 = vsel %vm2262, %v4357, %v4359
      %v4361 = vrot.slane %v4161, 2
      %v4362 = vrot.slane %v4162, 2
      %v4363 = vsel %vm2262, %v4361, %v4362
      %v4364 = vrot.slane %v4163, 2
      %v4365 = vsel %vm2262, %v4362, %v4364
      %v4366 = vrot.slane %v4164, 2
      %v4367 = vsel %vm2262, %v4364, %v4366
      %v4368 = vrot.slane %v4165, 2
      %v4369 = vsel %vm2262, %v4366, %v4368
      %v4370 = vrot.slane %v4166, 2
      %v4371 = vrot.slane %v4167, 2
      %v4372 = vsel %vm2262, %v4370, %v4371
      %v4373 = vrot.slane %v4168, 2
      %v4374 = vsel %vm2262, %v4371, %v4373
      %v4375 = vrot.slane %v4169, 2
      %v4376 = vsel %vm2262, %v4373, %v4375
      %v4377 = vrot.slane %v4170, 2
      %v4378 = vsel %vm2262, %v4375, %v4377
      %v4379 = vrot.slane %v4171, 2
      %v4380 = vrot.slane %v4172, 2
      %v4381 = vsel %vm2262, %v4379, %v4380
      %v4382 = vrot.slane %v4173, 2
      %v4383 = vsel %vm2262, %v4380, %v4382
      %v4384 = vrot.slane %v4174, 2
      %v4385 = vsel %vm2262, %v4382, %v4384
      %v4386 = vrot.slane %v4175, 2
      %v4387 = vsel %vm2262, %v4384, %v4386
      %v4388 = vrot.slane %v4176, 2
      %v4389 = vrot.slane %v4177, 2
      %v4390 = vsel %vm2262, %v4388, %v4389
      %v4391 = vrot.slane %v4178, 2
      %v4392 = vsel %vm2262, %v4389, %v4391
      %v4393 = vrot.slane %v4179, 2
      %v4394 = vsel %vm2262, %v4391, %v4393
      %v4395 = vrot.slane %v4180, 2
      %v4396 = vsel %vm2262, %v4393, %v4395
      %v4397 = vrot.slane %v4181, 2
      %v4398 = vrot.slane %v4182, 2
      %v4399 = vsel %vm2262, %v4397, %v4398
      %v4400 = vrot.slane %v4183, 2
      %v4401 = vsel %vm2262, %v4398, %v4400
      %v4402 = vrot.slane %v4184, 2
      %v4403 = vsel %vm2262, %v4400, %v4402
      %v4404 = vrot.slane %v4185, 2
      %v4405 = vsel %vm2262, %v4402, %v4404
      %v4406 = vrot.slane %v4186, 2
      %v4407 = vrot.slane %v4187, 2
      %v4408 = vsel %vm2262, %v4406, %v4407
      %v4409 = vrot.slane %v4188, 2
      %v4410 = vsel %vm2262, %v4407, %v4409
      %v4411 = vrot.slane %v4189, 2
      %v4412 = vsel %vm2262, %v4409, %v4411
      %v4413 = vrot.slane %v4190, 2
      %v4414 = vsel %vm2262, %v4411, %v4413
      %v4479 = vadd.f32 %v4043, %v4273
      %v4480 = vadd.f32 %v4044, %v4275
      %v4481 = vadd.f32 %v4045, %v4277
      %v4482 = vadd.f32 %v4046, %v4279
      %v4483 = vadd.f32 %v4047, %v4282
      %v4484 = vadd.f32 %v4048, %v4284
      %v4485 = vadd.f32 %v4049, %v4286
      %v4486 = vadd.f32 %v4050, %v4288
      %v4487 = vadd.f32 %v4051, %v4291
      %v4488 = vadd.f32 %v4052, %v4293
      %v4489 = vadd.f32 %v4053, %v4295
      %v4490 = vadd.f32 %v4054, %v4297
      %v4491 = vadd.f32 %v4055, %v4300
      %v4492 = vadd.f32 %v4056, %v4302
      %v4493 = vadd.f32 %v4057, %v4304
      %v4494 = vadd.f32 %v4058, %v4306
      %v4495 = vadd.f32 %v4059, %v4309
      %v4496 = vadd.f32 %v4060, %v4311
      %v4497 = vadd.f32 %v4061, %v4313
      %v4498 = vadd.f32 %v4062, %v4315
      %v4499 = vadd.f32 %v4063, %v4318
      %v4500 = vadd.f32 %v4064, %v4320
      %v4501 = vadd.f32 %v4065, %v4322
      %v4502 = vadd.f32 %v4066, %v4324
      %v4503 = vadd.f32 %v4067, %v4327
      %v4504 = vadd.f32 %v4068, %v4329
      %v4505 = vadd.f32 %v4069, %v4331
      %v4506 = vadd.f32 %v4070, %v4333
      %v4507 = vadd.f32 %v4071, %v4336
      %v4508 = vadd.f32 %v4072, %v4338
      %v4509 = vadd.f32 %v4073, %v4340
      %v4510 = vadd.f32 %v4074, %v4342
      %v4511 = vadd.f32 %v4075, %v4345
      %v4512 = vadd.f32 %v4076, %v4347
      %v4513 = vadd.f32 %v4077, %v4349
      %v4514 = vadd.f32 %v4078, %v4351
      %v4515 = vadd.f32 %v4079, %v4354
      %v4516 = vadd.f32 %v4080, %v4356
      %v4517 = vadd.f32 %v4081, %v4358
      %v4518 = vadd.f32 %v4082, %v4360
      %v4519 = vadd.f32 %v4083, %v4363
      %v4520 = vadd.f32 %v4084, %v4365
      %v4521 = vadd.f32 %v4085, %v4367
      %v4522 = vadd.f32 %v4086, %v4369
      %v4523 = vadd.f32 %v4087, %v4372
      %v4524 = vadd.f32 %v4088, %v4374
      %v4525 = vadd.f32 %v4089, %v4376
      %v4526 = vadd.f32 %v4090, %v4378
      %v4527 = vadd.f32 %v4091, %v4381
      %v4528 = vadd.f32 %v4092, %v4383
      %v4529 = vadd.f32 %v4093, %v4385
      %v4530 = vadd.f32 %v4094, %v4387
      %v4531 = vadd.f32 %v4095, %v4390
      %v4532 = vadd.f32 %v4096, %v4392
      %v4533 = vadd.f32 %v4097, %v4394
      %v4534 = vadd.f32 %v4098, %v4396
      %v4535 = vadd.f32 %v4099, %v4399
      %v4536 = vadd.f32 %v4100, %v4401
      %v4537 = vadd.f32 %v4101, %v4403
      %v4538 = vadd.f32 %v4102, %v4405
      %v4539 = vadd.f32 %v4103, %v4408
      %v4540 = vadd.f32 %v4104, %v4410
      %v4541 = vadd.f32 %v4105, %v4412
      %v4542 = vadd.f32 %v4106, %v4414
      %v4543 = vld [vmem:[%s5] sm:$0x1]
      %v4545 = vlaneseq
      %v4546 = vshrl.u32 %v4545, 7
      %v4547 = vsub.s32 0, %v4546
      %v4548 = vrot.slane %v4543, %v4547
      %v4550 = vadd.f32 %v4479, %v4548
      %v4551 = vadd.f32 %v4480, %v4548
      %v4552 = vadd.f32 %v4481, %v4548
      %v4553 = vadd.f32 %v4482, %v4548
      %v4554 = vadd.f32 %v4483, %v4548
      %v4555 = vadd.f32 %v4484, %v4548
      %v4556 = vadd.f32 %v4485, %v4548
      %v4557 = vadd.f32 %v4486, %v4548
      %v4558 = vadd.f32 %v4487, %v4548
      %v4559 = vadd.f32 %v4488, %v4548
      %v4560 = vadd.f32 %v4489, %v4548
      %v4561 = vadd.f32 %v4490, %v4548
      %v4562 = vadd.f32 %v4491, %v4548
      %v4563 = vadd.f32 %v4492, %v4548
      %v4564 = vadd.f32 %v4493, %v4548
      %v4565 = vadd.f32 %v4494, %v4548
      %v4566 = vadd.f32 %v4495, %v4548
      %v4567 = vadd.f32 %v4496, %v4548
      %v4568 = vadd.f32 %v4497, %v4548
      %v4569 = vadd.f32 %v4498, %v4548
      %v4570 = vadd.f32 %v4499, %v4548
      %v4571 = vadd.f32 %v4500, %v4548
      %v4572 = vadd.f32 %v4501, %v4548
      %v4573 = vadd.f32 %v4502, %v4548
      %v4574 = vadd.f32 %v4503, %v4548
      %v4575 = vadd.f32 %v4504, %v4548
      %v4576 = vadd.f32 %v4505, %v4548
      %v4577 = vadd.f32 %v4506, %v4548
      %v4578 = vadd.f32 %v4507, %v4548
      %v4579 = vadd.f32 %v4508, %v4548
      %v4580 = vadd.f32 %v4509, %v4548
      %v4581 = vadd.f32 %v4510, %v4548
      %v4582 = vadd.f32 %v4511, %v4548
      %v4583 = vadd.f32 %v4512, %v4548
      %v4584 = vadd.f32 %v4513, %v4548
      %v4585 = vadd.f32 %v4514, %v4548
      %v4586 = vadd.f32 %v4515, %v4548
      %v4587 = vadd.f32 %v4516, %v4548
      %v4588 = vadd.f32 %v4517, %v4548
      %v4589 = vadd.f32 %v4518, %v4548
      %v4590 = vadd.f32 %v4519, %v4548
      %v4591 = vadd.f32 %v4520, %v4548
      %v4592 = vadd.f32 %v4521, %v4548
      %v4593 = vadd.f32 %v4522, %v4548
      %v4594 = vadd.f32 %v4523, %v4548
      %v4595 = vadd.f32 %v4524, %v4548
      %v4596 = vadd.f32 %v4525, %v4548
      %v4597 = vadd.f32 %v4526, %v4548
      %v4598 = vadd.f32 %v4527, %v4548
      %v4599 = vadd.f32 %v4528, %v4548
      %v4600 = vadd.f32 %v4529, %v4548
      %v4601 = vadd.f32 %v4530, %v4548
      %v4602 = vadd.f32 %v4531, %v4548
      %v4603 = vadd.f32 %v4532, %v4548
      %v4604 = vadd.f32 %v4533, %v4548
      %v4605 = vadd.f32 %v4534, %v4548
      %v4606 = vadd.f32 %v4535, %v4548
      %v4607 = vadd.f32 %v4536, %v4548
      %v4608 = vadd.f32 %v4537, %v4548
      %v4609 = vadd.f32 %v4538, %v4548
      %v4610 = vadd.f32 %v4539, %v4548
      %v4611 = vadd.f32 %v4540, %v4548
      %v4612 = vadd.f32 %v4541, %v4548
      %v4613 = vadd.f32 %v4542, %v4548
      %v4614 = vsub.f32 0.0, %v4550
      %v4615 = vsub.f32 0.0, %v4551
      %v4616 = vsub.f32 0.0, %v4552
      %v4617 = vsub.f32 0.0, %v4553
      %v4618 = vsub.f32 0.0, %v4554
      %v4619 = vsub.f32 0.0, %v4555
      %v4620 = vsub.f32 0.0, %v4556
      %v4621 = vsub.f32 0.0, %v4557
      %v4622 = vsub.f32 0.0, %v4558
      %v4623 = vsub.f32 0.0, %v4559
      %v4624 = vsub.f32 0.0, %v4560
      %v4625 = vsub.f32 0.0, %v4561
      %v4626 = vsub.f32 0.0, %v4562
      %v4627 = vsub.f32 0.0, %v4563
      %v4628 = vsub.f32 0.0, %v4564
      %v4629 = vsub.f32 0.0, %v4565
      %v4630 = vsub.f32 0.0, %v4566
      %v4631 = vsub.f32 0.0, %v4567
      %v4632 = vsub.f32 0.0, %v4568
      %v4633 = vsub.f32 0.0, %v4569
      %v4634 = vsub.f32 0.0, %v4570
      %v4635 = vsub.f32 0.0, %v4571
      %v4636 = vsub.f32 0.0, %v4572
      %v4637 = vsub.f32 0.0, %v4573
      %v4638 = vsub.f32 0.0, %v4574
      %v4639 = vsub.f32 0.0, %v4575
      %v4640 = vsub.f32 0.0, %v4576
      %v4641 = vsub.f32 0.0, %v4577
      %v4642 = vsub.f32 0.0, %v4578
      %v4643 = vsub.f32 0.0, %v4579
      %v4644 = vsub.f32 0.0, %v4580
      %v4645 = vsub.f32 0.0, %v4581
      %v4646 = vsub.f32 0.0, %v4582
      %v4647 = vsub.f32 0.0, %v4583
      %v4648 = vsub.f32 0.0, %v4584
      %v4649 = vsub.f32 0.0, %v4585
      %v4650 = vsub.f32 0.0, %v4586
      %v4651 = vsub.f32 0.0, %v4587
      %v4652 = vsub.f32 0.0, %v4588
      %v4653 = vsub.f32 0.0, %v4589
      %v4654 = vsub.f32 0.0, %v4590
      %v4655 = vsub.f32 0.0, %v4591
      %v4656 = vsub.f32 0.0, %v4592
      %v4657 = vsub.f32 0.0, %v4593
      %v4658 = vsub.f32 0.0, %v4594
      %v4659 = vsub.f32 0.0, %v4595
      %v4660 = vsub.f32 0.0, %v4596
      %v4661 = vsub.f32 0.0, %v4597
      %v4662 = vsub.f32 0.0, %v4598
      %v4663 = vsub.f32 0.0, %v4599
      %v4664 = vsub.f32 0.0, %v4600
      %v4665 = vsub.f32 0.0, %v4601
      %v4666 = vsub.f32 0.0, %v4602
      %v4667 = vsub.f32 0.0, %v4603
      %v4668 = vsub.f32 0.0, %v4604
      %v4669 = vsub.f32 0.0, %v4605
      %v4670 = vsub.f32 0.0, %v4606
      %v4671 = vsub.f32 0.0, %v4607
      %v4672 = vsub.f32 0.0, %v4608
      %v4673 = vsub.f32 0.0, %v4609
      %v4674 = vsub.f32 0.0, %v4610
      %v4675 = vsub.f32 0.0, %v4611
      %v4676 = vsub.f32 0.0, %v4612
      %v4677 = vsub.f32 0.0, %v4613
      %v4678 = vmul.f32 %v4614, 1.442695
      %v4679 = vpow.pop %v4678
      %v4680 = vmul.f32 %v4615, 1.442695
      %v4681 = vpow.pop %v4680
      %v4682 = vmul.f32 %v4616, 1.442695
      %v4683 = vpow.pop %v4682
      %v4684 = vmul.f32 %v4617, 1.442695
      %v4685 = vpow.pop %v4684
      %v4686 = vmul.f32 %v4618, 1.442695
      %v4687 = vpow.pop %v4686
      %v4688 = vmul.f32 %v4619, 1.442695
      %v4689 = vpow.pop %v4688
      %v4690 = vmul.f32 %v4620, 1.442695
      %v4691 = vpow.pop %v4690
      %v4692 = vmul.f32 %v4621, 1.442695
      %v4693 = vpow.pop %v4692
      %v4694 = vmul.f32 %v4622, 1.442695
      %v4695 = vpow.pop %v4694
      %v4696 = vmul.f32 %v4623, 1.442695
      %v4697 = vpow.pop %v4696
      %v4698 = vmul.f32 %v4624, 1.442695
      %v4699 = vpow.pop %v4698
      %v4700 = vmul.f32 %v4625, 1.442695
      %v4701 = vpow.pop %v4700
      %v4702 = vmul.f32 %v4626, 1.442695
      %v4703 = vpow.pop %v4702
      %v4704 = vmul.f32 %v4627, 1.442695
      %v4705 = vpow.pop %v4704
      %v4706 = vmul.f32 %v4628, 1.442695
      %v4707 = vpow.pop %v4706
      %v4708 = vmul.f32 %v4629, 1.442695
      %v4709 = vpow.pop %v4708
      %v4710 = vmul.f32 %v4630, 1.442695
      %v4711 = vpow.pop %v4710
      %v4712 = vmul.f32 %v4631, 1.442695
      %v4713 = vpow.pop %v4712
      %v4714 = vmul.f32 %v4632, 1.442695
      %v4715 = vpow.pop %v4714
      %v4716 = vmul.f32 %v4633, 1.442695
      %v4717 = vpow.pop %v4716
      %v4718 = vmul.f32 %v4634, 1.442695
      %v4719 = vpow.pop %v4718
      %v4720 = vmul.f32 %v4635, 1.442695
      %v4721 = vpow.pop %v4720
      %v4722 = vmul.f32 %v4636, 1.442695
      %v4723 = vpow.pop %v4722
      %v4724 = vmul.f32 %v4637, 1.442695
      %v4725 = vpow.pop %v4724
      %v4726 = vmul.f32 %v4638, 1.442695
      %v4727 = vpow.pop %v4726
      %v4728 = vmul.f32 %v4639, 1.442695
      %v4729 = vpow.pop %v4728
      %v4730 = vmul.f32 %v4640, 1.442695
      %v4731 = vpow.pop %v4730
      %v4732 = vmul.f32 %v4641, 1.442695
      %v4733 = vpow.pop %v4732
      %v4734 = vmul.f32 %v4642, 1.442695
      %v4735 = vpow.pop %v4734
      %v4736 = vmul.f32 %v4643, 1.442695
      %v4737 = vpow.pop %v4736
      %v4738 = vmul.f32 %v4644, 1.442695
      %v4739 = vpow.pop %v4738
      %v4740 = vmul.f32 %v4645, 1.442695
      %v4741 = vpow.pop %v4740
      %v4742 = vmul.f32 %v4646, 1.442695
      %v4743 = vpow.pop %v4742
      %v4744 = vmul.f32 %v4647, 1.442695
      %v4745 = vpow.pop %v4744
      %v4746 = vmul.f32 %v4648, 1.442695
      %v4747 = vpow.pop %v4746
      %v4748 = vmul.f32 %v4649, 1.442695
      %v4749 = vpow.pop %v4748
      %v4750 = vmul.f32 %v4650, 1.442695
      %v4751 = vpow.pop %v4750
      %v4752 = vmul.f32 %v4651, 1.442695
      %v4753 = vpow.pop %v4752
      %v4754 = vmul.f32 %v4652, 1.442695
      %v4755 = vpow.pop %v4754
      %v4756 = vmul.f32 %v4653, 1.442695
      %v4757 = vpow.pop %v4756
      %v4758 = vmul.f32 %v4654, 1.442695
      %v4759 = vpow.pop %v4758
      %v4760 = vmul.f32 %v4655, 1.442695
      %v4761 = vpow.pop %v4760
      %v4762 = vmul.f32 %v4656, 1.442695
      %v4763 = vpow.pop %v4762
      %v4764 = vmul.f32 %v4657, 1.442695
      %v4765 = vpow.pop %v4764
      %v4766 = vmul.f32 %v4658, 1.442695
      %v4767 = vpow.pop %v4766
      %v4768 = vmul.f32 %v4659, 1.442695
      %v4769 = vpow.pop %v4768
      %v4770 = vmul.f32 %v4660, 1.442695
      %v4771 = vpow.pop %v4770
      %v4772 = vmul.f32 %v4661, 1.442695
      %v4773 = vpow.pop %v4772
      %v4774 = vmul.f32 %v4662, 1.442695
      %v4775 = vpow.pop %v4774
      %v4776 = vmul.f32 %v4663, 1.442695
      %v4777 = vpow.pop %v4776
      %v4778 = vmul.f32 %v4664, 1.442695
      %v4779 = vpow.pop %v4778
      %v4780 = vmul.f32 %v4665, 1.442695
      %v4781 = vpow.pop %v4780
      %v4782 = vmul.f32 %v4666, 1.442695
      %v4783 = vpow.pop %v4782
      %v4784 = vmul.f32 %v4667, 1.442695
      %v4785 = vpow.pop %v4784
      %v4786 = vmul.f32 %v4668, 1.442695
      %v4787 = vpow.pop %v4786
      %v4788 = vmul.f32 %v4669, 1.442695
      %v4789 = vpow.pop %v4788
      %v4790 = vmul.f32 %v4670, 1.442695
      %v4791 = vpow.pop %v4790
      %v4792 = vmul.f32 %v4671, 1.442695
      %v4793 = vpow.pop %v4792
      %v4794 = vmul.f32 %v4672, 1.442695
      %v4795 = vpow.pop %v4794
      %v4796 = vmul.f32 %v4673, 1.442695
      %v4797 = vpow.pop %v4796
      %v4798 = vmul.f32 %v4674, 1.442695
      %v4799 = vpow.pop %v4798
      %v4800 = vmul.f32 %v4675, 1.442695
      %v4801 = vpow.pop %v4800
      %v4802 = vmul.f32 %v4676, 1.442695
      %v4803 = vpow.pop %v4802
      %v4804 = vmul.f32 %v4677, 1.442695
      %v4805 = vpow.pop %v4804
      %v4806 = vadd.f32 %v4679, 1.0
      %v4807 = vadd.f32 %v4681, 1.0
      %v4808 = vadd.f32 %v4683, 1.0
      %v4809 = vadd.f32 %v4685, 1.0
      %v4810 = vadd.f32 %v4687, 1.0
      %v4811 = vadd.f32 %v4689, 1.0
      %v4812 = vadd.f32 %v4691, 1.0
      %v4813 = vadd.f32 %v4693, 1.0
      %v4814 = vadd.f32 %v4695, 1.0
      %v4815 = vadd.f32 %v4697, 1.0
      %v4816 = vadd.f32 %v4699, 1.0
      %v4817 = vadd.f32 %v4701, 1.0
      %v4818 = vadd.f32 %v4703, 1.0
      %v4819 = vadd.f32 %v4705, 1.0
      %v4820 = vadd.f32 %v4707, 1.0
      %v4821 = vadd.f32 %v4709, 1.0
      %v4822 = vadd.f32 %v4711, 1.0
      %v4823 = vadd.f32 %v4713, 1.0
      %v4824 = vadd.f32 %v4715, 1.0
      %v4825 = vadd.f32 %v4717, 1.0
      %v4826 = vadd.f32 %v4719, 1.0
      %v4827 = vadd.f32 %v4721, 1.0
      %v4828 = vadd.f32 %v4723, 1.0
      %v4829 = vadd.f32 %v4725, 1.0
      %v4830 = vadd.f32 %v4727, 1.0
      %v4831 = vadd.f32 %v4729, 1.0
      %v4832 = vadd.f32 %v4731, 1.0
      %v4833 = vadd.f32 %v4733, 1.0
      %v4834 = vadd.f32 %v4735, 1.0
      %v4835 = vadd.f32 %v4737, 1.0
      %v4836 = vadd.f32 %v4739, 1.0
      %v4837 = vadd.f32 %v4741, 1.0
      %v4838 = vadd.f32 %v4743, 1.0
      %v4839 = vadd.f32 %v4745, 1.0
      %v4840 = vadd.f32 %v4747, 1.0
      %v4841 = vadd.f32 %v4749, 1.0
      %v4842 = vadd.f32 %v4751, 1.0
      %v4843 = vadd.f32 %v4753, 1.0
      %v4844 = vadd.f32 %v4755, 1.0
      %v4845 = vadd.f32 %v4757, 1.0
      %v4846 = vadd.f32 %v4759, 1.0
      %v4847 = vadd.f32 %v4761, 1.0
      %v4848 = vadd.f32 %v4763, 1.0
      %v4849 = vadd.f32 %v4765, 1.0
      %v4850 = vadd.f32 %v4767, 1.0
      %v4851 = vadd.f32 %v4769, 1.0
      %v4852 = vadd.f32 %v4771, 1.0
      %v4853 = vadd.f32 %v4773, 1.0
      %v4854 = vadd.f32 %v4775, 1.0
      %v4855 = vadd.f32 %v4777, 1.0
      %v4856 = vadd.f32 %v4779, 1.0
      %v4857 = vadd.f32 %v4781, 1.0
      %v4858 = vadd.f32 %v4783, 1.0
      %v4859 = vadd.f32 %v4785, 1.0
      %v4860 = vadd.f32 %v4787, 1.0
      %v4861 = vadd.f32 %v4789, 1.0
      %v4862 = vadd.f32 %v4791, 1.0
      %v4863 = vadd.f32 %v4793, 1.0
      %v4864 = vadd.f32 %v4795, 1.0
      %v4865 = vadd.f32 %v4797, 1.0
      %v4866 = vadd.f32 %v4799, 1.0
      %v4867 = vadd.f32 %v4801, 1.0
      %v4868 = vadd.f32 %v4803, 1.0
      %v4869 = vadd.f32 %v4805, 1.0
      %v4870 = vrcp.pop %v4806
      %v4871 = vrcp.pop %v4807
      %v4872 = vrcp.pop %v4808
      %v4873 = vrcp.pop %v4809
      %v4874 = vrcp.pop %v4810
      %v4875 = vrcp.pop %v4811
      %v4876 = vrcp.pop %v4812
      %v4877 = vrcp.pop %v4813
      %v4878 = vrcp.pop %v4814
      %v4879 = vrcp.pop %v4815
      %v4880 = vrcp.pop %v4816
      %v4881 = vrcp.pop %v4817
      %v4882 = vrcp.pop %v4818
      %v4883 = vrcp.pop %v4819
      %v4884 = vrcp.pop %v4820
      %v4885 = vrcp.pop %v4821
      %v4886 = vrcp.pop %v4822
      %v4887 = vrcp.pop %v4823
      %v4888 = vrcp.pop %v4824
      %v4889 = vrcp.pop %v4825
      %v4890 = vrcp.pop %v4826
      %v4891 = vrcp.pop %v4827
      %v4892 = vrcp.pop %v4828
      %v4893 = vrcp.pop %v4829
      %v4894 = vrcp.pop %v4830
      %v4895 = vrcp.pop %v4831
      %v4896 = vrcp.pop %v4832
      %v4897 = vrcp.pop %v4833
      %v4898 = vrcp.pop %v4834
      %v4899 = vrcp.pop %v4835
      %v4900 = vrcp.pop %v4836
      %v4901 = vrcp.pop %v4837
      %v4902 = vrcp.pop %v4838
      %v4903 = vrcp.pop %v4839
      %v4904 = vrcp.pop %v4840
      %v4905 = vrcp.pop %v4841
      %v4906 = vrcp.pop %v4842
      %v4907 = vrcp.pop %v4843
      %v4908 = vrcp.pop %v4844
      %v4909 = vrcp.pop %v4845
      %v4910 = vrcp.pop %v4846
      %v4911 = vrcp.pop %v4847
      %v4912 = vrcp.pop %v4848
      %v4913 = vrcp.pop %v4849
      %v4914 = vrcp.pop %v4850
      %v4915 = vrcp.pop %v4851
      %v4916 = vrcp.pop %v4852
      %v4917 = vrcp.pop %v4853
      %v4918 = vrcp.pop %v4854
      %v4919 = vrcp.pop %v4855
      %v4920 = vrcp.pop %v4856
      %v4921 = vrcp.pop %v4857
      %v4922 = vrcp.pop %v4858
      %v4923 = vrcp.pop %v4859
      %v4924 = vrcp.pop %v4860
      %v4925 = vrcp.pop %v4861
      %v4926 = vrcp.pop %v4862
      %v4927 = vrcp.pop %v4863
      %v4928 = vrcp.pop %v4864
      %v4929 = vrcp.pop %v4865
      %v4930 = vrcp.pop %v4866
      %v4931 = vrcp.pop %v4867
      %v4932 = vrcp.pop %v4868
      %v4933 = vrcp.pop %v4869
      %v4934 = vmul.f32 %v4550, %v4870
      %v4935 = vmul.f32 %v4551, %v4871
      %v4936 = vmul.f32 %v4552, %v4872
      %v4937 = vmul.f32 %v4553, %v4873
      %v4938 = vmul.f32 %v4554, %v4874
      %v4939 = vmul.f32 %v4555, %v4875
      %v4940 = vmul.f32 %v4556, %v4876
      %v4941 = vmul.f32 %v4557, %v4877
      %v4942 = vmul.f32 %v4558, %v4878
      %v4943 = vmul.f32 %v4559, %v4879
      %v4944 = vmul.f32 %v4560, %v4880
      %v4945 = vmul.f32 %v4561, %v4881
      %v4946 = vmul.f32 %v4562, %v4882
      %v4947 = vmul.f32 %v4563, %v4883
      %v4948 = vmul.f32 %v4564, %v4884
      %v4949 = vmul.f32 %v4565, %v4885
      %v4950 = vmul.f32 %v4566, %v4886
      %v4951 = vmul.f32 %v4567, %v4887
      %v4952 = vmul.f32 %v4568, %v4888
      %v4953 = vmul.f32 %v4569, %v4889
      %v4954 = vmul.f32 %v4570, %v4890
      %v4955 = vmul.f32 %v4571, %v4891
      %v4956 = vmul.f32 %v4572, %v4892
      %v4957 = vmul.f32 %v4573, %v4893
      %v4958 = vmul.f32 %v4574, %v4894
      %v4959 = vmul.f32 %v4575, %v4895
      %v4960 = vmul.f32 %v4576, %v4896
      %v4961 = vmul.f32 %v4577, %v4897
      %v4962 = vmul.f32 %v4578, %v4898
      %v4963 = vmul.f32 %v4579, %v4899
      %v4964 = vmul.f32 %v4580, %v4900
      %v4965 = vmul.f32 %v4581, %v4901
      %v4966 = vmul.f32 %v4582, %v4902
      %v4967 = vmul.f32 %v4583, %v4903
      %v4968 = vmul.f32 %v4584, %v4904
      %v4969 = vmul.f32 %v4585, %v4905
      %v4970 = vmul.f32 %v4586, %v4906
      %v4971 = vmul.f32 %v4587, %v4907
      %v4972 = vmul.f32 %v4588, %v4908
      %v4973 = vmul.f32 %v4589, %v4909
      %v4974 = vmul.f32 %v4590, %v4910
      %v4975 = vmul.f32 %v4591, %v4911
      %v4976 = vmul.f32 %v4592, %v4912
      %v4977 = vmul.f32 %v4593, %v4913
      %v4978 = vmul.f32 %v4594, %v4914
      %v4979 = vmul.f32 %v4595, %v4915
      %v4980 = vmul.f32 %v4596, %v4916
      %v4981 = vmul.f32 %v4597, %v4917
      %v4982 = vmul.f32 %v4598, %v4918
      %v4983 = vmul.f32 %v4599, %v4919
      %v4984 = vmul.f32 %v4600, %v4920
      %v4985 = vmul.f32 %v4601, %v4921
      %v4986 = vmul.f32 %v4602, %v4922
      %v4987 = vmul.f32 %v4603, %v4923
      %v4988 = vmul.f32 %v4604, %v4924
      %v4989 = vmul.f32 %v4605, %v4925
      %v4990 = vmul.f32 %v4606, %v4926
      %v4991 = vmul.f32 %v4607, %v4927
      %v4992 = vmul.f32 %v4608, %v4928
      %v4993 = vmul.f32 %v4609, %v4929
      %v4994 = vmul.f32 %v4610, %v4930
      %v4995 = vmul.f32 %v4611, %v4931
      %v4996 = vmul.f32 %v4612, %v4932
      %v4997 = vmul.f32 %v4613, %v4933
      %5062 = vrot.lane.b32.xlu0 %v4550, 96
      %v5063 = vpop.permute.xlu0 %5062
      %5064 = vrot.lane.b32.xlu0 %v4551, 96
      %v5065 = vpop.permute.xlu0 %5064
      %5066 = vrot.lane.b32.xlu0 %v4552, 96
      %v5067 = vpop.permute.xlu0 %5066
      %5068 = vrot.lane.b32.xlu0 %v4553, 96
      %v5069 = vpop.permute.xlu0 %5068
      %5070 = vrot.lane.b32.xlu0 %v4554, 96
      %v5071 = vpop.permute.xlu0 %5070
      %5072 = vrot.lane.b32.xlu0 %v4555, 96
      %v5073 = vpop.permute.xlu0 %5072
      %5074 = vrot.lane.b32.xlu0 %v4556, 96
      %v5075 = vpop.permute.xlu0 %5074
      %5076 = vrot.lane.b32.xlu0 %v4557, 96
      %v5077 = vpop.permute.xlu0 %5076
      %5078 = vrot.lane.b32.xlu0 %v4558, 96
      %v5079 = vpop.permute.xlu0 %5078
      %5080 = vrot.lane.b32.xlu0 %v4559, 96
      %v5081 = vpop.permute.xlu0 %5080
      %5082 = vrot.lane.b32.xlu0 %v4560, 96
      %v5083 = vpop.permute.xlu0 %5082
      %5084 = vrot.lane.b32.xlu0 %v4561, 96
      %v5085 = vpop.permute.xlu0 %5084
      %5086 = vrot.lane.b32.xlu0 %v4562, 96
      %v5087 = vpop.permute.xlu0 %5086
      %5088 = vrot.lane.b32.xlu0 %v4563, 96
      %v5089 = vpop.permute.xlu0 %5088
      %5090 = vrot.lane.b32.xlu0 %v4564, 96
      %v5091 = vpop.permute.xlu0 %5090
      %5092 = vrot.lane.b32.xlu0 %v4565, 96
      %v5093 = vpop.permute.xlu0 %5092
      %5094 = vrot.lane.b32.xlu0 %v4566, 96
      %v5095 = vpop.permute.xlu0 %5094
      %5096 = vrot.lane.b32.xlu0 %v4567, 96
      %v5097 = vpop.permute.xlu0 %5096
      %5098 = vrot.lane.b32.xlu0 %v4568, 96
      %v5099 = vpop.permute.xlu0 %5098
      %5100 = vrot.lane.b32.xlu0 %v4569, 96
      %v5101 = vpop.permute.xlu0 %5100
      %5102 = vrot.lane.b32.xlu0 %v4570, 96
      %v5103 = vpop.permute.xlu0 %5102
      %5104 = vrot.lane.b32.xlu0 %v4571, 96
      %v5105 = vpop.permute.xlu0 %5104
      %5106 = vrot.lane.b32.xlu0 %v4572, 96
      %v5107 = vpop.permute.xlu0 %5106
      %5108 = vrot.lane.b32.xlu0 %v4573, 96
      %v5109 = vpop.permute.xlu0 %5108
      %5110 = vrot.lane.b32.xlu0 %v4574, 96
      %v5111 = vpop.permute.xlu0 %5110
      %5112 = vrot.lane.b32.xlu0 %v4575, 96
      %v5113 = vpop.permute.xlu0 %5112
      %5114 = vrot.lane.b32.xlu0 %v4576, 96
      %v5115 = vpop.permute.xlu0 %5114
      %5116 = vrot.lane.b32.xlu0 %v4577, 96
      %v5117 = vpop.permute.xlu0 %5116
      %5118 = vrot.lane.b32.xlu0 %v4578, 96
      %v5119 = vpop.permute.xlu0 %5118
      %5120 = vrot.lane.b32.xlu0 %v4579, 96
      %v5121 = vpop.permute.xlu0 %5120
      %5122 = vrot.lane.b32.xlu0 %v4580, 96
      %v5123 = vpop.permute.xlu0 %5122
      %5124 = vrot.lane.b32.xlu0 %v4581, 96
      %v5125 = vpop.permute.xlu0 %5124
      %5126 = vrot.lane.b32.xlu0 %v4582, 96
      %v5127 = vpop.permute.xlu0 %5126
      %5128 = vrot.lane.b32.xlu0 %v4583, 96
      %v5129 = vpop.permute.xlu0 %5128
      %5130 = vrot.lane.b32.xlu0 %v4584, 96
      %v5131 = vpop.permute.xlu0 %5130
      %5132 = vrot.lane.b32.xlu0 %v4585, 96
      %v5133 = vpop.permute.xlu0 %5132
      %5134 = vrot.lane.b32.xlu0 %v4586, 96
      %v5135 = vpop.permute.xlu0 %5134
      %5136 = vrot.lane.b32.xlu0 %v4587, 96
      %v5137 = vpop.permute.xlu0 %5136
      %5138 = vrot.lane.b32.xlu0 %v4588, 96
      %v5139 = vpop.permute.xlu0 %5138
      %5140 = vrot.lane.b32.xlu0 %v4589, 96
      %v5141 = vpop.permute.xlu0 %5140
      %5142 = vrot.lane.b32.xlu0 %v4590, 96
      %v5143 = vpop.permute.xlu0 %5142
      %5144 = vrot.lane.b32.xlu0 %v4591, 96
      %v5145 = vpop.permute.xlu0 %5144
      %5146 = vrot.lane.b32.xlu0 %v4592, 96
      %v5147 = vpop.permute.xlu0 %5146
      %5148 = vrot.lane.b32.xlu0 %v4593, 96
      %v5149 = vpop.permute.xlu0 %5148
      %5150 = vrot.lane.b32.xlu0 %v4594, 96
      %v5151 = vpop.permute.xlu0 %5150
      %5152 = vrot.lane.b32.xlu0 %v4595, 96
      %v5153 = vpop.permute.xlu0 %5152
      %5154 = vrot.lane.b32.xlu0 %v4596, 96
      %v5155 = vpop.permute.xlu0 %5154
      %5156 = vrot.lane.b32.xlu0 %v4597, 96
      %v5157 = vpop.permute.xlu0 %5156
      %5158 = vrot.lane.b32.xlu0 %v4598, 96
      %v5159 = vpop.permute.xlu0 %5158
      %5160 = vrot.lane.b32.xlu0 %v4599, 96
      %v5161 = vpop.permute.xlu0 %5160
      %5162 = vrot.lane.b32.xlu0 %v4600, 96
      %v5163 = vpop.permute.xlu0 %5162
      %5164 = vrot.lane.b32.xlu0 %v4601, 96
      %v5165 = vpop.permute.xlu0 %5164
      %5166 = vrot.lane.b32.xlu0 %v4602, 96
      %v5167 = vpop.permute.xlu0 %5166
      %5168 = vrot.lane.b32.xlu0 %v4603, 96
      %v5169 = vpop.permute.xlu0 %5168
      %5170 = vrot.lane.b32.xlu0 %v4604, 96
      %v5171 = vpop.permute.xlu0 %5170
      %5172 = vrot.lane.b32.xlu0 %v4605, 96
      %v5173 = vpop.permute.xlu0 %5172
      %5174 = vrot.lane.b32.xlu0 %v4606, 96
      %v5175 = vpop.permute.xlu0 %5174
      %5176 = vrot.lane.b32.xlu0 %v4607, 96
      %v5177 = vpop.permute.xlu0 %5176
      %5178 = vrot.lane.b32.xlu0 %v4608, 96
      %v5179 = vpop.permute.xlu0 %5178
      %5180 = vrot.lane.b32.xlu0 %v4609, 96
      %v5181 = vpop.permute.xlu0 %5180
      %5182 = vrot.lane.b32.xlu0 %v4610, 96
      %v5183 = vpop.permute.xlu0 %5182
      %5184 = vrot.lane.b32.xlu0 %v4611, 96
      %v5185 = vpop.permute.xlu0 %5184
      %5186 = vrot.lane.b32.xlu0 %v4612, 96
      %v5187 = vpop.permute.xlu0 %5186
      %5188 = vrot.lane.b32.xlu0 %v4613, 96
      %v5189 = vpop.permute.xlu0 %5188
      %v5254 = vmul.f32 %v4934, %v5063
      %v5255 = vmul.f32 %v4935, %v5065
      %v5256 = vmul.f32 %v4936, %v5067
      %v5257 = vmul.f32 %v4937, %v5069
      %v5258 = vmul.f32 %v4938, %v5071
      %v5259 = vmul.f32 %v4939, %v5073
      %v5260 = vmul.f32 %v4940, %v5075
      %v5261 = vmul.f32 %v4941, %v5077
      %v5262 = vmul.f32 %v4942, %v5079
      %v5263 = vmul.f32 %v4943, %v5081
      %v5264 = vmul.f32 %v4944, %v5083
      %v5265 = vmul.f32 %v4945, %v5085
      %v5266 = vmul.f32 %v4946, %v5087
      %v5267 = vmul.f32 %v4947, %v5089
      %v5268 = vmul.f32 %v4948, %v5091
      %v5269 = vmul.f32 %v4949, %v5093
      %v5270 = vmul.f32 %v4950, %v5095
      %v5271 = vmul.f32 %v4951, %v5097
      %v5272 = vmul.f32 %v4952, %v5099
      %v5273 = vmul.f32 %v4953, %v5101
      %v5274 = vmul.f32 %v4954, %v5103
      %v5275 = vmul.f32 %v4955, %v5105
      %v5276 = vmul.f32 %v4956, %v5107
      %v5277 = vmul.f32 %v4957, %v5109
      %v5278 = vmul.f32 %v4958, %v5111
      %v5279 = vmul.f32 %v4959, %v5113
      %v5280 = vmul.f32 %v4960, %v5115
      %v5281 = vmul.f32 %v4961, %v5117
      %v5282 = vmul.f32 %v4962, %v5119
      %v5283 = vmul.f32 %v4963, %v5121
      %v5284 = vmul.f32 %v4964, %v5123
      %v5285 = vmul.f32 %v4965, %v5125
      %v5286 = vmul.f32 %v4966, %v5127
      %v5287 = vmul.f32 %v4967, %v5129
      %v5288 = vmul.f32 %v4968, %v5131
      %v5289 = vmul.f32 %v4969, %v5133
      %v5290 = vmul.f32 %v4970, %v5135
      %v5291 = vmul.f32 %v4971, %v5137
      %v5292 = vmul.f32 %v4972, %v5139
      %v5293 = vmul.f32 %v4973, %v5141
      %v5294 = vmul.f32 %v4974, %v5143
      %v5295 = vmul.f32 %v4975, %v5145
      %v5296 = vmul.f32 %v4976, %v5147
      %v5297 = vmul.f32 %v4977, %v5149
      %v5298 = vmul.f32 %v4978, %v5151
      %v5299 = vmul.f32 %v4979, %v5153
      %v5300 = vmul.f32 %v4980, %v5155
      %v5301 = vmul.f32 %v4981, %v5157
      %v5302 = vmul.f32 %v4982, %v5159
      %v5303 = vmul.f32 %v4983, %v5161
      %v5304 = vmul.f32 %v4984, %v5163
      %v5305 = vmul.f32 %v4985, %v5165
      %v5306 = vmul.f32 %v4986, %v5167
      %v5307 = vmul.f32 %v4987, %v5169
      %v5308 = vmul.f32 %v4988, %v5171
      %v5309 = vmul.f32 %v4989, %v5173
      %v5310 = vmul.f32 %v4990, %v5175
      %v5311 = vmul.f32 %v4991, %v5177
      %v5312 = vmul.f32 %v4992, %v5179
      %v5313 = vmul.f32 %v4993, %v5181
      %v5314 = vmul.f32 %v4994, %v5183
      %v5315 = vmul.f32 %v4995, %v5185
      %v5316 = vmul.f32 %v4996, %v5187
      %v5317 = vmul.f32 %v4997, %v5189
      %v5318 = vpack.c.bf16 %v5255, %v5254
      %v5319 = vpack.c.bf16 %v5257, %v5256
      %v5320 = vpack.c.bf16 %v5259, %v5258
      %v5321 = vpack.c.bf16 %v5261, %v5260
      %v5322 = vpack.c.bf16 %v5263, %v5262
      %v5323 = vpack.c.bf16 %v5265, %v5264
      %v5324 = vpack.c.bf16 %v5267, %v5266
      %v5325 = vpack.c.bf16 %v5269, %v5268
      %v5326 = vpack.c.bf16 %v5271, %v5270
      %v5327 = vpack.c.bf16 %v5273, %v5272
      %v5328 = vpack.c.bf16 %v5275, %v5274
      %v5329 = vpack.c.bf16 %v5277, %v5276
      %v5330 = vpack.c.bf16 %v5279, %v5278
      %v5331 = vpack.c.bf16 %v5281, %v5280
      %v5332 = vpack.c.bf16 %v5283, %v5282
      %v5333 = vpack.c.bf16 %v5285, %v5284
      %v5334 = vpack.c.bf16 %v5287, %v5286
      %v5335 = vpack.c.bf16 %v5289, %v5288
      %v5336 = vpack.c.bf16 %v5291, %v5290
      %v5337 = vpack.c.bf16 %v5293, %v5292
      %v5338 = vpack.c.bf16 %v5295, %v5294
      %v5339 = vpack.c.bf16 %v5297, %v5296
      %v5340 = vpack.c.bf16 %v5299, %v5298
      %v5341 = vpack.c.bf16 %v5301, %v5300
      %v5342 = vpack.c.bf16 %v5303, %v5302
      %v5343 = vpack.c.bf16 %v5305, %v5304
      %v5344 = vpack.c.bf16 %v5307, %v5306
      %v5345 = vpack.c.bf16 %v5309, %v5308
      %v5346 = vpack.c.bf16 %v5311, %v5310
      %v5347 = vpack.c.bf16 %v5313, %v5312
      %v5348 = vpack.c.bf16 %v5315, %v5314
      %v5349 = vpack.c.bf16 %v5317, %v5316
      %v5350 = vld [vmem:[%s3] sm:$0xf]
      %v5351 = vld [vmem:[%s3 + $0x4] sm:$0xf]
      %v5352 = vld [vmem:[%s3 + $0x8] sm:$0xf]
      %v5353 = vld [vmem:[%s3 + $0xc] sm:$0xf]
      %v5354 = vld [vmem:[%s6] sm:$0x1]
      %v5356 = vlaneseq
      %v5357 = vshrl.u32 %v5356, 7
      %v5358 = vsub.s32 0, %v5357
      %v5359 = vrot.slane %v5354, %v5358
      %v5365 = vunpack.c.l.b16 %v5350
      %v5366 = vunpack.c.l.b16 %v5351
      %v5367 = vunpack.c.l.b16 %v5352
      %v5368 = vunpack.c.l.b16 %v5353
      %v5369 = vpack.c.b16 %v5366, %v5365
      %v5370 = vpack.c.b16 %v5368, %v5367
      %vm5373 = vcmask 261120
      %v5375 = vsel %vm5373, %v5318, 0
      %v5378 = vsel %vm5373, %v5319, 0
      %v5381 = vsel %vm5373, %v5320, 0
      %v5384 = vsel %vm5373, %v5321, 0
      %v5387 = vsel %vm5373, %v5322, 0
      %v5390 = vsel %vm5373, %v5323, 0
      %v5393 = vsel %vm5373, %v5324, 0
      %v5396 = vsel %vm5373, %v5325, 0
      %v5399 = vsel %vm5373, %v5326, 0
      %v5402 = vsel %vm5373, %v5327, 0
      %v5405 = vsel %vm5373, %v5328, 0
      %v5408 = vsel %vm5373, %v5329, 0
      %v5411 = vsel %vm5373, %v5330, 0
      %v5414 = vsel %vm5373, %v5331, 0
      %v5417 = vsel %vm5373, %v5332, 0
      %v5420 = vsel %vm5373, %v5333, 0
      %v5423 = vsel %vm5373, %v5334, 0
      %v5426 = vsel %vm5373, %v5335, 0
      %v5429 = vsel %vm5373, %v5336, 0
      %v5432 = vsel %vm5373, %v5337, 0
      %v5435 = vsel %vm5373, %v5338, 0
      %v5438 = vsel %vm5373, %v5339, 0
      %v5441 = vsel %vm5373, %v5340, 0
      %v5444 = vsel %vm5373, %v5341, 0
      %v5447 = vsel %vm5373, %v5342, 0
      %v5450 = vsel %vm5373, %v5343, 0
      %v5453 = vsel %vm5373, %v5344, 0
      %v5456 = vsel %vm5373, %v5345, 0
      %v5459 = vsel %vm5373, %v5346, 0
      %v5462 = vsel %vm5373, %v5347, 0
      %v5465 = vsel %vm5373, %v5348, 0
      %v5468 = vsel %vm5373, %v5349, 0
      %5470 = vmatprep.subr.bf16.mxu0 0
      %5471 = vmatpush1.bf16.msra.mxu0 %v5369
      %5472 = vmatprep.subr.bf16.mxu0 0
      %5473 = vmatpush1.bf16.msra.mxu0 %v5370
      %5474 = vmatprep.subr.bf16.mxu0 0
      %5475 = vmatpush1.bf16.msra.mxu0 0
      %5476 = vmatprep.subr.bf16.mxu0 0
      %5477 = vmatpush1.bf16.msra.mxu0 0
      %5478 = vmatprep.subr.bf16.mxu0 0
      %5479 = vmatpush1.bf16.msra.mxu0 0
      %5480 = vmatprep.subr.bf16.mxu0 0
      %5481 = vmatpush1.bf16.msra.mxu0 0
      %5482 = vmatprep.subr.bf16.mxu0 0
      %5483 = vmatpush1.bf16.msra.mxu0 0
      %5484 = vmatprep.subr.bf16.mxu0 0
      %5485 = vmatpush1.bf16.msra.mxu0 0
      %5486 = vmatprep.subr.bf16.mxu0 0
      %5487 = vmatpush1.bf16.msra.mxu0 0
      %5488 = vmatprep.subr.bf16.mxu0 0
      %5489 = vmatpush1.bf16.msra.mxu0 0
      %5490 = vmatprep.subr.bf16.mxu0 0
      %5491 = vmatpush1.bf16.msra.mxu0 0
      %5492 = vmatprep.subr.bf16.mxu0 0
      %5493 = vmatpush1.bf16.msra.mxu0 0
      %5494 = vmatprep.subr.bf16.mxu0 0
      %5495 = vmatpush1.bf16.msra.mxu0 0
      %5496 = vmatprep.subr.bf16.mxu0 0
      %5497 = vmatpush1.bf16.msra.mxu0 0
      %5498 = vmatprep.subr.bf16.mxu0 0
      %5499 = vmatpush1.bf16.msra.mxu0 0
      %5500 = vmatprep.subr.bf16.mxu0 0
      %5501 = vmatpush1.bf16.msra.mxu0 0
      %5502 = vmatprep.mubr.bf16.mxu0 0
      %5503 = vmatmul.mubr.bf16.gmra.mrb[0].mxu0 %v5375
      %v5504 = vpop.f32.mrb[0].mxu0
      %v5505 = vadd.f32 %v5359, %v5504
      %v5506 = vpop.f32.mrb[0].mxu0
      %v5507 = vpop.f32.mrb[0].mxu0
      %v5508 = vadd.f32 %v5359, %v5507
      %v5509 = vpop.f32.mrb[0].mxu0
      %5510 = vmatprep.mubr.bf16.mxu0 0
      %5511 = vmatmul.mubr.bf16.gmra.mrb[0].mxu0 %v5378
      %v5512 = vpop.f32.mrb[0].mxu0
      %v5513 = vadd.f32 %v5359, %v5512
      %v5514 = vpop.f32.mrb[0].mxu0
      %v5515 = vpop.f32.mrb[0].mxu0
      %v5516 = vadd.f32 %v5359, %v5515
      %v5517 = vpop.f32.mrb[0].mxu0
      %5518 = vmatprep.mubr.bf16.mxu0 0
      %5519 = vmatmul.mubr.bf16.gmra.mrb[0].mxu0 %v5381
      %v5520 = vpop.f32.mrb[0].mxu0
      %v5521 = vadd.f32 %v5359, %v5520
      %v5522 = vpop.f32.mrb[0].mxu0
      %v5523 = vpop.f32.mrb[0].mxu0
      %v5524 = vadd.f32 %v5359, %v5523
      %v5525 = vpop.f32.mrb[0].mxu0
      %5526 = vmatprep.mubr.bf16.mxu0 0
      %5527 = vmatmul.mubr.bf16.gmra.mrb[0].mxu0 %v5384
      %v5528 = vpop.f32.mrb[0].mxu0
      %v5529 = vadd.f32 %v5359, %v5528
      %v5530 = vpop.f32.mrb[0].mxu0
      %v5531 = vpop.f32.mrb[0].mxu0
      %v5532 = vadd.f32 %v5359, %v5531
      %v5533 = vpop.f32.mrb[0].mxu0
      %5534 = vmatprep.mubr.bf16.mxu0 0
      %5535 = vmatmul.mubr.bf16.gmra.mrb[0].mxu0 %v5387
      %v5536 = vpop.f32.mrb[0].mxu0
      %v5537 = vadd.f32 %v5359, %v5536
      %v5538 = vpop.f32.mrb[0].mxu0
      %v5539 = vpop.f32.mrb[0].mxu0
      %v5540 = vadd.f32 %v5359, %v5539
      %v5541 = vpop.f32.mrb[0].mxu0
      %5542 = vmatprep.mubr.bf16.mxu0 0
      %5543 = vmatmul.mubr.bf16.gmra.mrb[0].mxu0 %v5390
      %v5544 = vpop.f32.mrb[0].mxu0
      %v5545 = vadd.f32 %v5359, %v5544
      %v5546 = vpop.f32.mrb[0].mxu0
      %v5547 = vpop.f32.mrb[0].mxu0
      %v5548 = vadd.f32 %v5359, %v5547
      %v5549 = vpop.f32.mrb[0].mxu0
      %5550 = vmatprep.mubr.bf16.mxu0 0
      %5551 = vmatmul.mubr.bf16.gmra.mrb[0].mxu0 %v5393
      %v5552 = vpop.f32.mrb[0].mxu0
      %v5553 = vadd.f32 %v5359, %v5552
      %v5554 = vpop.f32.mrb[0].mxu0
      %v5555 = vpop.f32.mrb[0].mxu0
      %v5556 = vadd.f32 %v5359, %v5555
      %v5557 = vpop.f32.mrb[0].mxu0
      %5558 = vmatprep.mubr.bf16.mxu0 0
      %5559 = vmatmul.mubr.bf16.gmra.mrb[0].mxu0 %v5396
      %v5560 = vpop.f32.mrb[0].mxu0
      %v5561 = vadd.f32 %v5359, %v5560
      %v5562 = vpop.f32.mrb[0].mxu0
      %v5563 = vpop.f32.mrb[0].mxu0
      %v5564 = vadd.f32 %v5359, %v5563
      %v5565 = vpop.f32.mrb[0].mxu0
      %5566 = vmatprep.mubr.bf16.mxu0 0
      %5567 = vmatmul.mubr.bf16.gmra.mrb[0].mxu0 %v5399
      %v5568 = vpop.f32.mrb[0].mxu0
      %v5569 = vadd.f32 %v5359, %v5568
      %v5570 = vpop.f32.mrb[0].mxu0
      %v5571 = vpop.f32.mrb[0].mxu0
      %v5572 = vadd.f32 %v5359, %v5571
      %v5573 = vpop.f32.mrb[0].mxu0
      %5574 = vmatprep.mubr.bf16.mxu0 0
      %5575 = vmatmul.mubr.bf16.gmra.mrb[0].mxu0 %v5402
      %v5576 = vpop.f32.mrb[0].mxu0
      %v5577 = vadd.f32 %v5359, %v5576
      %v5578 = vpop.f32.mrb[0].mxu0
      %v5579 = vpop.f32.mrb[0].mxu0
      %v5580 = vadd.f32 %v5359, %v5579
      %v5581 = vpop.f32.mrb[0].mxu0
      %5582 = vmatprep.mubr.bf16.mxu0 0
      %5583 = vmatmul.mubr.bf16.gmra.mrb[0].mxu0 %v5405
      %v5584 = vpop.f32.mrb[0].mxu0
      %v5585 = vadd.f32 %v5359, %v5584
      %v5586 = vpop.f32.mrb[0].mxu0
      %v5587 = vpop.f32.mrb[0].mxu0
      %v5588 = vadd.f32 %v5359, %v5587
      %v5589 = vpop.f32.mrb[0].mxu0
      %5590 = vmatprep.mubr.bf16.mxu0 0
      %5591 = vmatmul.mubr.bf16.gmra.mrb[0].mxu0 %v5408
      %v5592 = vpop.f32.mrb[0].mxu0
      %v5593 = vadd.f32 %v5359, %v5592
      %v5594 = vpop.f32.mrb[0].mxu0
      %v5595 = vpop.f32.mrb[0].mxu0
      %v5596 = vadd.f32 %v5359, %v5595
      %v5597 = vpop.f32.mrb[0].mxu0
      %5598 = vmatprep.mubr.bf16.mxu0 0
      %5599 = vmatmul.mubr.bf16.gmra.mrb[0].mxu0 %v5411
      %v5600 = vpop.f32.mrb[0].mxu0
      %v5601 = vadd.f32 %v5359, %v5600
      %v5602 = vpop.f32.mrb[0].mxu0
      %v5603 = vpop.f32.mrb[0].mxu0
      %v5604 = vadd.f32 %v5359, %v5603
      %v5605 = vpop.f32.mrb[0].mxu0
      %5606 = vmatprep.mubr.bf16.mxu0 0
      %5607 = vmatmul.mubr.bf16.gmra.mrb[0].mxu0 %v5414
      %v5608 = vpop.f32.mrb[0].mxu0
      %v5609 = vadd.f32 %v5359, %v5608
      %v5610 = vpop.f32.mrb[0].mxu0
      %v5611 = vpop.f32.mrb[0].mxu0
      %v5612 = vadd.f32 %v5359, %v5611
      %v5613 = vpop.f32.mrb[0].mxu0
      %5614 = vmatprep.mubr.bf16.mxu0 0
      %5615 = vmatmul.mubr.bf16.gmra.mrb[0].mxu0 %v5417
      %v5616 = vpop.f32.mrb[0].mxu0
      %v5617 = vadd.f32 %v5359, %v5616
      %v5618 = vpop.f32.mrb[0].mxu0
      %v5619 = vpop.f32.mrb[0].mxu0
      %v5620 = vadd.f32 %v5359, %v5619
      %v5621 = vpop.f32.mrb[0].mxu0
      %5622 = vmatprep.mubr.bf16.mxu0 0
      %5623 = vmatmul.mubr.bf16.gmra.mrb[0].mxu0 %v5420
      %v5624 = vpop.f32.mrb[0].mxu0
      %v5625 = vadd.f32 %v5359, %v5624
      %v5626 = vpop.f32.mrb[0].mxu0
      %v5627 = vpop.f32.mrb[0].mxu0
      %v5628 = vadd.f32 %v5359, %v5627
      %v5629 = vpop.f32.mrb[0].mxu0
      %5630 = vmatprep.mubr.bf16.mxu0 0
      %5631 = vmatmul.mubr.bf16.gmra.mrb[0].mxu0 %v5423
      %v5632 = vpop.f32.mrb[0].mxu0
      %v5633 = vadd.f32 %v5359, %v5632
      %v5634 = vpop.f32.mrb[0].mxu0
      %v5635 = vpop.f32.mrb[0].mxu0
      %v5636 = vadd.f32 %v5359, %v5635
      %v5637 = vpop.f32.mrb[0].mxu0
      %5638 = vmatprep.mubr.bf16.mxu0 0
      %5639 = vmatmul.mubr.bf16.gmra.mrb[0].mxu0 %v5426
      %v5640 = vpop.f32.mrb[0].mxu0
      %v5641 = vadd.f32 %v5359, %v5640
      %v5642 = vpop.f32.mrb[0].mxu0
      %v5643 = vpop.f32.mrb[0].mxu0
      %v5644 = vadd.f32 %v5359, %v5643
      %v5645 = vpop.f32.mrb[0].mxu0
      %5646 = vmatprep.mubr.bf16.mxu0 0
      %5647 = vmatmul.mubr.bf16.gmra.mrb[0].mxu0 %v5429
      %v5648 = vpop.f32.mrb[0].mxu0
      %v5649 = vadd.f32 %v5359, %v5648
      %v5650 = vpop.f32.mrb[0].mxu0
      %v5651 = vpop.f32.mrb[0].mxu0
      %v5652 = vadd.f32 %v5359, %v5651
      %v5653 = vpop.f32.mrb[0].mxu0
      %5654 = vmatprep.mubr.bf16.mxu0 0
      %5655 = vmatmul.mubr.bf16.gmra.mrb[0].mxu0 %v5432
      %v5656 = vpop.f32.mrb[0].mxu0
      %v5657 = vadd.f32 %v5359, %v5656
      %v5658 = vpop.f32.mrb[0].mxu0
      %v5659 = vpop.f32.mrb[0].mxu0
      %v5660 = vadd.f32 %v5359, %v5659
      %v5661 = vpop.f32.mrb[0].mxu0
      %5662 = vmatprep.mubr.bf16.mxu0 0
      %5663 = vmatmul.mubr.bf16.gmra.mrb[0].mxu0 %v5435
      %v5664 = vpop.f32.mrb[0].mxu0
      %v5665 = vadd.f32 %v5359, %v5664
      %v5666 = vpop.f32.mrb[0].mxu0
      %v5667 = vpop.f32.mrb[0].mxu0
      %v5668 = vadd.f32 %v5359, %v5667
      %v5669 = vpop.f32.mrb[0].mxu0
      %5670 = vmatprep.mubr.bf16.mxu0 0
      %5671 = vmatmul.mubr.bf16.gmra.mrb[0].mxu0 %v5438
      %v5672 = vpop.f32.mrb[0].mxu0
      %v5673 = vadd.f32 %v5359, %v5672
      %v5674 = vpop.f32.mrb[0].mxu0
      %v5675 = vpop.f32.mrb[0].mxu0
      %v5676 = vadd.f32 %v5359, %v5675
      %v5677 = vpop.f32.mrb[0].mxu0
      %5678 = vmatprep.mubr.bf16.mxu0 0
      %5679 = vmatmul.mubr.bf16.gmra.mrb[0].mxu0 %v5441
      %v5680 = vpop.f32.mrb[0].mxu0
      %v5681 = vadd.f32 %v5359, %v5680
      %v5682 = vpop.f32.mrb[0].mxu0
      %v5683 = vpop.f32.mrb[0].mxu0
      %v5684 = vadd.f32 %v5359, %v5683
      %v5685 = vpop.f32.mrb[0].mxu0
      %5686 = vmatprep.mubr.bf16.mxu0 0
      %5687 = vmatmul.mubr.bf16.gmra.mrb[0].mxu0 %v5444
      %v5688 = vpop.f32.mrb[0].mxu0
      %v5689 = vadd.f32 %v5359, %v5688
      %v5690 = vpop.f32.mrb[0].mxu0
      %v5691 = vpop.f32.mrb[0].mxu0
      %v5692 = vadd.f32 %v5359, %v5691
      %v5693 = vpop.f32.mrb[0].mxu0
      %5694 = vmatprep.mubr.bf16.mxu0 0
      %5695 = vmatmul.mubr.bf16.gmra.mrb[0].mxu0 %v5447
      %v5696 = vpop.f32.mrb[0].mxu0
      %v5697 = vadd.f32 %v5359, %v5696
      %v5698 = vpop.f32.mrb[0].mxu0
      %v5699 = vpop.f32.mrb[0].mxu0
      %v5700 = vadd.f32 %v5359, %v5699
      %v5701 = vpop.f32.mrb[0].mxu0
      %5702 = vmatprep.mubr.bf16.mxu0 0
      %5703 = vmatmul.mubr.bf16.gmra.mrb[0].mxu0 %v5450
      %v5704 = vpop.f32.mrb[0].mxu0
      %v5705 = vadd.f32 %v5359, %v5704
      %v5706 = vpop.f32.mrb[0].mxu0
      %v5707 = vpop.f32.mrb[0].mxu0
      %v5708 = vadd.f32 %v5359, %v5707
      %v5709 = vpop.f32.mrb[0].mxu0
      %5710 = vmatprep.mubr.bf16.mxu0 0
      %5711 = vmatmul.mubr.bf16.gmra.mrb[0].mxu0 %v5453
      %v5712 = vpop.f32.mrb[0].mxu0
      %v5713 = vadd.f32 %v5359, %v5712
      %v5714 = vpop.f32.mrb[0].mxu0
      %v5715 = vpop.f32.mrb[0].mxu0
      %v5716 = vadd.f32 %v5359, %v5715
      %v5717 = vpop.f32.mrb[0].mxu0
      %5718 = vmatprep.mubr.bf16.mxu0 0
      %5719 = vmatmul.mubr.bf16.gmra.mrb[0].mxu0 %v5456
      %v5720 = vpop.f32.mrb[0].mxu0
      %v5721 = vadd.f32 %v5359, %v5720
      %v5722 = vpop.f32.mrb[0].mxu0
      %v5723 = vpop.f32.mrb[0].mxu0
      %v5724 = vadd.f32 %v5359, %v5723
      %v5725 = vpop.f32.mrb[0].mxu0
      %5726 = vmatprep.mubr.bf16.mxu0 0
      %5727 = vmatmul.mubr.bf16.gmra.mrb[0].mxu0 %v5459
      %v5728 = vpop.f32.mrb[0].mxu0
      %v5729 = vadd.f32 %v5359, %v5728
      %v5730 = vpop.f32.mrb[0].mxu0
      %v5731 = vpop.f32.mrb[0].mxu0
      %v5732 = vadd.f32 %v5359, %v5731
      %v5733 = vpop.f32.mrb[0].mxu0
      %5734 = vmatprep.mubr.bf16.mxu0 0
      %5735 = vmatmul.mubr.bf16.gmra.mrb[0].mxu0 %v5462
      %v5736 = vpop.f32.mrb[0].mxu0
      %v5737 = vadd.f32 %v5359, %v5736
      %v5738 = vpop.f32.mrb[0].mxu0
      %v5739 = vpop.f32.mrb[0].mxu0
      %v5740 = vadd.f32 %v5359, %v5739
      %v5741 = vpop.f32.mrb[0].mxu0
      %5742 = vmatprep.mubr.bf16.mxu0 0
      %5743 = vmatmul.mubr.bf16.gmra.mrb[0].mxu0 %v5465
      %v5744 = vpop.f32.mrb[0].mxu0
      %v5745 = vadd.f32 %v5359, %v5744
      %v5746 = vpop.f32.mrb[0].mxu0
      %v5747 = vpop.f32.mrb[0].mxu0
      %v5748 = vadd.f32 %v5359, %v5747
      %v5749 = vpop.f32.mrb[0].mxu0
      %5750 = vmatprep.mubr.bf16.mxu0 0
      %5751 = vmatmul.mubr.bf16.gmra.mrb[0].mxu0 %v5468
      %v5752 = vpop.f32.mrb[0].mxu0
      %v5753 = vadd.f32 %v5359, %v5752
      %v5754 = vpop.f32.mrb[0].mxu0
      %v5755 = vpop.f32.mrb[0].mxu0
      %v5756 = vadd.f32 %v5359, %v5755
      %v5757 = vpop.f32.mrb[0].mxu0
      %5758 = vdwg.mxu0
      %5759 = vst.msk [vmem:[%s302] sm:$0xff] %vm639, %v5505
      %5760 = vst.msk [vmem:[%s302 + $0x8] sm:$0xff] %vm639, %v5508
      %5761 = vst.msk [vmem:[%s302 + $0x10] sm:$0xff] %vm639, %v5513
      %5762 = vst.msk [vmem:[%s302 + $0x18] sm:$0xff] %vm639, %v5516
      %5763 = vst.msk [vmem:[%s302 + $0x20] sm:$0xff] %vm639, %v5521
      %5764 = vst.msk [vmem:[%s302 + $0x28] sm:$0xff] %vm639, %v5524
      %5765 = vst.msk [vmem:[%s302 + $0x30] sm:$0xff] %vm639, %v5529
      %5766 = vst.msk [vmem:[%s302 + $0x38] sm:$0xff] %vm639, %v5532
      %5767 = vst.msk [vmem:[%s302 + $0x40] sm:$0xff] %vm639, %v5537
      %5768 = vst.msk [vmem:[%s302 + $0x48] sm:$0xff] %vm639, %v5540
      %5769 = vst.msk [vmem:[%s302 + $0x50] sm:$0xff] %vm639, %v5545
      %5770 = vst.msk [vmem:[%s302 + $0x58] sm:$0xff] %vm639, %v5548
      %5771 = vst.msk [vmem:[%s302 + $0x60] sm:$0xff] %vm639, %v5553
      %5772 = vst.msk [vmem:[%s302 + $0x68] sm:$0xff] %vm639, %v5556
      %5773 = vst.msk [vmem:[%s302 + $0x70] sm:$0xff] %vm639, %v5561
      %5774 = vst.msk [vmem:[%s302 + $0x78] sm:$0xff] %vm639, %v5564
      %5775 = vst.msk [vmem:[%s302 + $0x80] sm:$0xff] %vm639, %v5569
      %5776 = vst.msk [vmem:[%s302 + $0x88] sm:$0xff] %vm639, %v5572
      %5777 = vst.msk [vmem:[%s302 + $0x90] sm:$0xff] %vm639, %v5577
      %5778 = vst.msk [vmem:[%s302 + $0x98] sm:$0xff] %vm639, %v5580
      %5779 = vst.msk [vmem:[%s302 + $0xa0] sm:$0xff] %vm639, %v5585
      %5780 = vst.msk [vmem:[%s302 + $0xa8] sm:$0xff] %vm639, %v5588
      %5781 = vst.msk [vmem:[%s302 + $0xb0] sm:$0xff] %vm639, %v5593
      %5782 = vst.msk [vmem:[%s302 + $0xb8] sm:$0xff] %vm639, %v5596
      %5783 = vst.msk [vmem:[%s302 + $0xc0] sm:$0xff] %vm639, %v5601
      %5784 = vst.msk [vmem:[%s302 + $0xc8] sm:$0xff] %vm639, %v5604
      %5785 = vst.msk [vmem:[%s302 + $0xd0] sm:$0xff] %vm639, %v5609
      %5786 = vst.msk [vmem:[%s302 + $0xd8] sm:$0xff] %vm639, %v5612
      %5787 = vst.msk [vmem:[%s302 + $0xe0] sm:$0xff] %vm639, %v5617
      %5788 = vst.msk [vmem:[%s302 + $0xe8] sm:$0xff] %vm639, %v5620
      %5789 = vst.msk [vmem:[%s302 + $0xf0] sm:$0xff] %vm639, %v5625
      %5790 = vst.msk [vmem:[%s302 + $0xf8] sm:$0xff] %vm639, %v5628
      %5791 = vst.msk [vmem:[%s302 + $0x100] sm:$0xff] %vm639, %v5633
      %5792 = vst.msk [vmem:[%s302 + $0x108] sm:$0xff] %vm639, %v5636
      %5793 = vst.msk [vmem:[%s302 + $0x110] sm:$0xff] %vm639, %v5641
      %5794 = vst.msk [vmem:[%s302 + $0x118] sm:$0xff] %vm639, %v5644
      %5795 = vst.msk [vmem:[%s302 + $0x120] sm:$0xff] %vm639, %v5649
      %5796 = vst.msk [vmem:[%s302 + $0x128] sm:$0xff] %vm639, %v5652
      %5797 = vst.msk [vmem:[%s302 + $0x130] sm:$0xff] %vm639, %v5657
      %5798 = vst.msk [vmem:[%s302 + $0x138] sm:$0xff] %vm639, %v5660
      %5799 = vst.msk [vmem:[%s302 + $0x140] sm:$0xff] %vm639, %v5665
      %5800 = vst.msk [vmem:[%s302 + $0x148] sm:$0xff] %vm639, %v5668
      %5801 = vst.msk [vmem:[%s302 + $0x150] sm:$0xff] %vm639, %v5673
      %5802 = vst.msk [vmem:[%s302 + $0x158] sm:$0xff] %vm639, %v5676
      %5803 = vst.msk [vmem:[%s302 + $0x160] sm:$0xff] %vm639, %v5681
      %5804 = vst.msk [vmem:[%s302 + $0x168] sm:$0xff] %vm639, %v5684
      %5805 = vst.msk [vmem:[%s302 + $0x170] sm:$0xff] %vm639, %v5689
      %5806 = vst.msk [vmem:[%s302 + $0x178] sm:$0xff] %vm639, %v5692
      %5807 = vst.msk [vmem:[%s302 + $0x180] sm:$0xff] %vm639, %v5697
      %5808 = vst.msk [vmem:[%s302 + $0x188] sm:$0xff] %vm639, %v5700
      %5809 = vst.msk [vmem:[%s302 + $0x190] sm:$0xff] %vm639, %v5705
      %5810 = vst.msk [vmem:[%s302 + $0x198] sm:$0xff] %vm639, %v5708
      %5811 = vst.msk [vmem:[%s302 + $0x1a0] sm:$0xff] %vm639, %v5713
      %5812 = vst.msk [vmem:[%s302 + $0x1a8] sm:$0xff] %vm639, %v5716
      %5813 = vst.msk [vmem:[%s302 + $0x1b0] sm:$0xff] %vm639, %v5721
      %5814 = vst.msk [vmem:[%s302 + $0x1b8] sm:$0xff] %vm639, %v5724
      %5815 = vst.msk [vmem:[%s302 + $0x1c0] sm:$0xff] %vm639, %v5729
      %5816 = vst.msk [vmem:[%s302 + $0x1c8] sm:$0xff] %vm639, %v5732
      %5817 = vst.msk [vmem:[%s302 + $0x1d0] sm:$0xff] %vm639, %v5737
      %5818 = vst.msk [vmem:[%s302 + $0x1d8] sm:$0xff] %vm639, %v5740
      %5819 = vst.msk [vmem:[%s302 + $0x1e0] sm:$0xff] %vm639, %v5745
      %5820 = vst.msk [vmem:[%s302 + $0x1e8] sm:$0xff] %vm639, %v5748
      %5821 = vst.msk [vmem:[%s302 + $0x1f0] sm:$0xff] %vm639, %v5753
      %5822 = vst.msk [vmem:[%s302 + $0x1f8] sm:$0xff] %vm639, %v5756
      %s5823 = smul.u32 16, %s23
      %p5824 = scmp.lt.s32.totalorder %s22, 1
      %s5825 = scalar_select %p5824, %s22, 1
      %p5826 = scmp.lt.s32.totalorder %s5823, 31
      %s5827 = scalar_select %p5826, %s5823, 31
      %s5828 = smul.addr %s5827, 4
      %s5829 = smul.addr %s5825, 128
      %s5830 = sadd.s32 %s5828, %s5829
      %s5831 = smul.addr %s5830, 8
      %s5832 = scalar_lea.vmem %s7, %s5831
      // Predicated region
      $region49: #{gdfn_forward.1} parent=47 // pred_check
        %p5833 = pneg %p202
      $region50: #{gdfn_forward.1} parent=47 // pred_check_branch
        %5835 = sbr.rel (%p5833) target = $region52
      $region51: #{gdfn_forward.1} parent=47 // pred_region
        %s5836 = smul.u32 16, %s23
      $region52: #{gdfn_forward.1} parent=47 // pred_fallthru
        _
    $region48: #{gdfn_forward.1} parent=5 // pred_fallthru
      _
    %p5837 = scmp.le.s32.totalorder 2, %s13
    // Predicated region
    $region53: #{gdfn_forward.1} parent=5 // pred_check
      %p5838 = pneg %p5837
    $region54: #{gdfn_forward.1} parent=5 // pred_check_branch
      %5840 = sbr.rel (%p5838) target = $region56
    $region55: #{gdfn_forward.1} parent=5 // pred_region
      %s5841 = ssub.s32 %s13, 2
      // Predicated region
      $region57: #{gdfn_forward.1} parent=55 // pred_check
        %p5842 = pneg %p208
      $region58: #{gdfn_forward.1} parent=55 // pred_check_branch
        %5844 = sbr.rel (%p5842) target = $region60
      $region59: #{gdfn_forward.1} parent=55 // pred_region
        %s5845 = smul.u32 16, %s25
        %p5846 = scmp.lt.s32.totalorder %s24, 1
        %s5847 = scalar_select %p5846, %s24, 1
        %p5848 = scmp.lt.s32.totalorder %s5845, 31
        %s5849 = scalar_select %p5848, %s5845, 31
        %s5850 = smul.addr %s5849, 4
        %s5851 = smul.addr %s5847, 128
        %s5852 = sadd.s32 %s5850, %s5851
        %s5853 = smul.addr %s5852, 8
        %s5854 = scalar_lea.vmem %s7, %s5853
      $region60: #{gdfn_forward.1} parent=55 // pred_fallthru
        _
    $region56: #{gdfn_forward.1} parent=5 // pred_fallthru
      _
  $region6: #{gdfn_forward.1} parent=0 // loop_footer
    %s17 = sadd.s32 1, %s13
  $region7: #{gdfn_forward.1} parent=0 // loop_footer_branch
    %12 = sbr.rel target = $region3
  $region8: #{gdfn_forward.1} parent=0 // loop_exit
    _

</llo_original>
